<compile_context>
chip_gen: v5e
topology: v5e:2x2
jax: 0.10.0
libtpu: 0.0.40
codegen_flags: <defaults>
</compile_context>

<pallas_src>
import jax
import jax.numpy as jnp
from jax.experimental import pallas as pl
from jax.experimental.pallas import tpu as pltpu

LRELU_SLOPE = 0.2
BN_EPS = 1e-5


def _vmem_spec():
    return pl.BlockSpec(memory_space=pltpu.MemorySpace.VMEM)


# --------------------------- in-kernel conv helper ---------------------------

def _conv3x3_s2(x, w_flat, bias, ho, wo):
    """3x3 / stride-2 / pad-1 conv as ONE im2col matmul.

    x:      (B, 2*ho, 2*wo, Cin) bf16, un-padded NHWC input.
    w_flat: (9*Cin, Cout) bf16, rows ordered (kh, kw, cin).
    bias:   (1, Cout) f32.
    Returns (B*ho*wo, Cout) f32, rows ordered (b, i, j).
    """
    b, _, _, cin = x.shape
    dt = x.dtype

    # ---- W de-interleave: original even / odd columns (width-1 slices) -----
    x_ec = jnp.concatenate(
        [x[:, :, 2 * j:2 * j + 1, :] for j in range(wo)], axis=2)
    x_oc = jnp.concatenate(
        [x[:, :, 2 * j + 1:2 * j + 2, :] for j in range(wo)], axis=2)

    # ---- H de-interleave, hoisted out of the tap loop -----------------------
    x_ec = x_ec.reshape(b, ho, 2, wo, cin)
    x_oc = x_oc.reshape(b, ho, 2, wo, cin)
    er_ec, or_ec = x_ec[:, :, 0], x_ec[:, :, 1]   # even/odd orig rows, even cols
    er_oc, or_oc = x_oc[:, :, 0], x_oc[:, :, 1]   # even/odd orig rows, odd cols

    # ---- zero-padding folded into the de-interleaved tensors ---------------
    #   padded even rows = [zero row] + original odd rows
    #   padded even cols = [zero col] + original odd cols
    #   padded odd rows/cols touched by the conv = original even rows/cols
    zc = jnp.zeros((b, ho, 1, cin), dt)
    zr = jnp.zeros((b, 1, wo + 1, cin), dt)
    ee = jnp.concatenate(
        [zr, jnp.concatenate([zc, or_oc], axis=2)], axis=1)   # (b,ho+1,wo+1,cin)
    eo = jnp.concatenate(
        [jnp.zeros((b, 1, wo, cin), dt), or_ec], axis=1)      # (b,ho+1,wo,  cin)
    oe = jnp.concatenate([zc, er_oc], axis=2)                 # (b,ho,  wo+1,cin)
    oo = er_ec                                                # (b,ho,  wo,  cin)

    # ---- im2col: one lane-axis concat of the 9 taps, then ONE MXU matmul ---
    taps = [
        ee[:, 0:ho, 0:wo, :],          # (kh=0, kw=0)
        eo[:, 0:ho, :, :],             # (0, 1)
        ee[:, 0:ho, 1:wo + 1, :],      # (0, 2)
        oe[:, :, 0:wo, :],             # (1, 0)
        oo,                            # (1, 1)
        oe[:, :, 1:wo + 1, :],         # (1, 2)
        ee[:, 1:ho + 1, 0:wo, :],      # (2, 0)
        eo[:, 1:ho + 1, :, :],         # (2, 1)
        ee[:, 1:ho + 1, 1:wo + 1, :],  # (2, 2)
    ]
    patches = jnp.concatenate(taps, axis=-1).reshape(b * ho * wo, 9 * cin)
    return jnp.dot(patches, w_flat, preferred_element_type=jnp.float32) + bias


# ------------------------------ fused kernel --------------------------------

def _qrator_fused_kernel(x_ref, w0_ref, b0_ref, w1_ref, b1_ref,
                         g1_ref, be1_ref, wl_ref, bl_ref, o_ref):
    b, h, w, _ = x_ref.shape
    h0s, w0s = h // 2, w // 2          # conv_0 output spatial
    h1s, w1s = h0s // 2, w0s // 2      # conv_1 output spatial
    c1 = w0_ref.shape[-1]
    c2 = w1_ref.shape[-1]

    # ---- conv_0 -> Identity -> LeakyReLU -----------------------------------
    y0 = _conv3x3_s2(x_ref[...].astype(jnp.bfloat16),
                     w0_ref[...], b0_ref[...], h0s, w0s)        # (B*h0*w0, c1)
    a0 = jnp.where(y0 > 0, y0, LRELU_SLOPE * y0)

    # ---- conv_1 -> BatchNorm2d (train-mode batch stats) -> LeakyReLU -------
    x1 = a0.reshape(b, h0s, w0s, c1).astype(jnp.bfloat16)
    y1 = _conv3x3_s2(x1, w1_ref[...], b1_ref[...], h1s, w1s)    # (B*h1*w1, c2)

    # One-pass statistics (sum + sum-of-squares) over (N, H, W) == rows;
    # biased variance, matching PyTorch train-mode normalization.
    # TODO(synk): nn.BatchNorm2d's running_mean/running_var update side effect
    # is not reproduced (forward output only).
    m = b * h1s * w1s
    s1 = jnp.sum(y1, axis=0, keepdims=True)
    s2 = jnp.sum(y1 * y1, axis=0, keepdims=True)
    mu = s1 * (1.0 / m)
    var = jnp.maximum(s2 * (1.0 / m) - mu * mu, 0.0)
    y1 = (y1 - mu) * jax.lax.rsqrt(var + BN_EPS) * g1_ref[...] + be1_ref[...]
    a1 = jnp.where(y1 > 0, y1, LRELU_SLOPE * y1)

    # ---- final Linear on the (h, w, c)-ordered flatten ----------------------
    # wl rows are stored pre-permuted to (h, w, c) order, so the NHWC
    # activation is consumed directly (no transpose).  The flatten is a
    # lane-axis concat of the tiny per-position slabs.
    a1sp = a1.reshape(b, h1s, w1s, c2)
    flat = jnp.concatenate(
        [a1sp[:, i, j, :] for i in range(h1s) for j in range(w1s)], axis=-1)
    o_ref[...] = jnp.dot(flat, wl_ref[...],
                         preferred_element_type=jnp.float32) + bl_ref[...]


# ------------------------------- JAX wrapper --------------------------------

@jax.jit
def qrator_forward(params, x_nchw):
    # TODO(synk): the NCHW->NHWC relayout stays a (jit-fused) XLA op; a
    # general 4-D transpose that moves a major dim onto the lane axis does not
    # lower reliably inside Mosaic, so it is not folded into the kernel.
    x = jnp.transpose(x_nchw, (0, 2, 3, 1)).astype(jnp.float32)
    batch = x.shape[0]
    n_disc = params["wl"].shape[1]
    return pl.pallas_call(
        _qrator_fused_kernel,
        out_shape=jax.ShapeDtypeStruct((batch, n_disc), jnp.float32),
        in_specs=[_vmem_spec()] * 9,
        out_specs=_vmem_spec(),
    )(x, params["w0"], params["b0"], params["w1"], params["b1"],
      params["gamma1"], params["beta1"], params["wl"], params["bl"])


def init_params(key, img_size=16, n_qf=8, n_c=3, n_disc=8):
    """Parameters for the levels=2 Qrator (conv weights as flattened bf16 im2col)."""
    init_size = img_size // 4
    ks = jax.random.split(key, 3)
    params = {}
    c_in = n_c
    for ind in range(2):
        c_out = n_qf * 2 ** ind
        w = 0.02 * jax.random.normal(ks[ind], (9, c_in, c_out), jnp.float32)
        # Pre-flattened im2col weight: rows ordered (kh, kw, cin).
        params[f"w{ind}"] = w.reshape(9 * c_in, c_out).astype(jnp.bfloat16)
        params[f"b{ind}"] = jnp.zeros((1, c_out), jnp.float32)
        if ind != 0:
            params[f"gamma{ind}"] = jnp.ones((1, c_out), jnp.float32)
            params[f"beta{ind}"] = jnp.zeros((1, c_out), jnp.float32)
        c_in = c_out
    flat = c_in * init_size * init_size
    # Linear weight rows stored in (h, w, c) order -- a fixed permutation of
    # PyTorch's (c, h, w) flatten -- so no runtime transpose is required.
    params["wl"] = 0.02 * jax.random.normal(ks[2], (flat, n_disc), jnp.float32)
    params["bl"] = jnp.zeros((1, n_disc), jnp.float32)
    return params


# Pure-JAX (XLA, f32) reference for numerical sanity of the Pallas path.
def qrator_reference(params, x_nchw):
    h = jnp.transpose(x_nchw, (0, 2, 3, 1)).astype(jnp.float32)
    for ind in range(2):
        w_flat = params[f"w{ind}"].astype(jnp.float32)
        cout = w_flat.shape[1]
        cin = w_flat.shape[0] // 9
        y = jax.lax.conv_general_dilated(
            h, w_flat.reshape(3, 3, cin, cout), window_strides=(2, 2),
            padding=((1, 1), (1, 1)),
            dimension_numbers=("NHWC", "HWIO", "NHWC"))
        y = y + params[f"b{ind}"].reshape(1, 1, 1, -1)
        if ind != 0:
            mu = jnp.mean(y, axis=(0, 1, 2), keepdims=True)
            var = jnp.mean((y - mu) ** 2, axis=(0, 1, 2), keepdims=True)
            y = (y - mu) / jnp.sqrt(var + BN_EPS)
            y = (y * params[f"gamma{ind}"].reshape(1, 1, 1, -1)
                 + params[f"beta{ind}"].reshape(1, 1, 1, -1))
        h = jnp.where(y > 0, y, LRELU_SLOPE * y)
    batch = h.shape[0]
    flat = h.reshape(batch, -1)        # (h, w, c) order -- matches wl rows
    return flat @ params["wl"] + params["bl"]


if __name__ == "__main__":
    key = jax.random.PRNGKey(0)
    kx, kp = jax.random.split(key)

    B, n_c, img_size, n_qf, n_disc = 2, 3, 16, 8, 8
    x = jax.random.normal(kx, (B, n_c, img_size, img_size), jnp.float32)
    params = init_params(kp, img_size=img_size, n_qf=n_qf, n_c=n_c,
                         n_disc=n_disc)

    out = jax.block_until_ready(qrator_forward(params, x))
    assert out.shape == (B, n_disc)

    ref = qrator_reference(params, x)
    # bf16 MXU operands (activations + weights) vs f32 reference.
    assert jnp.allclose(out, ref, rtol=2e-2, atol=2e-2), (out, ref)

    print("KERNEL_OK")
</pallas_src>

<mosaic_0001>
module attributes {stable_mosaic.version = 11 : i64} {
  func.func @_qrator_fused_kernel(%arg0: memref<2x16x16x3xf32, #tpu.memory_space<vmem>>, %arg1: memref<27x8xbf16, #tpu.memory_space<vmem>>, %arg2: memref<1x8xf32, #tpu.memory_space<vmem>>, %arg3: memref<72x16xbf16, #tpu.memory_space<vmem>>, %arg4: memref<1x16xf32, #tpu.memory_space<vmem>>, %arg5: memref<1x16xf32, #tpu.memory_space<vmem>>, %arg6: memref<1x16xf32, #tpu.memory_space<vmem>>, %arg7: memref<256x8xf32, #tpu.memory_space<vmem>>, %arg8: memref<1x8xf32, #tpu.memory_space<vmem>>, %arg9: memref<2x8xf32, #tpu.memory_space<vmem>>) attributes {dimension_semantics = [], scalar_prefetch = 0 : i64, scratch_operands = 0 : i64, tpu.core_type = #tpu.core_type<tc>} {
    %c0 = arith.constant 0 : index
    %c0_0 = arith.constant 0 : index
    %c0_1 = arith.constant 0 : index
    %c0_2 = arith.constant 0 : index
    %0 = vector.load %arg0[%c0, %c0_0, %c0_1, %c0_2] : memref<2x16x16x3xf32, #tpu.memory_space<vmem>>, vector<2x16x16x3xf32>
    %1 = arith.truncf %0 : vector<2x16x16x3xf32> to vector<2x16x16x3xbf16>
    %c0_3 = arith.constant 0 : index
    %c0_4 = arith.constant 0 : index
    %2 = vector.load %arg1[%c0_3, %c0_4] : memref<27x8xbf16, #tpu.memory_space<vmem>>, vector<27x8xbf16>
    %c0_5 = arith.constant 0 : index
    %c0_6 = arith.constant 0 : index
    %3 = vector.load %arg2[%c0_5, %c0_6] : memref<1x8xf32, #tpu.memory_space<vmem>>, vector<1x8xf32>
    %4 = vector.extract_strided_slice %1 {offsets = [0, 0, 0, 0], sizes = [2, 16, 1, 3], strides = [1, 1, 1, 1]} : vector<2x16x16x3xbf16> to vector<2x16x1x3xbf16>
    %5 = vector.extract_strided_slice %1 {offsets = [0, 0, 2, 0], sizes = [2, 16, 1, 3], strides = [1, 1, 1, 1]} : vector<2x16x16x3xbf16> to vector<2x16x1x3xbf16>
    %6 = vector.extract_strided_slice %1 {offsets = [0, 0, 4, 0], sizes = [2, 16, 1, 3], strides = [1, 1, 1, 1]} : vector<2x16x16x3xbf16> to vector<2x16x1x3xbf16>
    %7 = vector.extract_strided_slice %1 {offsets = [0, 0, 6, 0], sizes = [2, 16, 1, 3], strides = [1, 1, 1, 1]} : vector<2x16x16x3xbf16> to vector<2x16x1x3xbf16>
    %8 = vector.extract_strided_slice %1 {offsets = [0, 0, 8, 0], sizes = [2, 16, 1, 3], strides = [1, 1, 1, 1]} : vector<2x16x16x3xbf16> to vector<2x16x1x3xbf16>
    %9 = vector.extract_strided_slice %1 {offsets = [0, 0, 10, 0], sizes = [2, 16, 1, 3], strides = [1, 1, 1, 1]} : vector<2x16x16x3xbf16> to vector<2x16x1x3xbf16>
    %10 = vector.extract_strided_slice %1 {offsets = [0, 0, 12, 0], sizes = [2, 16, 1, 3], strides = [1, 1, 1, 1]} : vector<2x16x16x3xbf16> to vector<2x16x1x3xbf16>
    %11 = vector.extract_strided_slice %1 {offsets = [0, 0, 14, 0], sizes = [2, 16, 1, 3], strides = [1, 1, 1, 1]} : vector<2x16x16x3xbf16> to vector<2x16x1x3xbf16>
    %12 = tpu.concatenate %4, %5, %6, %7, %8, %9, %10, %11 in 2 : vector<2x16x1x3xbf16>, vector<2x16x1x3xbf16>, vector<2x16x1x3xbf16>, vector<2x16x1x3xbf16>, vector<2x16x1x3xbf16>, vector<2x16x1x3xbf16>, vector<2x16x1x3xbf16>, vector<2x16x1x3xbf16> -> vector<2x16x8x3xbf16>
    %13 = vector.extract_strided_slice %1 {offsets = [0, 0, 1, 0], sizes = [2, 16, 1, 3], strides = [1, 1, 1, 1]} : vector<2x16x16x3xbf16> to vector<2x16x1x3xbf16>
    %14 = vector.extract_strided_slice %1 {offsets = [0, 0, 3, 0], sizes = [2, 16, 1, 3], strides = [1, 1, 1, 1]} : vector<2x16x16x3xbf16> to vector<2x16x1x3xbf16>
    %15 = vector.extract_strided_slice %1 {offsets = [0, 0, 5, 0], sizes = [2, 16, 1, 3], strides = [1, 1, 1, 1]} : vector<2x16x16x3xbf16> to vector<2x16x1x3xbf16>
    %16 = vector.extract_strided_slice %1 {offsets = [0, 0, 7, 0], sizes = [2, 16, 1, 3], strides = [1, 1, 1, 1]} : vector<2x16x16x3xbf16> to vector<2x16x1x3xbf16>
    %17 = vector.extract_strided_slice %1 {offsets = [0, 0, 9, 0], sizes = [2, 16, 1, 3], strides = [1, 1, 1, 1]} : vector<2x16x16x3xbf16> to vector<2x16x1x3xbf16>
    %18 = vector.extract_strided_slice %1 {offsets = [0, 0, 11, 0], sizes = [2, 16, 1, 3], strides = [1, 1, 1, 1]} : vector<2x16x16x3xbf16> to vector<2x16x1x3xbf16>
    %19 = vector.extract_strided_slice %1 {offsets = [0, 0, 13, 0], sizes = [2, 16, 1, 3], strides = [1, 1, 1, 1]} : vector<2x16x16x3xbf16> to vector<2x16x1x3xbf16>
    %20 = vector.extract_strided_slice %1 {offsets = [0, 0, 15, 0], sizes = [2, 16, 1, 3], strides = [1, 1, 1, 1]} : vector<2x16x16x3xbf16> to vector<2x16x1x3xbf16>
    %21 = tpu.concatenate %13, %14, %15, %16, %17, %18, %19, %20 in 2 : vector<2x16x1x3xbf16>, vector<2x16x1x3xbf16>, vector<2x16x1x3xbf16>, vector<2x16x1x3xbf16>, vector<2x16x1x3xbf16>, vector<2x16x1x3xbf16>, vector<2x16x1x3xbf16>, vector<2x16x1x3xbf16> -> vector<2x16x8x3xbf16>
    %22 = vector.shape_cast %12 : vector<2x16x8x3xbf16> to vector<2x8x2x8x3xbf16>
    %23 = vector.shape_cast %21 : vector<2x16x8x3xbf16> to vector<2x8x2x8x3xbf16>
    %24 = vector.extract_strided_slice %22 {offsets = [0, 0, 0, 0, 0], sizes = [2, 8, 1, 8, 3], strides = [1, 1, 1, 1, 1]} : vector<2x8x2x8x3xbf16> to vector<2x8x1x8x3xbf16>
    %25 = vector.shape_cast %24 : vector<2x8x1x8x3xbf16> to vector<2x8x8x3xbf16>
    %26 = vector.extract_strided_slice %22 {offsets = [0, 0, 1, 0, 0], sizes = [2, 8, 1, 8, 3], strides = [1, 1, 1, 1, 1]} : vector<2x8x2x8x3xbf16> to vector<2x8x1x8x3xbf16>
    %27 = vector.shape_cast %26 : vector<2x8x1x8x3xbf16> to vector<2x8x8x3xbf16>
    %28 = vector.extract_strided_slice %23 {offsets = [0, 0, 0, 0, 0], sizes = [2, 8, 1, 8, 3], strides = [1, 1, 1, 1, 1]} : vector<2x8x2x8x3xbf16> to vector<2x8x1x8x3xbf16>
    %29 = vector.shape_cast %28 : vector<2x8x1x8x3xbf16> to vector<2x8x8x3xbf16>
    %30 = vector.extract_strided_slice %23 {offsets = [0, 0, 1, 0, 0], sizes = [2, 8, 1, 8, 3], strides = [1, 1, 1, 1, 1]} : vector<2x8x2x8x3xbf16> to vector<2x8x1x8x3xbf16>
    %31 = vector.shape_cast %30 : vector<2x8x1x8x3xbf16> to vector<2x8x8x3xbf16>
    %cst = arith.constant 0.000000e+00 : bf16
    %32 = vector.broadcast %cst : bf16 to vector<2x8x1x3xbf16>
    %cst_7 = arith.constant 0.000000e+00 : bf16
    %33 = vector.broadcast %cst_7 : bf16 to vector<2x1x9x3xbf16>
    %34 = tpu.concatenate %32, %31 in 2 : vector<2x8x1x3xbf16>, vector<2x8x8x3xbf16> -> vector<2x8x9x3xbf16>
    %35 = tpu.concatenate %33, %34 in 1 : vector<2x1x9x3xbf16>, vector<2x8x9x3xbf16> -> vector<2x9x9x3xbf16>
    %cst_8 = arith.constant 0.000000e+00 : bf16
    %36 = vector.broadcast %cst_8 : bf16 to vector<2x1x8x3xbf16>
    %37 = tpu.concatenate %36, %27 in 1 : vector<2x1x8x3xbf16>, vector<2x8x8x3xbf16> -> vector<2x9x8x3xbf16>
    %38 = tpu.concatenate %32, %29 in 2 : vector<2x8x1x3xbf16>, vector<2x8x8x3xbf16> -> vector<2x8x9x3xbf16>
    %39 = vector.extract_strided_slice %35 {offsets = [0, 0, 0, 0], sizes = [2, 8, 8, 3], strides = [1, 1, 1, 1]} : vector<2x9x9x3xbf16> to vector<2x8x8x3xbf16>
    %40 = vector.extract_strided_slice %37 {offsets = [0, 0, 0, 0], sizes = [2, 8, 8, 3], strides = [1, 1, 1, 1]} : vector<2x9x8x3xbf16> to vector<2x8x8x3xbf16>
    %41 = vector.extract_strided_slice %35 {offsets = [0, 0, 1, 0], sizes = [2, 8, 8, 3], strides = [1, 1, 1, 1]} : vector<2x9x9x3xbf16> to vector<2x8x8x3xbf16>
    %42 = vector.extract_strided_slice %38 {offsets = [0, 0, 0, 0], sizes = [2, 8, 8, 3], strides = [1, 1, 1, 1]} : vector<2x8x9x3xbf16> to vector<2x8x8x3xbf16>
    %43 = vector.extract_strided_slice %38 {offsets = [0, 0, 1, 0], sizes = [2, 8, 8, 3], strides = [1, 1, 1, 1]} : vector<2x8x9x3xbf16> to vector<2x8x8x3xbf16>
    %44 = vector.extract_strided_slice %35 {offsets = [0, 1, 0, 0], sizes = [2, 8, 8, 3], strides = [1, 1, 1, 1]} : vector<2x9x9x3xbf16> to vector<2x8x8x3xbf16>
    %45 = vector.extract_strided_slice %37 {offsets = [0, 1, 0, 0], sizes = [2, 8, 8, 3], strides = [1, 1, 1, 1]} : vector<2x9x8x3xbf16> to vector<2x8x8x3xbf16>
    %46 = vector.extract_strided_slice %35 {offsets = [0, 1, 1, 0], sizes = [2, 8, 8, 3], strides = [1, 1, 1, 1]} : vector<2x9x9x3xbf16> to vector<2x8x8x3xbf16>
    %47 = tpu.concatenate %39, %40, %41, %42, %25, %43, %44, %45, %46 in 3 : vector<2x8x8x3xbf16>, vector<2x8x8x3xbf16>, vector<2x8x8x3xbf16>, vector<2x8x8x3xbf16>, vector<2x8x8x3xbf16>, vector<2x8x8x3xbf16>, vector<2x8x8x3xbf16>, vector<2x8x8x3xbf16>, vector<2x8x8x3xbf16> -> vector<2x8x8x27xbf16>
    %48 = vector.shape_cast %47 : vector<2x8x8x27xbf16> to vector<128x27xbf16>
    %cst_9 = arith.constant dense<0.000000e+00> : vector<128x8xf32>
    %49 = tpu.matmul %48, %2, %cst_9 {dimension_numbers = #tpu.dot_dimension_numbers<[1], [0], [0], [1], [0, 0, 1, 1], [], []>} : vector<128x27xbf16>, vector<27x8xbf16>, vector<128x8xf32> -> vector<128x8xf32>
    %50 = vector.broadcast %3 : vector<1x8xf32> to vector<128x8xf32>
    %51 = arith.addf %49, %50 : vector<128x8xf32>
    %cst_10 = arith.constant 0.000000e+00 : f32
    %52 = vector.broadcast %cst_10 : f32 to vector<128x8xf32>
    %53 = arith.cmpf ogt, %51, %52 : vector<128x8xf32>
    %cst_11 = arith.constant 2.000000e-01 : f32
    %54 = vector.broadcast %cst_11 : f32 to vector<128x8xf32>
    %55 = arith.mulf %54, %51 : vector<128x8xf32>
    %56 = arith.select %53, %51, %55 : vector<128x8xi1>, vector<128x8xf32>
    %57 = vector.shape_cast %56 : vector<128x8xf32> to vector<2x8x8x8xf32>
    %58 = arith.truncf %57 : vector<2x8x8x8xf32> to vector<2x8x8x8xbf16>
    %c0_12 = arith.constant 0 : index
    %c0_13 = arith.constant 0 : index
    %59 = vector.load %arg3[%c0_12, %c0_13] : memref<72x16xbf16, #tpu.memory_space<vmem>>, vector<72x16xbf16>
    %c0_14 = arith.constant 0 : index
    %c0_15 = arith.constant 0 : index
    %60 = vector.load %arg4[%c0_14, %c0_15] : memref<1x16xf32, #tpu.memory_space<vmem>>, vector<1x16xf32>
    %61 = vector.extract_strided_slice %58 {offsets = [0, 0, 0, 0], sizes = [2, 8, 1, 8], strides = [1, 1, 1, 1]} : vector<2x8x8x8xbf16> to vector<2x8x1x8xbf16>
    %62 = vector.extract_strided_slice %58 {offsets = [0, 0, 2, 0], sizes = [2, 8, 1, 8], strides = [1, 1, 1, 1]} : vector<2x8x8x8xbf16> to vector<2x8x1x8xbf16>
    %63 = vector.extract_strided_slice %58 {offsets = [0, 0, 4, 0], sizes = [2, 8, 1, 8], strides = [1, 1, 1, 1]} : vector<2x8x8x8xbf16> to vector<2x8x1x8xbf16>
    %64 = vector.extract_strided_slice %58 {offsets = [0, 0, 6, 0], sizes = [2, 8, 1, 8], strides = [1, 1, 1, 1]} : vector<2x8x8x8xbf16> to vector<2x8x1x8xbf16>
    %65 = tpu.concatenate %61, %62, %63, %64 in 2 : vector<2x8x1x8xbf16>, vector<2x8x1x8xbf16>, vector<2x8x1x8xbf16>, vector<2x8x1x8xbf16> -> vector<2x8x4x8xbf16>
    %66 = vector.extract_strided_slice %58 {offsets = [0, 0, 1, 0], sizes = [2, 8, 1, 8], strides = [1, 1, 1, 1]} : vector<2x8x8x8xbf16> to vector<2x8x1x8xbf16>
    %67 = vector.extract_strided_slice %58 {offsets = [0, 0, 3, 0], sizes = [2, 8, 1, 8], strides = [1, 1, 1, 1]} : vector<2x8x8x8xbf16> to vector<2x8x1x8xbf16>
    %68 = vector.extract_strided_slice %58 {offsets = [0, 0, 5, 0], sizes = [2, 8, 1, 8], strides = [1, 1, 1, 1]} : vector<2x8x8x8xbf16> to vector<2x8x1x8xbf16>
    %69 = vector.extract_strided_slice %58 {offsets = [0, 0, 7, 0], sizes = [2, 8, 1, 8], strides = [1, 1, 1, 1]} : vector<2x8x8x8xbf16> to vector<2x8x1x8xbf16>
    %70 = tpu.concatenate %66, %67, %68, %69 in 2 : vector<2x8x1x8xbf16>, vector<2x8x1x8xbf16>, vector<2x8x1x8xbf16>, vector<2x8x1x8xbf16> -> vector<2x8x4x8xbf16>
    %71 = vector.shape_cast %65 : vector<2x8x4x8xbf16> to vector<2x4x2x4x8xbf16>
    %72 = vector.shape_cast %70 : vector<2x8x4x8xbf16> to vector<2x4x2x4x8xbf16>
    %73 = vector.extract_strided_slice %71 {offsets = [0, 0, 0, 0, 0], sizes = [2, 4, 1, 4, 8], strides = [1, 1, 1, 1, 1]} : vector<2x4x2x4x8xbf16> to vector<2x4x1x4x8xbf16>
    %74 = vector.shape_cast %73 : vector<2x4x1x4x8xbf16> to vector<2x4x4x8xbf16>
    %75 = vector.extract_strided_slice %71 {offsets = [0, 0, 1, 0, 0], sizes = [2, 4, 1, 4, 8], strides = [1, 1, 1, 1, 1]} : vector<2x4x2x4x8xbf16> to vector<2x4x1x4x8xbf16>
    %76 = vector.shape_cast %75 : vector<2x4x1x4x8xbf16> to vector<2x4x4x8xbf16>
    %77 = vector.extract_strided_slice %72 {offsets = [0, 0, 0, 0, 0], sizes = [2, 4, 1, 4, 8], strides = [1, 1, 1, 1, 1]} : vector<2x4x2x4x8xbf16> to vector<2x4x1x4x8xbf16>
    %78 = vector.shape_cast %77 : vector<2x4x1x4x8xbf16> to vector<2x4x4x8xbf16>
    %79 = vector.extract_strided_slice %72 {offsets = [0, 0, 1, 0, 0], sizes = [2, 4, 1, 4, 8], strides = [1, 1, 1, 1, 1]} : vector<2x4x2x4x8xbf16> to vector<2x4x1x4x8xbf16>
    %80 = vector.shape_cast %79 : vector<2x4x1x4x8xbf16> to vector<2x4x4x8xbf16>
    %cst_16 = arith.constant 0.000000e+00 : bf16
    %81 = vector.broadcast %cst_16 : bf16 to vector<2x4x1x8xbf16>
    %cst_17 = arith.constant 0.000000e+00 : bf16
    %82 = vector.broadcast %cst_17 : bf16 to vector<2x1x5x8xbf16>
    %83 = tpu.concatenate %81, %80 in 2 : vector<2x4x1x8xbf16>, vector<2x4x4x8xbf16> -> vector<2x4x5x8xbf16>
    %84 = tpu.concatenate %82, %83 in 1 : vector<2x1x5x8xbf16>, vector<2x4x5x8xbf16> -> vector<2x5x5x8xbf16>
    %cst_18 = arith.constant 0.000000e+00 : bf16
    %85 = vector.broadcast %cst_18 : bf16 to vector<2x1x4x8xbf16>
    %86 = tpu.concatenate %85, %76 in 1 : vector<2x1x4x8xbf16>, vector<2x4x4x8xbf16> -> vector<2x5x4x8xbf16>
    %87 = tpu.concatenate %81, %78 in 2 : vector<2x4x1x8xbf16>, vector<2x4x4x8xbf16> -> vector<2x4x5x8xbf16>
    %88 = vector.extract_strided_slice %84 {offsets = [0, 0, 0, 0], sizes = [2, 4, 4, 8], strides = [1, 1, 1, 1]} : vector<2x5x5x8xbf16> to vector<2x4x4x8xbf16>
    %89 = vector.extract_strided_slice %86 {offsets = [0, 0, 0, 0], sizes = [2, 4, 4, 8], strides = [1, 1, 1, 1]} : vector<2x5x4x8xbf16> to vector<2x4x4x8xbf16>
    %90 = vector.extract_strided_slice %84 {offsets = [0, 0, 1, 0], sizes = [2, 4, 4, 8], strides = [1, 1, 1, 1]} : vector<2x5x5x8xbf16> to vector<2x4x4x8xbf16>
    %91 = vector.extract_strided_slice %87 {offsets = [0, 0, 0, 0], sizes = [2, 4, 4, 8], strides = [1, 1, 1, 1]} : vector<2x4x5x8xbf16> to vector<2x4x4x8xbf16>
    %92 = vector.extract_strided_slice %87 {offsets = [0, 0, 1, 0], sizes = [2, 4, 4, 8], strides = [1, 1, 1, 1]} : vector<2x4x5x8xbf16> to vector<2x4x4x8xbf16>
    %93 = vector.extract_strided_slice %84 {offsets = [0, 1, 0, 0], sizes = [2, 4, 4, 8], strides = [1, 1, 1, 1]} : vector<2x5x5x8xbf16> to vector<2x4x4x8xbf16>
    %94 = vector.extract_strided_slice %86 {offsets = [0, 1, 0, 0], sizes = [2, 4, 4, 8], strides = [1, 1, 1, 1]} : vector<2x5x4x8xbf16> to vector<2x4x4x8xbf16>
    %95 = vector.extract_strided_slice %84 {offsets = [0, 1, 1, 0], sizes = [2, 4, 4, 8], strides = [1, 1, 1, 1]} : vector<2x5x5x8xbf16> to vector<2x4x4x8xbf16>
    %96 = tpu.concatenate %88, %89, %90, %91, %74, %92, %93, %94, %95 in 3 : vector<2x4x4x8xbf16>, vector<2x4x4x8xbf16>, vector<2x4x4x8xbf16>, vector<2x4x4x8xbf16>, vector<2x4x4x8xbf16>, vector<2x4x4x8xbf16>, vector<2x4x4x8xbf16>, vector<2x4x4x8xbf16>, vector<2x4x4x8xbf16> -> vector<2x4x4x72xbf16>
    %97 = vector.shape_cast %96 : vector<2x4x4x72xbf16> to vector<32x72xbf16>
    %cst_19 = arith.constant dense<0.000000e+00> : vector<32x16xf32>
    %98 = tpu.matmul %97, %59, %cst_19 {dimension_numbers = #tpu.dot_dimension_numbers<[1], [0], [0], [1], [0, 0, 1, 1], [], []>} : vector<32x72xbf16>, vector<72x16xbf16>, vector<32x16xf32> -> vector<32x16xf32>
    %99 = vector.broadcast %60 : vector<1x16xf32> to vector<32x16xf32>
    %100 = arith.addf %98, %99 : vector<32x16xf32>
    %cst_20 = arith.constant dense<0.000000e+00> : vector<16xf32>
    %101 = vector.multi_reduction <add>, %100, %cst_20 [0] : vector<32x16xf32> to vector<16xf32>
    %102 = vector.shape_cast %101 : vector<16xf32> to vector<1x16xf32>
    %103 = arith.mulf %100, %100 : vector<32x16xf32>
    %cst_21 = arith.constant dense<0.000000e+00> : vector<16xf32>
    %104 = vector.multi_reduction <add>, %103, %cst_21 [0] : vector<32x16xf32> to vector<16xf32>
    %105 = vector.shape_cast %104 : vector<16xf32> to vector<1x16xf32>
    %cst_22 = arith.constant 3.125000e-02 : f32
    %106 = vector.broadcast %cst_22 : f32 to vector<1x16xf32>
    %107 = arith.mulf %102, %106 : vector<1x16xf32>
    %cst_23 = arith.constant 3.125000e-02 : f32
    %108 = vector.broadcast %cst_23 : f32 to vector<1x16xf32>
    %109 = arith.mulf %105, %108 : vector<1x16xf32>
    %110 = arith.mulf %107, %107 : vector<1x16xf32>
    %111 = arith.subf %109, %110 : vector<1x16xf32>
    %cst_24 = arith.constant 0.000000e+00 : f32
    %112 = vector.broadcast %cst_24 : f32 to vector<1x16xf32>
    %113 = arith.maximumf %111, %112 : vector<1x16xf32>
    %114 = vector.broadcast %107 : vector<1x16xf32> to vector<32x16xf32>
    %115 = arith.subf %100, %114 : vector<32x16xf32>
    %cst_25 = arith.constant 9.99999974E-6 : f32
    %116 = vector.broadcast %cst_25 : f32 to vector<1x16xf32>
    %117 = arith.addf %113, %116 : vector<1x16xf32>
    %118 = math.rsqrt %117 : vector<1x16xf32>
    %119 = vector.broadcast %118 : vector<1x16xf32> to vector<32x16xf32>
    %120 = arith.mulf %115, %119 : vector<32x16xf32>
    %c0_26 = arith.constant 0 : index
    %c0_27 = arith.constant 0 : index
    %121 = vector.load %arg5[%c0_26, %c0_27] : memref<1x16xf32, #tpu.memory_space<vmem>>, vector<1x16xf32>
    %122 = vector.broadcast %121 : vector<1x16xf32> to vector<32x16xf32>
    %123 = arith.mulf %120, %122 : vector<32x16xf32>
    %c0_28 = arith.constant 0 : index
    %c0_29 = arith.constant 0 : index
    %124 = vector.load %arg6[%c0_28, %c0_29] : memref<1x16xf32, #tpu.memory_space<vmem>>, vector<1x16xf32>
    %125 = vector.broadcast %124 : vector<1x16xf32> to vector<32x16xf32>
    %126 = arith.addf %123, %125 : vector<32x16xf32>
    %cst_30 = arith.constant 0.000000e+00 : f32
    %127 = vector.broadcast %cst_30 : f32 to vector<32x16xf32>
    %128 = arith.cmpf ogt, %126, %127 : vector<32x16xf32>
    %cst_31 = arith.constant 2.000000e-01 : f32
    %129 = vector.broadcast %cst_31 : f32 to vector<32x16xf32>
    %130 = arith.mulf %129, %126 : vector<32x16xf32>
    %131 = arith.select %128, %126, %130 : vector<32x16xi1>, vector<32x16xf32>
    %132 = vector.shape_cast %131 : vector<32x16xf32> to vector<2x4x4x16xf32>
    %133 = vector.extract_strided_slice %132 {offsets = [0, 0, 0, 0], sizes = [2, 1, 1, 16], strides = [1, 1, 1, 1]} : vector<2x4x4x16xf32> to vector<2x1x1x16xf32>
    %134 = vector.shape_cast %133 : vector<2x1x1x16xf32> to vector<2x16xf32>
    %135 = vector.extract_strided_slice %132 {offsets = [0, 0, 1, 0], sizes = [2, 1, 1, 16], strides = [1, 1, 1, 1]} : vector<2x4x4x16xf32> to vector<2x1x1x16xf32>
    %136 = vector.shape_cast %135 : vector<2x1x1x16xf32> to vector<2x16xf32>
    %137 = vector.extract_strided_slice %132 {offsets = [0, 0, 2, 0], sizes = [2, 1, 1, 16], strides = [1, 1, 1, 1]} : vector<2x4x4x16xf32> to vector<2x1x1x16xf32>
    %138 = vector.shape_cast %137 : vector<2x1x1x16xf32> to vector<2x16xf32>
    %139 = vector.extract_strided_slice %132 {offsets = [0, 0, 3, 0], sizes = [2, 1, 1, 16], strides = [1, 1, 1, 1]} : vector<2x4x4x16xf32> to vector<2x1x1x16xf32>
    %140 = vector.shape_cast %139 : vector<2x1x1x16xf32> to vector<2x16xf32>
    %141 = vector.extract_strided_slice %132 {offsets = [0, 1, 0, 0], sizes = [2, 1, 1, 16], strides = [1, 1, 1, 1]} : vector<2x4x4x16xf32> to vector<2x1x1x16xf32>
    %142 = vector.shape_cast %141 : vector<2x1x1x16xf32> to vector<2x16xf32>
    %143 = vector.extract_strided_slice %132 {offsets = [0, 1, 1, 0], sizes = [2, 1, 1, 16], strides = [1, 1, 1, 1]} : vector<2x4x4x16xf32> to vector<2x1x1x16xf32>
    %144 = vector.shape_cast %143 : vector<2x1x1x16xf32> to vector<2x16xf32>
    %145 = vector.extract_strided_slice %132 {offsets = [0, 1, 2, 0], sizes = [2, 1, 1, 16], strides = [1, 1, 1, 1]} : vector<2x4x4x16xf32> to vector<2x1x1x16xf32>
    %146 = vector.shape_cast %145 : vector<2x1x1x16xf32> to vector<2x16xf32>
    %147 = vector.extract_strided_slice %132 {offsets = [0, 1, 3, 0], sizes = [2, 1, 1, 16], strides = [1, 1, 1, 1]} : vector<2x4x4x16xf32> to vector<2x1x1x16xf32>
    %148 = vector.shape_cast %147 : vector<2x1x1x16xf32> to vector<2x16xf32>
    %149 = vector.extract_strided_slice %132 {offsets = [0, 2, 0, 0], sizes = [2, 1, 1, 16], strides = [1, 1, 1, 1]} : vector<2x4x4x16xf32> to vector<2x1x1x16xf32>
    %150 = vector.shape_cast %149 : vector<2x1x1x16xf32> to vector<2x16xf32>
    %151 = vector.extract_strided_slice %132 {offsets = [0, 2, 1, 0], sizes = [2, 1, 1, 16], strides = [1, 1, 1, 1]} : vector<2x4x4x16xf32> to vector<2x1x1x16xf32>
    %152 = vector.shape_cast %151 : vector<2x1x1x16xf32> to vector<2x16xf32>
    %153 = vector.extract_strided_slice %132 {offsets = [0, 2, 2, 0], sizes = [2, 1, 1, 16], strides = [1, 1, 1, 1]} : vector<2x4x4x16xf32> to vector<2x1x1x16xf32>
    %154 = vector.shape_cast %153 : vector<2x1x1x16xf32> to vector<2x16xf32>
    %155 = vector.extract_strided_slice %132 {offsets = [0, 2, 3, 0], sizes = [2, 1, 1, 16], strides = [1, 1, 1, 1]} : vector<2x4x4x16xf32> to vector<2x1x1x16xf32>
    %156 = vector.shape_cast %155 : vector<2x1x1x16xf32> to vector<2x16xf32>
    %157 = vector.extract_strided_slice %132 {offsets = [0, 3, 0, 0], sizes = [2, 1, 1, 16], strides = [1, 1, 1, 1]} : vector<2x4x4x16xf32> to vector<2x1x1x16xf32>
    %158 = vector.shape_cast %157 : vector<2x1x1x16xf32> to vector<2x16xf32>
    %159 = vector.extract_strided_slice %132 {offsets = [0, 3, 1, 0], sizes = [2, 1, 1, 16], strides = [1, 1, 1, 1]} : vector<2x4x4x16xf32> to vector<2x1x1x16xf32>
    %160 = vector.shape_cast %159 : vector<2x1x1x16xf32> to vector<2x16xf32>
    %161 = vector.extract_strided_slice %132 {offsets = [0, 3, 2, 0], sizes = [2, 1, 1, 16], strides = [1, 1, 1, 1]} : vector<2x4x4x16xf32> to vector<2x1x1x16xf32>
    %162 = vector.shape_cast %161 : vector<2x1x1x16xf32> to vector<2x16xf32>
    %163 = vector.extract_strided_slice %132 {offsets = [0, 3, 3, 0], sizes = [2, 1, 1, 16], strides = [1, 1, 1, 1]} : vector<2x4x4x16xf32> to vector<2x1x1x16xf32>
    %164 = vector.shape_cast %163 : vector<2x1x1x16xf32> to vector<2x16xf32>
    %165 = tpu.concatenate %134, %136, %138, %140, %142, %144, %146, %148, %150, %152, %154, %156, %158, %160, %162, %164 in 1 : vector<2x16xf32>, vector<2x16xf32>, vector<2x16xf32>, vector<2x16xf32>, vector<2x16xf32>, vector<2x16xf32>, vector<2x16xf32>, vector<2x16xf32>, vector<2x16xf32>, vector<2x16xf32>, vector<2x16xf32>, vector<2x16xf32>, vector<2x16xf32>, vector<2x16xf32>, vector<2x16xf32>, vector<2x16xf32> -> vector<2x256xf32>
    %c0_32 = arith.constant 0 : index
    %c0_33 = arith.constant 0 : index
    %166 = vector.load %arg7[%c0_32, %c0_33] : memref<256x8xf32, #tpu.memory_space<vmem>>, vector<256x8xf32>
    %cst_34 = arith.constant dense<0.000000e+00> : vector<2x8xf32>
    %167 = tpu.matmul %165, %166, %cst_34 {dimension_numbers = #tpu.dot_dimension_numbers<[1], [0], [0], [1], [0, 0, 1, 1], [], []>} : vector<2x256xf32>, vector<256x8xf32>, vector<2x8xf32> -> vector<2x8xf32>
    %c0_35 = arith.constant 0 : index
    %c0_36 = arith.constant 0 : index
    %168 = vector.load %arg8[%c0_35, %c0_36] : memref<1x8xf32, #tpu.memory_space<vmem>>, vector<1x8xf32>
    %169 = vector.broadcast %168 : vector<1x8xf32> to vector<2x8xf32>
    %170 = arith.addf %167, %169 : vector<2x8xf32>
    %c0_37 = arith.constant 0 : index
    %c0_38 = arith.constant 0 : index
    %171 = vector.load %arg9[%c0_37, %c0_38] : memref<2x8xf32, #tpu.memory_space<vmem>>, vector<2x8xf32>
    tpu.vector_store %arg9[%c0_37, %c0_38], %170 {strides = array<i32>} : memref<2x8xf32, #tpu.memory_space<vmem>>, vector<2x8xf32>,
    return
  }
}

</mosaic_0001>

<llo_original>
// kernel: qrator_forward.1
$region0: #{qrator_forward.1}
  #allocation0 [shape = 'u32[]', space=smem, size = 0x4, offset = 0x4, fixed_abs, tag = 'smem constant byte address 0x4 - core index']
  #allocation1 [shape = 'u32[72,128]{1,0:T(1,128)}', space=vmem, size = 0x9000, scoped, tag = 'internal scratch']
  %s0 = inlined_call_operand.vmem [shape: f32[2,16,16,3], index: 0, kind: input, shape index: {}]
  %s1 = inlined_call_operand.vmem [shape: bf16[27,8], index: 1, kind: input, shape index: {}]
  %s2 = inlined_call_operand.vmem [shape: f32[1,8], index: 2, kind: input, shape index: {}]
  %s3 = inlined_call_operand.vmem [shape: bf16[72,16], index: 3, kind: input, shape index: {}]
  %s4 = inlined_call_operand.vmem [shape: f32[1,16], index: 4, kind: input, shape index: {}]
  %s5 = inlined_call_operand.vmem [shape: f32[1,16], index: 5, kind: input, shape index: {}]
  %s6 = inlined_call_operand.vmem [shape: f32[1,16], index: 6, kind: input, shape index: {}]
  %s7 = inlined_call_operand.vmem [shape: f32[256,8], index: 7, kind: input, shape index: {}]
  %s8 = inlined_call_operand.vmem [shape: f32[1,8], index: 8, kind: input, shape index: {}]
  %s9 = inlined_call_operand.hbm [shape: f32[2,8], index: 9, kind: output, shape index: {}]
  %s10 = sld [smem:[#allocation0]]
  $region46: #{qrator_forward.1} parent=0
    _
  %s12 = ssub.s32 1, %s10
  %s13 = scalar_select 0, %s12, %s10
  $region1: #{qrator_forward.1} parent=0
    #allocation2 [shape = 'u8[1024]{0}', space=vmem, size = 0x400, scoped, tag = 'output window, operand 0, single buffered']
    #allocation3 [shape = 's32[1]{0}', space=sflag, size = 0x4, scoped, tag = 'scoped memory for qrator_forward.1']
    %14 = vsyncpa [#allocation3], 0
    // Predicated region
    $region2: #{qrator_forward.1} parent=1 // pred_check
      _
    $region3: #{qrator_forward.1} parent=1 // pred_check_branch
      %16 = sbr.rel (0) target = $region5
    $region4: #{qrator_forward.1} parent=1 // pred_region
      _
    $region5: #{qrator_forward.1} parent=1 // pred_fallthru
      _
    // Predicated region
    $region6: #{qrator_forward.1} parent=1 // pred_check
      _
    $region7: #{qrator_forward.1} parent=1 // pred_check_branch
      %18 = sbr.rel (0) target = $region9
    $region8: #{qrator_forward.1} parent=1 // pred_region
      _
    $region9: #{qrator_forward.1} parent=1 // pred_fallthru
      _
    // Predicated region
    $region10: #{qrator_forward.1} parent=1 // pred_check
      _
    $region11: #{qrator_forward.1} parent=1 // pred_check_branch
      %20 = sbr.rel (0) target = $region13
    $region12: #{qrator_forward.1} parent=1 // pred_region
      _
    $region13: #{qrator_forward.1} parent=1 // pred_fallthru
      _
    // Predicated region
    $region14: #{qrator_forward.1} parent=1 // pred_check
      _
    $region15: #{qrator_forward.1} parent=1 // pred_check_branch
      %22 = sbr.rel (0) target = $region17
    $region16: #{qrator_forward.1} parent=1 // pred_region
      _
    $region17: #{qrator_forward.1} parent=1 // pred_fallthru
      _
    // Predicated region
    $region18: #{qrator_forward.1} parent=1 // pred_check
      _
    $region19: #{qrator_forward.1} parent=1 // pred_check_branch
      %24 = sbr.rel (0) target = $region21
    $region20: #{qrator_forward.1} parent=1 // pred_region
      _
    $region21: #{qrator_forward.1} parent=1 // pred_fallthru
      _
    // Predicated region
    $region22: #{qrator_forward.1} parent=1 // pred_check
      _
    $region23: #{qrator_forward.1} parent=1 // pred_check_branch
      %26 = sbr.rel (0) target = $region25
    $region24: #{qrator_forward.1} parent=1 // pred_region
      _
    $region25: #{qrator_forward.1} parent=1 // pred_fallthru
      _
    // Predicated region
    $region26: #{qrator_forward.1} parent=1 // pred_check
      _
    $region27: #{qrator_forward.1} parent=1 // pred_check_branch
      %28 = sbr.rel (0) target = $region29
    $region28: #{qrator_forward.1} parent=1 // pred_region
      _
    $region29: #{qrator_forward.1} parent=1 // pred_fallthru
      _
    // Predicated region
    $region30: #{qrator_forward.1} parent=1 // pred_check
      _
    $region31: #{qrator_forward.1} parent=1 // pred_check_branch
      %30 = sbr.rel (0) target = $region33
    $region32: #{qrator_forward.1} parent=1 // pred_region
      _
    $region33: #{qrator_forward.1} parent=1 // pred_fallthru
      _
    // Predicated region
    $region34: #{qrator_forward.1} parent=1 // pred_check
      _
    $region35: #{qrator_forward.1} parent=1 // pred_check_branch
      %32 = sbr.rel (0) target = $region37
    $region36: #{qrator_forward.1} parent=1 // pred_region
      _
    $region37: #{qrator_forward.1} parent=1 // pred_fallthru
      _
    %v34 = vld [vmem:[%s0] sm:$0xff]
    %v35 = vld [vmem:[%s0 + $0x8] sm:$0xff]
    %v36 = vld [vmem:[%s0 + $0x10] sm:$0xff]
    %v37 = vld [vmem:[%s0 + $0x18] sm:$0xff]
    %v38 = vld [vmem:[%s0 + $0x20] sm:$0xff]
    %v39 = vld [vmem:[%s0 + $0x28] sm:$0xff]
    %v40 = vld [vmem:[%s0 + $0x30] sm:$0xff]
    %v41 = vld [vmem:[%s0 + $0x38] sm:$0xff]
    %v42 = vld [vmem:[%s0 + $0x40] sm:$0xff]
    %v43 = vld [vmem:[%s0 + $0x48] sm:$0xff]
    %v44 = vld [vmem:[%s0 + $0x50] sm:$0xff]
    %v45 = vld [vmem:[%s0 + $0x58] sm:$0xff]
    %v46 = vld [vmem:[%s0 + $0x60] sm:$0xff]
    %v47 = vld [vmem:[%s0 + $0x68] sm:$0xff]
    %v48 = vld [vmem:[%s0 + $0x70] sm:$0xff]
    %v49 = vld [vmem:[%s0 + $0x78] sm:$0xff]
    %v50 = vld [vmem:[%s0 + $0x80] sm:$0xff]
    %v51 = vld [vmem:[%s0 + $0x88] sm:$0xff]
    %v52 = vld [vmem:[%s0 + $0x90] sm:$0xff]
    %v53 = vld [vmem:[%s0 + $0x98] sm:$0xff]
    %v54 = vld [vmem:[%s0 + $0xa0] sm:$0xff]
    %v55 = vld [vmem:[%s0 + $0xa8] sm:$0xff]
    %v56 = vld [vmem:[%s0 + $0xb0] sm:$0xff]
    %v57 = vld [vmem:[%s0 + $0xb8] sm:$0xff]
    %v58 = vld [vmem:[%s0 + $0xc0] sm:$0xff]
    %v59 = vld [vmem:[%s0 + $0xc8] sm:$0xff]
    %v60 = vld [vmem:[%s0 + $0xd0] sm:$0xff]
    %v61 = vld [vmem:[%s0 + $0xd8] sm:$0xff]
    %v62 = vld [vmem:[%s0 + $0xe0] sm:$0xff]
    %v63 = vld [vmem:[%s0 + $0xe8] sm:$0xff]
    %v64 = vld [vmem:[%s0 + $0xf0] sm:$0xff]
    %v65 = vld [vmem:[%s0 + $0xf8] sm:$0xff]
    %v66 = vld [vmem:[%s0 + $0x100] sm:$0xff]
    %v67 = vld [vmem:[%s0 + $0x108] sm:$0xff]
    %v68 = vld [vmem:[%s0 + $0x110] sm:$0xff]
    %v69 = vld [vmem:[%s0 + $0x118] sm:$0xff]
    %v70 = vld [vmem:[%s0 + $0x120] sm:$0xff]
    %v71 = vld [vmem:[%s0 + $0x128] sm:$0xff]
    %v72 = vld [vmem:[%s0 + $0x130] sm:$0xff]
    %v73 = vld [vmem:[%s0 + $0x138] sm:$0xff]
    %v74 = vld [vmem:[%s0 + $0x140] sm:$0xff]
    %v75 = vld [vmem:[%s0 + $0x148] sm:$0xff]
    %v76 = vld [vmem:[%s0 + $0x150] sm:$0xff]
    %v77 = vld [vmem:[%s0 + $0x158] sm:$0xff]
    %v78 = vld [vmem:[%s0 + $0x160] sm:$0xff]
    %v79 = vld [vmem:[%s0 + $0x168] sm:$0xff]
    %v80 = vld [vmem:[%s0 + $0x170] sm:$0xff]
    %v81 = vld [vmem:[%s0 + $0x178] sm:$0xff]
    %v82 = vld [vmem:[%s0 + $0x180] sm:$0xff]
    %v83 = vld [vmem:[%s0 + $0x188] sm:$0xff]
    %v84 = vld [vmem:[%s0 + $0x190] sm:$0xff]
    %v85 = vld [vmem:[%s0 + $0x198] sm:$0xff]
    %v86 = vld [vmem:[%s0 + $0x1a0] sm:$0xff]
    %v87 = vld [vmem:[%s0 + $0x1a8] sm:$0xff]
    %v88 = vld [vmem:[%s0 + $0x1b0] sm:$0xff]
    %v89 = vld [vmem:[%s0 + $0x1b8] sm:$0xff]
    %v90 = vld [vmem:[%s0 + $0x1c0] sm:$0xff]
    %v91 = vld [vmem:[%s0 + $0x1c8] sm:$0xff]
    %v92 = vld [vmem:[%s0 + $0x1d0] sm:$0xff]
    %v93 = vld [vmem:[%s0 + $0x1d8] sm:$0xff]
    %v94 = vld [vmem:[%s0 + $0x1e0] sm:$0xff]
    %v95 = vld [vmem:[%s0 + $0x1e8] sm:$0xff]
    %v96 = vld [vmem:[%s0 + $0x1f0] sm:$0xff]
    %v97 = vld [vmem:[%s0 + $0x1f8] sm:$0xff]
    %v98 = vpack.c.bf16 %v34, %v34
    %v99 = vpack.c.bf16 %v35, %v35
    %v100 = vpack.c.bf16 %v36, %v36
    %v101 = vpack.c.bf16 %v37, %v37
    %v102 = vpack.c.bf16 %v38, %v38
    %v103 = vpack.c.bf16 %v39, %v39
    %v104 = vpack.c.bf16 %v40, %v40
    %v105 = vpack.c.bf16 %v41, %v41
    %v106 = vpack.c.bf16 %v42, %v42
    %v107 = vpack.c.bf16 %v43, %v43
    %v108 = vpack.c.bf16 %v44, %v44
    %v109 = vpack.c.bf16 %v45, %v45
    %v110 = vpack.c.bf16 %v46, %v46
    %v111 = vpack.c.bf16 %v47, %v47
    %v112 = vpack.c.bf16 %v48, %v48
    %v113 = vpack.c.bf16 %v49, %v49
    %v114 = vpack.c.bf16 %v50, %v50
    %v115 = vpack.c.bf16 %v51, %v51
    %v116 = vpack.c.bf16 %v52, %v52
    %v117 = vpack.c.bf16 %v53, %v53
    %v118 = vpack.c.bf16 %v54, %v54
    %v119 = vpack.c.bf16 %v55, %v55
    %v120 = vpack.c.bf16 %v56, %v56
    %v121 = vpack.c.bf16 %v57, %v57
    %v122 = vpack.c.bf16 %v58, %v58
    %v123 = vpack.c.bf16 %v59, %v59
    %v124 = vpack.c.bf16 %v60, %v60
    %v125 = vpack.c.bf16 %v61, %v61
    %v126 = vpack.c.bf16 %v62, %v62
    %v127 = vpack.c.bf16 %v63, %v63
    %v128 = vpack.c.bf16 %v64, %v64
    %v129 = vpack.c.bf16 %v65, %v65
    %v130 = vpack.c.bf16 %v66, %v66
    %v131 = vpack.c.bf16 %v67, %v67
    %v132 = vpack.c.bf16 %v68, %v68
    %v133 = vpack.c.bf16 %v69, %v69
    %v134 = vpack.c.bf16 %v70, %v70
    %v135 = vpack.c.bf16 %v71, %v71
    %v136 = vpack.c.bf16 %v72, %v72
    %v137 = vpack.c.bf16 %v73, %v73
    %v138 = vpack.c.bf16 %v74, %v74
    %v139 = vpack.c.bf16 %v75, %v75
    %v140 = vpack.c.bf16 %v76, %v76
    %v141 = vpack.c.bf16 %v77, %v77
    %v142 = vpack.c.bf16 %v78, %v78
    %v143 = vpack.c.bf16 %v79, %v79
    %v144 = vpack.c.bf16 %v80, %v80
    %v145 = vpack.c.bf16 %v81, %v81
    %v146 = vpack.c.bf16 %v82, %v82
    %v147 = vpack.c.bf16 %v83, %v83
    %v148 = vpack.c.bf16 %v84, %v84
    %v149 = vpack.c.bf16 %v85, %v85
    %v150 = vpack.c.bf16 %v86, %v86
    %v151 = vpack.c.bf16 %v87, %v87
    %v152 = vpack.c.bf16 %v88, %v88
    %v153 = vpack.c.bf16 %v89, %v89
    %v154 = vpack.c.bf16 %v90, %v90
    %v155 = vpack.c.bf16 %v91, %v91
    %v156 = vpack.c.bf16 %v92, %v92
    %v157 = vpack.c.bf16 %v93, %v93
    %v158 = vpack.c.bf16 %v94, %v94
    %v159 = vpack.c.bf16 %v95, %v95
    %v160 = vpack.c.bf16 %v96, %v96
    %v161 = vpack.c.bf16 %v97, %v97
    %v162 = vld [vmem:[%s1] sm:$0xf]
    %v163 = vld [vmem:[%s1 + $0x4] sm:$0xf]
    %v164 = vld [vmem:[%s1 + $0x8] sm:$0xf]
    %v165 = vld [vmem:[%s1 + $0xc] sm:$0x3]
    %v166 = vld [vmem:[%s2] sm:$0x1]
    %v199 = vunpack.c.l.b16 %v98
    %v200 = vunpack.c.l.b16 %v100
    %v201 = vunpack.c.l.b16 %v102
    %v202 = vunpack.c.l.b16 %v104
    %v203 = vunpack.c.l.b16 %v106
    %v204 = vunpack.c.l.b16 %v108
    %v205 = vunpack.c.l.b16 %v110
    %v206 = vunpack.c.l.b16 %v112
    %v207 = vunpack.c.l.b16 %v114
    %v208 = vunpack.c.l.b16 %v116
    %v209 = vunpack.c.l.b16 %v118
    %v210 = vunpack.c.l.b16 %v120
    %v211 = vunpack.c.l.b16 %v122
    %v212 = vunpack.c.l.b16 %v124
    %v213 = vunpack.c.l.b16 %v126
    %v214 = vunpack.c.l.b16 %v128
    %v215 = vunpack.c.l.b16 %v130
    %v216 = vunpack.c.l.b16 %v132
    %v217 = vunpack.c.l.b16 %v134
    %v218 = vunpack.c.l.b16 %v136
    %v219 = vunpack.c.l.b16 %v138
    %v220 = vunpack.c.l.b16 %v140
    %v221 = vunpack.c.l.b16 %v142
    %v222 = vunpack.c.l.b16 %v144
    %v223 = vunpack.c.l.b16 %v146
    %v224 = vunpack.c.l.b16 %v148
    %v225 = vunpack.c.l.b16 %v150
    %v226 = vunpack.c.l.b16 %v152
    %v227 = vunpack.c.l.b16 %v154
    %v228 = vunpack.c.l.b16 %v156
    %v229 = vunpack.c.l.b16 %v158
    %v230 = vunpack.c.l.b16 %v160
    %v231 = vpack.c.b16 %v199, %v199
    %v232 = vpack.c.b16 %v200, %v200
    %v233 = vpack.c.b16 %v201, %v201
    %v234 = vpack.c.b16 %v202, %v202
    %v235 = vpack.c.b16 %v203, %v203
    %v236 = vpack.c.b16 %v204, %v204
    %v237 = vpack.c.b16 %v205, %v205
    %v238 = vpack.c.b16 %v206, %v206
    %v239 = vpack.c.b16 %v207, %v207
    %v240 = vpack.c.b16 %v208, %v208
    %v241 = vpack.c.b16 %v209, %v209
    %v242 = vpack.c.b16 %v210, %v210
    %v243 = vpack.c.b16 %v211, %v211
    %v244 = vpack.c.b16 %v212, %v212
    %v245 = vpack.c.b16 %v213, %v213
    %v246 = vpack.c.b16 %v214, %v214
    %v247 = vpack.c.b16 %v215, %v215
    %v248 = vpack.c.b16 %v216, %v216
    %v249 = vpack.c.b16 %v217, %v217
    %v250 = vpack.c.b16 %v218, %v218
    %v251 = vpack.c.b16 %v219, %v219
    %v252 = vpack.c.b16 %v220, %v220
    %v253 = vpack.c.b16 %v221, %v221
    %v254 = vpack.c.b16 %v222, %v222
    %v255 = vpack.c.b16 %v223, %v223
    %v256 = vpack.c.b16 %v224, %v224
    %v257 = vpack.c.b16 %v225, %v225
    %v258 = vpack.c.b16 %v226, %v226
    %v259 = vpack.c.b16 %v227, %v227
    %v260 = vpack.c.b16 %v228, %v228
    %v261 = vpack.c.b16 %v229, %v229
    %v262 = vpack.c.b16 %v230, %v230
    %v264 = vshll.u32 %v231, 16
    %v266 = vrot.slane %v264, 1
    %v268 = vshll.u32 %v232, 16
    %v270 = vrot.slane %v268, 1
    %v272 = vshll.u32 %v233, 16
    %v274 = vrot.slane %v272, 1
    %v276 = vshll.u32 %v234, 16
    %v278 = vrot.slane %v276, 1
    %v280 = vshll.u32 %v235, 16
    %v282 = vrot.slane %v280, 1
    %v284 = vshll.u32 %v236, 16
    %v286 = vrot.slane %v284, 1
    %v288 = vshll.u32 %v237, 16
    %v290 = vrot.slane %v288, 1
    %v292 = vshll.u32 %v238, 16
    %v294 = vrot.slane %v292, 1
    %v296 = vshll.u32 %v239, 16
    %v298 = vrot.slane %v296, 1
    %v300 = vshll.u32 %v240, 16
    %v302 = vrot.slane %v300, 1
    %v304 = vshll.u32 %v241, 16
    %v306 = vrot.slane %v304, 1
    %v308 = vshll.u32 %v242, 16
    %v310 = vrot.slane %v308, 1
    %v312 = vshll.u32 %v243, 16
    %v314 = vrot.slane %v312, 1
    %v316 = vshll.u32 %v244, 16
    %v318 = vrot.slane %v316, 1
    %v320 = vshll.u32 %v245, 16
    %v322 = vrot.slane %v320, 1
    %v324 = vshll.u32 %v246, 16
    %v326 = vrot.slane %v324, 1
    %v328 = vshll.u32 %v247, 16
    %v330 = vrot.slane %v328, 1
    %v332 = vshll.u32 %v248, 16
    %v334 = vrot.slane %v332, 1
    %v336 = vshll.u32 %v249, 16
    %v338 = vrot.slane %v336, 1
    %v340 = vshll.u32 %v250, 16
    %v342 = vrot.slane %v340, 1
    %v344 = vshll.u32 %v251, 16
    %v346 = vrot.slane %v344, 1
    %v348 = vshll.u32 %v252, 16
    %v350 = vrot.slane %v348, 1
    %v352 = vshll.u32 %v253, 16
    %v354 = vrot.slane %v352, 1
    %v356 = vshll.u32 %v254, 16
    %v358 = vrot.slane %v356, 1
    %v360 = vshll.u32 %v255, 16
    %v362 = vrot.slane %v360, 1
    %v364 = vshll.u32 %v256, 16
    %v366 = vrot.slane %v364, 1
    %v368 = vshll.u32 %v257, 16
    %v370 = vrot.slane %v368, 1
    %v372 = vshll.u32 %v258, 16
    %v374 = vrot.slane %v372, 1
    %v376 = vshll.u32 %v259, 16
    %v378 = vrot.slane %v376, 1
    %v380 = vshll.u32 %v260, 16
    %v382 = vrot.slane %v380, 1
    %v384 = vshll.u32 %v261, 16
    %v386 = vrot.slane %v384, 1
    %v388 = vshll.u32 %v262, 16
    %v390 = vrot.slane %v388, 1
    %v423 = vrot.slane %v231, 1
    %v424 = vrot.slane %v232, 1
    %v425 = vrot.slane %v233, 1
    %v426 = vrot.slane %v234, 1
    %v427 = vrot.slane %v235, 1
    %v428 = vrot.slane %v236, 1
    %v429 = vrot.slane %v237, 1
    %v430 = vrot.slane %v238, 1
    %v431 = vrot.slane %v239, 1
    %v432 = vrot.slane %v240, 1
    %v433 = vrot.slane %v241, 1
    %v434 = vrot.slane %v242, 1
    %v435 = vrot.slane %v243, 1
    %v436 = vrot.slane %v244, 1
    %v437 = vrot.slane %v245, 1
    %v438 = vrot.slane %v246, 1
    %v439 = vrot.slane %v247, 1
    %v440 = vrot.slane %v248, 1
    %v441 = vrot.slane %v249, 1
    %v442 = vrot.slane %v250, 1
    %v443 = vrot.slane %v251, 1
    %v444 = vrot.slane %v252, 1
    %v445 = vrot.slane %v253, 1
    %v446 = vrot.slane %v254, 1
    %v447 = vrot.slane %v255, 1
    %v448 = vrot.slane %v256, 1
    %v449 = vrot.slane %v257, 1
    %v450 = vrot.slane %v258, 1
    %v451 = vrot.slane %v259, 1
    %v452 = vrot.slane %v260, 1
    %v453 = vrot.slane %v261, 1
    %v454 = vrot.slane %v262, 1
    %v455 = vrot.slane %v264, 2
    %v456 = vrot.slane %v268, 2
    %v457 = vrot.slane %v272, 2
    %v458 = vrot.slane %v276, 2
    %v459 = vrot.slane %v280, 2
    %v460 = vrot.slane %v284, 2
    %v461 = vrot.slane %v288, 2
    %v462 = vrot.slane %v292, 2
    %v463 = vrot.slane %v296, 2
    %v464 = vrot.slane %v300, 2
    %v465 = vrot.slane %v304, 2
    %v466 = vrot.slane %v308, 2
    %v467 = vrot.slane %v312, 2
    %v468 = vrot.slane %v316, 2
    %v469 = vrot.slane %v320, 2
    %v470 = vrot.slane %v324, 2
    %v471 = vrot.slane %v328, 2
    %v472 = vrot.slane %v332, 2
    %v473 = vrot.slane %v336, 2
    %v474 = vrot.slane %v340, 2
    %v475 = vrot.slane %v344, 2
    %v476 = vrot.slane %v348, 2
    %v477 = vrot.slane %v352, 2
    %v478 = vrot.slane %v356, 2
    %v479 = vrot.slane %v360, 2
    %v480 = vrot.slane %v364, 2
    %v481 = vrot.slane %v368, 2
    %v482 = vrot.slane %v372, 2
    %v483 = vrot.slane %v376, 2
    %v484 = vrot.slane %v380, 2
    %v485 = vrot.slane %v384, 2
    %v486 = vrot.slane %v388, 2
    %v551 = vunpack.c.l.b16 %v99
    %v552 = vunpack.c.l.b16 %v101
    %v553 = vunpack.c.l.b16 %v103
    %v554 = vunpack.c.l.b16 %v105
    %v555 = vunpack.c.l.b16 %v107
    %v556 = vunpack.c.l.b16 %v109
    %v557 = vunpack.c.l.b16 %v111
    %v558 = vunpack.c.l.b16 %v113
    %v559 = vunpack.c.l.b16 %v115
    %v560 = vunpack.c.l.b16 %v117
    %v561 = vunpack.c.l.b16 %v119
    %v562 = vunpack.c.l.b16 %v121
    %v563 = vunpack.c.l.b16 %v123
    %v564 = vunpack.c.l.b16 %v125
    %v565 = vunpack.c.l.b16 %v127
    %v566 = vunpack.c.l.b16 %v129
    %v567 = vunpack.c.l.b16 %v131
    %v568 = vunpack.c.l.b16 %v133
    %v569 = vunpack.c.l.b16 %v135
    %v570 = vunpack.c.l.b16 %v137
    %v571 = vunpack.c.l.b16 %v139
    %v572 = vunpack.c.l.b16 %v141
    %v573 = vunpack.c.l.b16 %v143
    %v574 = vunpack.c.l.b16 %v145
    %v575 = vunpack.c.l.b16 %v147
    %v576 = vunpack.c.l.b16 %v149
    %v577 = vunpack.c.l.b16 %v151
    %v578 = vunpack.c.l.b16 %v153
    %v579 = vunpack.c.l.b16 %v155
    %v580 = vunpack.c.l.b16 %v157
    %v581 = vunpack.c.l.b16 %v159
    %v582 = vunpack.c.l.b16 %v161
    %v583 = vpack.c.b16 %v551, %v551
    %v584 = vpack.c.b16 %v552, %v552
    %v585 = vpack.c.b16 %v553, %v553
    %v586 = vpack.c.b16 %v554, %v554
    %v587 = vpack.c.b16 %v555, %v555
    %v588 = vpack.c.b16 %v556, %v556
    %v589 = vpack.c.b16 %v557, %v557
    %v590 = vpack.c.b16 %v558, %v558
    %v591 = vpack.c.b16 %v559, %v559
    %v592 = vpack.c.b16 %v560, %v560
    %v593 = vpack.c.b16 %v561, %v561
    %v594 = vpack.c.b16 %v562, %v562
    %v595 = vpack.c.b16 %v563, %v563
    %v596 = vpack.c.b16 %v564, %v564
    %v597 = vpack.c.b16 %v565, %v565
    %v598 = vpack.c.b16 %v566, %v566
    %v599 = vpack.c.b16 %v567, %v567
    %v600 = vpack.c.b16 %v568, %v568
    %v601 = vpack.c.b16 %v569, %v569
    %v602 = vpack.c.b16 %v570, %v570
    %v603 = vpack.c.b16 %v571, %v571
    %v604 = vpack.c.b16 %v572, %v572
    %v605 = vpack.c.b16 %v573, %v573
    %v606 = vpack.c.b16 %v574, %v574
    %v607 = vpack.c.b16 %v575, %v575
    %v608 = vpack.c.b16 %v576, %v576
    %v609 = vpack.c.b16 %v577, %v577
    %v610 = vpack.c.b16 %v578, %v578
    %v611 = vpack.c.b16 %v579, %v579
    %v612 = vpack.c.b16 %v580, %v580
    %v613 = vpack.c.b16 %v581, %v581
    %v614 = vpack.c.b16 %v582, %v582
    %v615 = vrot.slane %v583, 6
    %v616 = vrot.slane %v584, 6
    %v617 = vrot.slane %v585, 6
    %v618 = vrot.slane %v586, 6
    %v619 = vrot.slane %v587, 6
    %v620 = vrot.slane %v588, 6
    %v621 = vrot.slane %v589, 6
    %v622 = vrot.slane %v590, 6
    %v623 = vrot.slane %v591, 6
    %v624 = vrot.slane %v592, 6
    %v625 = vrot.slane %v593, 6
    %v626 = vrot.slane %v594, 6
    %v627 = vrot.slane %v595, 6
    %v628 = vrot.slane %v596, 6
    %v629 = vrot.slane %v597, 6
    %v630 = vrot.slane %v598, 6
    %v631 = vrot.slane %v599, 6
    %v632 = vrot.slane %v600, 6
    %v633 = vrot.slane %v601, 6
    %v634 = vrot.slane %v602, 6
    %v635 = vrot.slane %v603, 6
    %v636 = vrot.slane %v604, 6
    %v637 = vrot.slane %v605, 6
    %v638 = vrot.slane %v606, 6
    %v639 = vrot.slane %v607, 6
    %v640 = vrot.slane %v608, 6
    %v641 = vrot.slane %v609, 6
    %v642 = vrot.slane %v610, 6
    %v643 = vrot.slane %v611, 6
    %v644 = vrot.slane %v612, 6
    %v645 = vrot.slane %v613, 6
    %v646 = vrot.slane %v614, 6
    %v648 = vshll.u32 %v583, 16
    %v650 = vrot.slane %v648, 7
    %v652 = vshll.u32 %v584, 16
    %v654 = vrot.slane %v652, 7
    %v656 = vshll.u32 %v585, 16
    %v658 = vrot.slane %v656, 7
    %v660 = vshll.u32 %v586, 16
    %v662 = vrot.slane %v660, 7
    %v664 = vshll.u32 %v587, 16
    %v666 = vrot.slane %v664, 7
    %v668 = vshll.u32 %v588, 16
    %v670 = vrot.slane %v668, 7
    %v672 = vshll.u32 %v589, 16
    %v674 = vrot.slane %v672, 7
    %v676 = vshll.u32 %v590, 16
    %v678 = vrot.slane %v676, 7
    %v680 = vshll.u32 %v591, 16
    %v682 = vrot.slane %v680, 7
    %v684 = vshll.u32 %v592, 16
    %v686 = vrot.slane %v684, 7
    %v688 = vshll.u32 %v593, 16
    %v690 = vrot.slane %v688, 7
    %v692 = vshll.u32 %v594, 16
    %v694 = vrot.slane %v692, 7
    %v696 = vshll.u32 %v595, 16
    %v698 = vrot.slane %v696, 7
    %v700 = vshll.u32 %v596, 16
    %v702 = vrot.slane %v700, 7
    %v704 = vshll.u32 %v597, 16
    %v706 = vrot.slane %v704, 7
    %v708 = vshll.u32 %v598, 16
    %v710 = vrot.slane %v708, 7
    %v712 = vshll.u32 %v599, 16
    %v714 = vrot.slane %v712, 7
    %v716 = vshll.u32 %v600, 16
    %v718 = vrot.slane %v716, 7
    %v720 = vshll.u32 %v601, 16
    %v722 = vrot.slane %v720, 7
    %v724 = vshll.u32 %v602, 16
    %v726 = vrot.slane %v724, 7
    %v728 = vshll.u32 %v603, 16
    %v730 = vrot.slane %v728, 7
    %v732 = vshll.u32 %v604, 16
    %v734 = vrot.slane %v732, 7
    %v736 = vshll.u32 %v605, 16
    %v738 = vrot.slane %v736, 7
    %v740 = vshll.u32 %v606, 16
    %v742 = vrot.slane %v740, 7
    %v744 = vshll.u32 %v607, 16
    %v746 = vrot.slane %v744, 7
    %v748 = vshll.u32 %v608, 16
    %v750 = vrot.slane %v748, 7
    %v752 = vshll.u32 %v609, 16
    %v754 = vrot.slane %v752, 7
    %v756 = vshll.u32 %v610, 16
    %v758 = vrot.slane %v756, 7
    %v760 = vshll.u32 %v611, 16
    %v762 = vrot.slane %v760, 7
    %v764 = vshll.u32 %v612, 16
    %v766 = vrot.slane %v764, 7
    %v768 = vshll.u32 %v613, 16
    %v770 = vrot.slane %v768, 7
    %v772 = vshll.u32 %v614, 16
    %v774 = vrot.slane %v772, 7
    %v807 = vrot.slane %v583, 7
    %v808 = vrot.slane %v584, 7
    %v809 = vrot.slane %v585, 7
    %v810 = vrot.slane %v586, 7
    %v811 = vrot.slane %v587, 7
    %v812 = vrot.slane %v588, 7
    %v813 = vrot.slane %v589, 7
    %v814 = vrot.slane %v590, 7
    %v815 = vrot.slane %v591, 7
    %v816 = vrot.slane %v592, 7
    %v817 = vrot.slane %v593, 7
    %v818 = vrot.slane %v594, 7
    %v819 = vrot.slane %v595, 7
    %v820 = vrot.slane %v596, 7
    %v821 = vrot.slane %v597, 7
    %v822 = vrot.slane %v598, 7
    %v823 = vrot.slane %v599, 7
    %v824 = vrot.slane %v600, 7
    %v825 = vrot.slane %v601, 7
    %v826 = vrot.slane %v602, 7
    %v827 = vrot.slane %v603, 7
    %v828 = vrot.slane %v604, 7
    %v829 = vrot.slane %v605, 7
    %v830 = vrot.slane %v606, 7
    %v831 = vrot.slane %v607, 7
    %v832 = vrot.slane %v608, 7
    %v833 = vrot.slane %v609, 7
    %v834 = vrot.slane %v610, 7
    %v835 = vrot.slane %v611, 7
    %v836 = vrot.slane %v612, 7
    %v837 = vrot.slane %v613, 7
    %v838 = vrot.slane %v614, 7
    %vm871 = vcmask 1040384
    %vm872 = vsmask.f32 256
    %vm873 = vmand %vm871, %vm872
    %v874 = vsel %vm873, %v98, %v266
    %v875 = vsel %vm873, %v100, %v270
    %v876 = vsel %vm873, %v102, %v274
    %v877 = vsel %vm873, %v104, %v278
    %v878 = vsel %vm873, %v106, %v282
    %v879 = vsel %vm873, %v108, %v286
    %v880 = vsel %vm873, %v110, %v290
    %v881 = vsel %vm873, %v112, %v294
    %v882 = vsel %vm873, %v114, %v298
    %v883 = vsel %vm873, %v116, %v302
    %v884 = vsel %vm873, %v118, %v306
    %v885 = vsel %vm873, %v120, %v310
    %v886 = vsel %vm873, %v122, %v314
    %v887 = vsel %vm873, %v124, %v318
    %v888 = vsel %vm873, %v126, %v322
    %v889 = vsel %vm873, %v128, %v326
    %v890 = vsel %vm873, %v130, %v330
    %v891 = vsel %vm873, %v132, %v334
    %v892 = vsel %vm873, %v134, %v338
    %v893 = vsel %vm873, %v136, %v342
    %v894 = vsel %vm873, %v138, %v346
    %v895 = vsel %vm873, %v140, %v350
    %v896 = vsel %vm873, %v142, %v354
    %v897 = vsel %vm873, %v144, %v358
    %v898 = vsel %vm873, %v146, %v362
    %v899 = vsel %vm873, %v148, %v366
    %v900 = vsel %vm873, %v150, %v370
    %v901 = vsel %vm873, %v152, %v374
    %v902 = vsel %vm873, %v154, %v378
    %v903 = vsel %vm873, %v156, %v382
    %v904 = vsel %vm873, %v158, %v386
    %v905 = vsel %vm873, %v160, %v390
    %vm906 = vcmask 1040384
    %v909 = vsel %vm906, %v874, %v423
    %v913 = vsel %vm906, %v875, %v424
    %v917 = vsel %vm906, %v876, %v425
    %v921 = vsel %vm906, %v877, %v426
    %v925 = vsel %vm906, %v878, %v427
    %v929 = vsel %vm906, %v879, %v428
    %v933 = vsel %vm906, %v880, %v429
    %v937 = vsel %vm906, %v881, %v430
    %v941 = vsel %vm906, %v882, %v431
    %v945 = vsel %vm906, %v883, %v432
    %v949 = vsel %vm906, %v884, %v433
    %v953 = vsel %vm906, %v885, %v434
    %v957 = vsel %vm906, %v886, %v435
    %v961 = vsel %vm906, %v887, %v436
    %v965 = vsel %vm906, %v888, %v437
    %v969 = vsel %vm906, %v889, %v438
    %v973 = vsel %vm906, %v890, %v439
    %v977 = vsel %vm906, %v891, %v440
    %v981 = vsel %vm906, %v892, %v441
    %v985 = vsel %vm906, %v893, %v442
    %v989 = vsel %vm906, %v894, %v443
    %v993 = vsel %vm906, %v895, %v444
    %v997 = vsel %vm906, %v896, %v445
    %v1001 = vsel %vm906, %v897, %v446
    %v1005 = vsel %vm906, %v898, %v447
    %v1009 = vsel %vm906, %v899, %v448
    %v1013 = vsel %vm906, %v900, %v449
    %v1017 = vsel %vm906, %v901, %v450
    %v1021 = vsel %vm906, %v902, %v451
    %v1025 = vsel %vm906, %v903, %v452
    %v1029 = vsel %vm906, %v904, %v453
    %v1033 = vsel %vm906, %v905, %v454
    %vm1035 = vcmask 1041408
    %vm1036 = vsmask.f32 1280
    %vm1037 = vmand %vm1035, %vm1036
    %v1038 = vsel %vm1037, %v909, %v455
    %v1039 = vsel %vm1037, %v913, %v456
    %v1040 = vsel %vm1037, %v917, %v457
    %v1041 = vsel %vm1037, %v921, %v458
    %v1042 = vsel %vm1037, %v925, %v459
    %v1043 = vsel %vm1037, %v929, %v460
    %v1044 = vsel %vm1037, %v933, %v461
    %v1045 = vsel %vm1037, %v937, %v462
    %v1046 = vsel %vm1037, %v941, %v463
    %v1047 = vsel %vm1037, %v945, %v464
    %v1048 = vsel %vm1037, %v949, %v465
    %v1049 = vsel %vm1037, %v953, %v466
    %v1050 = vsel %vm1037, %v957, %v467
    %v1051 = vsel %vm1037, %v961, %v468
    %v1052 = vsel %vm1037, %v965, %v469
    %v1053 = vsel %vm1037, %v969, %v470
    %v1054 = vsel %vm1037, %v973, %v471
    %v1055 = vsel %vm1037, %v977, %v472
    %v1056 = vsel %vm1037, %v981, %v473
    %v1057 = vsel %vm1037, %v985, %v474
    %v1058 = vsel %vm1037, %v989, %v475
    %v1059 = vsel %vm1037, %v993, %v476
    %v1060 = vsel %vm1037, %v997, %v477
    %v1061 = vsel %vm1037, %v1001, %v478
    %v1062 = vsel %vm1037, %v1005, %v479
    %v1063 = vsel %vm1037, %v1009, %v480
    %v1064 = vsel %vm1037, %v1013, %v481
    %v1065 = vsel %vm1037, %v1017, %v482
    %v1066 = vsel %vm1037, %v1021, %v483
    %v1067 = vsel %vm1037, %v1025, %v484
    %v1068 = vsel %vm1037, %v1029, %v485
    %v1069 = vsel %vm1037, %v1033, %v486
    %vm1070 = vcmask 1041408
    %v1073 = vsel %vm1070, %v1038, %v615
    %v1077 = vsel %vm1070, %v1039, %v616
    %v1081 = vsel %vm1070, %v1040, %v617
    %v1085 = vsel %vm1070, %v1041, %v618
    %v1089 = vsel %vm1070, %v1042, %v619
    %v1093 = vsel %vm1070, %v1043, %v620
    %v1097 = vsel %vm1070, %v1044, %v621
    %v1101 = vsel %vm1070, %v1045, %v622
    %v1105 = vsel %vm1070, %v1046, %v623
    %v1109 = vsel %vm1070, %v1047, %v624
    %v1113 = vsel %vm1070, %v1048, %v625
    %v1117 = vsel %vm1070, %v1049, %v626
    %v1121 = vsel %vm1070, %v1050, %v627
    %v1125 = vsel %vm1070, %v1051, %v628
    %v1129 = vsel %vm1070, %v1052, %v629
    %v1133 = vsel %vm1070, %v1053, %v630
    %v1137 = vsel %vm1070, %v1054, %v631
    %v1141 = vsel %vm1070, %v1055, %v632
    %v1145 = vsel %vm1070, %v1056, %v633
    %v1149 = vsel %vm1070, %v1057, %v634
    %v1153 = vsel %vm1070, %v1058, %v635
    %v1157 = vsel %vm1070, %v1059, %v636
    %v1161 = vsel %vm1070, %v1060, %v637
    %v1165 = vsel %vm1070, %v1061, %v638
    %v1169 = vsel %vm1070, %v1062, %v639
    %v1173 = vsel %vm1070, %v1063, %v640
    %v1177 = vsel %vm1070, %v1064, %v641
    %v1181 = vsel %vm1070, %v1065, %v642
    %v1185 = vsel %vm1070, %v1066, %v643
    %v1189 = vsel %vm1070, %v1067, %v644
    %v1193 = vsel %vm1070, %v1068, %v645
    %v1197 = vsel %vm1070, %v1069, %v646
    %vm1199 = vcmask 1042432
    %vm1200 = vsmask.f32 2304
    %vm1201 = vmand %vm1199, %vm1200
    %v1202 = vsel %vm1201, %v1073, %v650
    %v1203 = vsel %vm1201, %v1077, %v654
    %v1204 = vsel %vm1201, %v1081, %v658
    %v1205 = vsel %vm1201, %v1085, %v662
    %v1206 = vsel %vm1201, %v1089, %v666
    %v1207 = vsel %vm1201, %v1093, %v670
    %v1208 = vsel %vm1201, %v1097, %v674
    %v1209 = vsel %vm1201, %v1101, %v678
    %v1210 = vsel %vm1201, %v1105, %v682
    %v1211 = vsel %vm1201, %v1109, %v686
    %v1212 = vsel %vm1201, %v1113, %v690
    %v1213 = vsel %vm1201, %v1117, %v694
    %v1214 = vsel %vm1201, %v1121, %v698
    %v1215 = vsel %vm1201, %v1125, %v702
    %v1216 = vsel %vm1201, %v1129, %v706
    %v1217 = vsel %vm1201, %v1133, %v710
    %v1218 = vsel %vm1201, %v1137, %v714
    %v1219 = vsel %vm1201, %v1141, %v718
    %v1220 = vsel %vm1201, %v1145, %v722
    %v1221 = vsel %vm1201, %v1149, %v726
    %v1222 = vsel %vm1201, %v1153, %v730
    %v1223 = vsel %vm1201, %v1157, %v734
    %v1224 = vsel %vm1201, %v1161, %v738
    %v1225 = vsel %vm1201, %v1165, %v742
    %v1226 = vsel %vm1201, %v1169, %v746
    %v1227 = vsel %vm1201, %v1173, %v750
    %v1228 = vsel %vm1201, %v1177, %v754
    %v1229 = vsel %vm1201, %v1181, %v758
    %v1230 = vsel %vm1201, %v1185, %v762
    %v1231 = vsel %vm1201, %v1189, %v766
    %v1232 = vsel %vm1201, %v1193, %v770
    %v1233 = vsel %vm1201, %v1197, %v774
    %vm1234 = vcmask 1042432
    %v1237 = vsel %vm1234, %v1202, %v807
    %v1241 = vsel %vm1234, %v1203, %v808
    %v1245 = vsel %vm1234, %v1204, %v809
    %v1249 = vsel %vm1234, %v1205, %v810
    %v1253 = vsel %vm1234, %v1206, %v811
    %v1257 = vsel %vm1234, %v1207, %v812
    %v1261 = vsel %vm1234, %v1208, %v813
    %v1265 = vsel %vm1234, %v1209, %v814
    %v1269 = vsel %vm1234, %v1210, %v815
    %v1273 = vsel %vm1234, %v1211, %v816
    %v1277 = vsel %vm1234, %v1212, %v817
    %v1281 = vsel %vm1234, %v1213, %v818
    %v1285 = vsel %vm1234, %v1214, %v819
    %v1289 = vsel %vm1234, %v1215, %v820
    %v1293 = vsel %vm1234, %v1216, %v821
    %v1297 = vsel %vm1234, %v1217, %v822
    %v1301 = vsel %vm1234, %v1218, %v823
    %v1305 = vsel %vm1234, %v1219, %v824
    %v1309 = vsel %vm1234, %v1220, %v825
    %v1313 = vsel %vm1234, %v1221, %v826
    %v1317 = vsel %vm1234, %v1222, %v827
    %v1321 = vsel %vm1234, %v1223, %v828
    %v1325 = vsel %vm1234, %v1224, %v829
    %v1329 = vsel %vm1234, %v1225, %v830
    %v1333 = vsel %vm1234, %v1226, %v831
    %v1337 = vsel %vm1234, %v1227, %v832
    %v1341 = vsel %vm1234, %v1228, %v833
    %v1345 = vsel %vm1234, %v1229, %v834
    %v1349 = vsel %vm1234, %v1230, %v835
    %v1353 = vsel %vm1234, %v1231, %v836
    %v1357 = vsel %vm1234, %v1232, %v837
    %v1361 = vsel %vm1234, %v1233, %v838
    %vm1363 = vcmask 1043456
    %vm1364 = vsmask.f32 3328
    %vm1365 = vmand %vm1363, %vm1364
    %v1366 = vsel %vm1365, %v1237, %v648
    %v1367 = vsel %vm1365, %v1241, %v652
    %v1368 = vsel %vm1365, %v1245, %v656
    %v1369 = vsel %vm1365, %v1249, %v660
    %v1370 = vsel %vm1365, %v1253, %v664
    %v1371 = vsel %vm1365, %v1257, %v668
    %v1372 = vsel %vm1365, %v1261, %v672
    %v1373 = vsel %vm1365, %v1265, %v676
    %v1374 = vsel %vm1365, %v1269, %v680
    %v1375 = vsel %vm1365, %v1273, %v684
    %v1376 = vsel %vm1365, %v1277, %v688
    %v1377 = vsel %vm1365, %v1281, %v692
    %v1378 = vsel %vm1365, %v1285, %v696
    %v1379 = vsel %vm1365, %v1289, %v700
    %v1380 = vsel %vm1365, %v1293, %v704
    %v1381 = vsel %vm1365, %v1297, %v708
    %v1382 = vsel %vm1365, %v1301, %v712
    %v1383 = vsel %vm1365, %v1305, %v716
    %v1384 = vsel %vm1365, %v1309, %v720
    %v1385 = vsel %vm1365, %v1313, %v724
    %v1386 = vsel %vm1365, %v1317, %v728
    %v1387 = vsel %vm1365, %v1321, %v732
    %v1388 = vsel %vm1365, %v1325, %v736
    %v1389 = vsel %vm1365, %v1329, %v740
    %v1390 = vsel %vm1365, %v1333, %v744
    %v1391 = vsel %vm1365, %v1337, %v748
    %v1392 = vsel %vm1365, %v1341, %v752
    %v1393 = vsel %vm1365, %v1345, %v756
    %v1394 = vsel %vm1365, %v1349, %v760
    %v1395 = vsel %vm1365, %v1353, %v764
    %v1396 = vsel %vm1365, %v1357, %v768
    %v1397 = vsel %vm1365, %v1361, %v772
    %v1398 = vshrl.u32 %v231, 16
    %v1400 = vshrl.u32 %v232, 16
    %v1402 = vshrl.u32 %v233, 16
    %v1404 = vshrl.u32 %v234, 16
    %v1406 = vshrl.u32 %v235, 16
    %v1408 = vshrl.u32 %v236, 16
    %v1410 = vshrl.u32 %v237, 16
    %v1412 = vshrl.u32 %v238, 16
    %v1414 = vshrl.u32 %v239, 16
    %v1416 = vshrl.u32 %v240, 16
    %v1418 = vshrl.u32 %v241, 16
    %v1420 = vshrl.u32 %v242, 16
    %v1422 = vshrl.u32 %v243, 16
    %v1424 = vshrl.u32 %v244, 16
    %v1426 = vshrl.u32 %v245, 16
    %v1428 = vshrl.u32 %v246, 16
    %v1430 = vshrl.u32 %v247, 16
    %v1432 = vshrl.u32 %v248, 16
    %v1434 = vshrl.u32 %v249, 16
    %v1436 = vshrl.u32 %v250, 16
    %v1438 = vshrl.u32 %v251, 16
    %v1440 = vshrl.u32 %v252, 16
    %v1442 = vshrl.u32 %v253, 16
    %v1444 = vshrl.u32 %v254, 16
    %v1446 = vshrl.u32 %v255, 16
    %v1448 = vshrl.u32 %v256, 16
    %v1450 = vshrl.u32 %v257, 16
    %v1452 = vshrl.u32 %v258, 16
    %v1454 = vshrl.u32 %v259, 16
    %v1456 = vshrl.u32 %v260, 16
    %v1458 = vshrl.u32 %v261, 16
    %v1460 = vshrl.u32 %v262, 16
    %v1526 = vrot.slane %v1398, 1
    %v1527 = vrot.slane %v1400, 1
    %v1528 = vrot.slane %v1402, 1
    %v1529 = vrot.slane %v1404, 1
    %v1530 = vrot.slane %v1406, 1
    %v1531 = vrot.slane %v1408, 1
    %v1532 = vrot.slane %v1410, 1
    %v1533 = vrot.slane %v1412, 1
    %v1534 = vrot.slane %v1414, 1
    %v1535 = vrot.slane %v1416, 1
    %v1536 = vrot.slane %v1418, 1
    %v1537 = vrot.slane %v1420, 1
    %v1538 = vrot.slane %v1422, 1
    %v1539 = vrot.slane %v1424, 1
    %v1540 = vrot.slane %v1426, 1
    %v1541 = vrot.slane %v1428, 1
    %v1542 = vrot.slane %v1430, 1
    %v1543 = vrot.slane %v1432, 1
    %v1544 = vrot.slane %v1434, 1
    %v1545 = vrot.slane %v1436, 1
    %v1546 = vrot.slane %v1438, 1
    %v1547 = vrot.slane %v1440, 1
    %v1548 = vrot.slane %v1442, 1
    %v1549 = vrot.slane %v1444, 1
    %v1550 = vrot.slane %v1446, 1
    %v1551 = vrot.slane %v1448, 1
    %v1552 = vrot.slane %v1450, 1
    %v1553 = vrot.slane %v1452, 1
    %v1554 = vrot.slane %v1454, 1
    %v1555 = vrot.slane %v1456, 1
    %v1556 = vrot.slane %v1458, 1
    %v1557 = vrot.slane %v1460, 1
    %v1558 = vrot.slane %v231, 2
    %v1559 = vrot.slane %v232, 2
    %v1560 = vrot.slane %v233, 2
    %v1561 = vrot.slane %v234, 2
    %v1562 = vrot.slane %v235, 2
    %v1563 = vrot.slane %v236, 2
    %v1564 = vrot.slane %v237, 2
    %v1565 = vrot.slane %v238, 2
    %v1566 = vrot.slane %v239, 2
    %v1567 = vrot.slane %v240, 2
    %v1568 = vrot.slane %v241, 2
    %v1569 = vrot.slane %v242, 2
    %v1570 = vrot.slane %v243, 2
    %v1571 = vrot.slane %v244, 2
    %v1572 = vrot.slane %v245, 2
    %v1573 = vrot.slane %v246, 2
    %v1574 = vrot.slane %v247, 2
    %v1575 = vrot.slane %v248, 2
    %v1576 = vrot.slane %v249, 2
    %v1577 = vrot.slane %v250, 2
    %v1578 = vrot.slane %v251, 2
    %v1579 = vrot.slane %v252, 2
    %v1580 = vrot.slane %v253, 2
    %v1581 = vrot.slane %v254, 2
    %v1582 = vrot.slane %v255, 2
    %v1583 = vrot.slane %v256, 2
    %v1584 = vrot.slane %v257, 2
    %v1585 = vrot.slane %v258, 2
    %v1586 = vrot.slane %v259, 2
    %v1587 = vrot.slane %v260, 2
    %v1588 = vrot.slane %v261, 2
    %v1589 = vrot.slane %v262, 2
    %v1622 = vshrl.u32 %v583, 16
    %v1624 = vrot.slane %v1622, 6
    %v1625 = vshrl.u32 %v584, 16
    %v1627 = vrot.slane %v1625, 6
    %v1628 = vshrl.u32 %v585, 16
    %v1630 = vrot.slane %v1628, 6
    %v1631 = vshrl.u32 %v586, 16
    %v1633 = vrot.slane %v1631, 6
    %v1634 = vshrl.u32 %v587, 16
    %v1636 = vrot.slane %v1634, 6
    %v1637 = vshrl.u32 %v588, 16
    %v1639 = vrot.slane %v1637, 6
    %v1640 = vshrl.u32 %v589, 16
    %v1642 = vrot.slane %v1640, 6
    %v1643 = vshrl.u32 %v590, 16
    %v1645 = vrot.slane %v1643, 6
    %v1646 = vshrl.u32 %v591, 16
    %v1648 = vrot.slane %v1646, 6
    %v1649 = vshrl.u32 %v592, 16
    %v1651 = vrot.slane %v1649, 6
    %v1652 = vshrl.u32 %v593, 16
    %v1654 = vrot.slane %v1652, 6
    %v1655 = vshrl.u32 %v594, 16
    %v1657 = vrot.slane %v1655, 6
    %v1658 = vshrl.u32 %v595, 16
    %v1660 = vrot.slane %v1658, 6
    %v1661 = vshrl.u32 %v596, 16
    %v1663 = vrot.slane %v1661, 6
    %v1664 = vshrl.u32 %v597, 16
    %v1666 = vrot.slane %v1664, 6
    %v1667 = vshrl.u32 %v598, 16
    %v1669 = vrot.slane %v1667, 6
    %v1670 = vshrl.u32 %v599, 16
    %v1672 = vrot.slane %v1670, 6
    %v1673 = vshrl.u32 %v600, 16
    %v1675 = vrot.slane %v1673, 6
    %v1676 = vshrl.u32 %v601, 16
    %v1678 = vrot.slane %v1676, 6
    %v1679 = vshrl.u32 %v602, 16
    %v1681 = vrot.slane %v1679, 6
    %v1682 = vshrl.u32 %v603, 16
    %v1684 = vrot.slane %v1682, 6
    %v1685 = vshrl.u32 %v604, 16
    %v1687 = vrot.slane %v1685, 6
    %v1688 = vshrl.u32 %v605, 16
    %v1690 = vrot.slane %v1688, 6
    %v1691 = vshrl.u32 %v606, 16
    %v1693 = vrot.slane %v1691, 6
    %v1694 = vshrl.u32 %v607, 16
    %v1696 = vrot.slane %v1694, 6
    %v1697 = vshrl.u32 %v608, 16
    %v1699 = vrot.slane %v1697, 6
    %v1700 = vshrl.u32 %v609, 16
    %v1702 = vrot.slane %v1700, 6
    %v1703 = vshrl.u32 %v610, 16
    %v1705 = vrot.slane %v1703, 6
    %v1706 = vshrl.u32 %v611, 16
    %v1708 = vrot.slane %v1706, 6
    %v1709 = vshrl.u32 %v612, 16
    %v1711 = vrot.slane %v1709, 6
    %v1712 = vshrl.u32 %v613, 16
    %v1714 = vrot.slane %v1712, 6
    %v1715 = vshrl.u32 %v614, 16
    %v1717 = vrot.slane %v1715, 6
    %v1750 = vrot.slane %v1622, 7
    %v1751 = vrot.slane %v1625, 7
    %v1752 = vrot.slane %v1628, 7
    %v1753 = vrot.slane %v1631, 7
    %v1754 = vrot.slane %v1634, 7
    %v1755 = vrot.slane %v1637, 7
    %v1756 = vrot.slane %v1640, 7
    %v1757 = vrot.slane %v1643, 7
    %v1758 = vrot.slane %v1646, 7
    %v1759 = vrot.slane %v1649, 7
    %v1760 = vrot.slane %v1652, 7
    %v1761 = vrot.slane %v1655, 7
    %v1762 = vrot.slane %v1658, 7
    %v1763 = vrot.slane %v1661, 7
    %v1764 = vrot.slane %v1664, 7
    %v1765 = vrot.slane %v1667, 7
    %v1766 = vrot.slane %v1670, 7
    %v1767 = vrot.slane %v1673, 7
    %v1768 = vrot.slane %v1676, 7
    %v1769 = vrot.slane %v1679, 7
    %v1770 = vrot.slane %v1682, 7
    %v1771 = vrot.slane %v1685, 7
    %v1772 = vrot.slane %v1688, 7
    %v1773 = vrot.slane %v1691, 7
    %v1774 = vrot.slane %v1694, 7
    %v1775 = vrot.slane %v1697, 7
    %v1776 = vrot.slane %v1700, 7
    %v1777 = vrot.slane %v1703, 7
    %v1778 = vrot.slane %v1706, 7
    %v1779 = vrot.slane %v1709, 7
    %v1780 = vrot.slane %v1712, 7
    %v1781 = vrot.slane %v1715, 7
    %v1782 = vsel %vm873, %v1398, %v423
    %v1783 = vsel %vm873, %v1400, %v424
    %v1784 = vsel %vm873, %v1402, %v425
    %v1785 = vsel %vm873, %v1404, %v426
    %v1786 = vsel %vm873, %v1406, %v427
    %v1787 = vsel %vm873, %v1408, %v428
    %v1788 = vsel %vm873, %v1410, %v429
    %v1789 = vsel %vm873, %v1412, %v430
    %v1790 = vsel %vm873, %v1414, %v431
    %v1791 = vsel %vm873, %v1416, %v432
    %v1792 = vsel %vm873, %v1418, %v433
    %v1793 = vsel %vm873, %v1420, %v434
    %v1794 = vsel %vm873, %v1422, %v435
    %v1795 = vsel %vm873, %v1424, %v436
    %v1796 = vsel %vm873, %v1426, %v437
    %v1797 = vsel %vm873, %v1428, %v438
    %v1798 = vsel %vm873, %v1430, %v439
    %v1799 = vsel %vm873, %v1432, %v440
    %v1800 = vsel %vm873, %v1434, %v441
    %v1801 = vsel %vm873, %v1436, %v442
    %v1802 = vsel %vm873, %v1438, %v443
    %v1803 = vsel %vm873, %v1440, %v444
    %v1804 = vsel %vm873, %v1442, %v445
    %v1805 = vsel %vm873, %v1444, %v446
    %v1806 = vsel %vm873, %v1446, %v447
    %v1807 = vsel %vm873, %v1448, %v448
    %v1808 = vsel %vm873, %v1450, %v449
    %v1809 = vsel %vm873, %v1452, %v450
    %v1810 = vsel %vm873, %v1454, %v451
    %v1811 = vsel %vm873, %v1456, %v452
    %v1812 = vsel %vm873, %v1458, %v453
    %v1813 = vsel %vm873, %v1460, %v454
    %v1816 = vsel %vm906, %v1782, %v1526
    %v1820 = vsel %vm906, %v1783, %v1527
    %v1824 = vsel %vm906, %v1784, %v1528
    %v1828 = vsel %vm906, %v1785, %v1529
    %v1832 = vsel %vm906, %v1786, %v1530
    %v1836 = vsel %vm906, %v1787, %v1531
    %v1840 = vsel %vm906, %v1788, %v1532
    %v1844 = vsel %vm906, %v1789, %v1533
    %v1848 = vsel %vm906, %v1790, %v1534
    %v1852 = vsel %vm906, %v1791, %v1535
    %v1856 = vsel %vm906, %v1792, %v1536
    %v1860 = vsel %vm906, %v1793, %v1537
    %v1864 = vsel %vm906, %v1794, %v1538
    %v1868 = vsel %vm906, %v1795, %v1539
    %v1872 = vsel %vm906, %v1796, %v1540
    %v1876 = vsel %vm906, %v1797, %v1541
    %v1880 = vsel %vm906, %v1798, %v1542
    %v1884 = vsel %vm906, %v1799, %v1543
    %v1888 = vsel %vm906, %v1800, %v1544
    %v1892 = vsel %vm906, %v1801, %v1545
    %v1896 = vsel %vm906, %v1802, %v1546
    %v1900 = vsel %vm906, %v1803, %v1547
    %v1904 = vsel %vm906, %v1804, %v1548
    %v1908 = vsel %vm906, %v1805, %v1549
    %v1912 = vsel %vm906, %v1806, %v1550
    %v1916 = vsel %vm906, %v1807, %v1551
    %v1920 = vsel %vm906, %v1808, %v1552
    %v1924 = vsel %vm906, %v1809, %v1553
    %v1928 = vsel %vm906, %v1810, %v1554
    %v1932 = vsel %vm906, %v1811, %v1555
    %v1936 = vsel %vm906, %v1812, %v1556
    %v1940 = vsel %vm906, %v1813, %v1557
    %v1942 = vsel %vm1037, %v1816, %v1558
    %v1943 = vsel %vm1037, %v1820, %v1559
    %v1944 = vsel %vm1037, %v1824, %v1560
    %v1945 = vsel %vm1037, %v1828, %v1561
    %v1946 = vsel %vm1037, %v1832, %v1562
    %v1947 = vsel %vm1037, %v1836, %v1563
    %v1948 = vsel %vm1037, %v1840, %v1564
    %v1949 = vsel %vm1037, %v1844, %v1565
    %v1950 = vsel %vm1037, %v1848, %v1566
    %v1951 = vsel %vm1037, %v1852, %v1567
    %v1952 = vsel %vm1037, %v1856, %v1568
    %v1953 = vsel %vm1037, %v1860, %v1569
    %v1954 = vsel %vm1037, %v1864, %v1570
    %v1955 = vsel %vm1037, %v1868, %v1571
    %v1956 = vsel %vm1037, %v1872, %v1572
    %v1957 = vsel %vm1037, %v1876, %v1573
    %v1958 = vsel %vm1037, %v1880, %v1574
    %v1959 = vsel %vm1037, %v1884, %v1575
    %v1960 = vsel %vm1037, %v1888, %v1576
    %v1961 = vsel %vm1037, %v1892, %v1577
    %v1962 = vsel %vm1037, %v1896, %v1578
    %v1963 = vsel %vm1037, %v1900, %v1579
    %v1964 = vsel %vm1037, %v1904, %v1580
    %v1965 = vsel %vm1037, %v1908, %v1581
    %v1966 = vsel %vm1037, %v1912, %v1582
    %v1967 = vsel %vm1037, %v1916, %v1583
    %v1968 = vsel %vm1037, %v1920, %v1584
    %v1969 = vsel %vm1037, %v1924, %v1585
    %v1970 = vsel %vm1037, %v1928, %v1586
    %v1971 = vsel %vm1037, %v1932, %v1587
    %v1972 = vsel %vm1037, %v1936, %v1588
    %v1973 = vsel %vm1037, %v1940, %v1589
    %v1976 = vsel %vm1070, %v1942, %v1624
    %v1980 = vsel %vm1070, %v1943, %v1627
    %v1984 = vsel %vm1070, %v1944, %v1630
    %v1988 = vsel %vm1070, %v1945, %v1633
    %v1992 = vsel %vm1070, %v1946, %v1636
    %v1996 = vsel %vm1070, %v1947, %v1639
    %v2000 = vsel %vm1070, %v1948, %v1642
    %v2004 = vsel %vm1070, %v1949, %v1645
    %v2008 = vsel %vm1070, %v1950, %v1648
    %v2012 = vsel %vm1070, %v1951, %v1651
    %v2016 = vsel %vm1070, %v1952, %v1654
    %v2020 = vsel %vm1070, %v1953, %v1657
    %v2024 = vsel %vm1070, %v1954, %v1660
    %v2028 = vsel %vm1070, %v1955, %v1663
    %v2032 = vsel %vm1070, %v1956, %v1666
    %v2036 = vsel %vm1070, %v1957, %v1669
    %v2040 = vsel %vm1070, %v1958, %v1672
    %v2044 = vsel %vm1070, %v1959, %v1675
    %v2048 = vsel %vm1070, %v1960, %v1678
    %v2052 = vsel %vm1070, %v1961, %v1681
    %v2056 = vsel %vm1070, %v1962, %v1684
    %v2060 = vsel %vm1070, %v1963, %v1687
    %v2064 = vsel %vm1070, %v1964, %v1690
    %v2068 = vsel %vm1070, %v1965, %v1693
    %v2072 = vsel %vm1070, %v1966, %v1696
    %v2076 = vsel %vm1070, %v1967, %v1699
    %v2080 = vsel %vm1070, %v1968, %v1702
    %v2084 = vsel %vm1070, %v1969, %v1705
    %v2088 = vsel %vm1070, %v1970, %v1708
    %v2092 = vsel %vm1070, %v1971, %v1711
    %v2096 = vsel %vm1070, %v1972, %v1714
    %v2100 = vsel %vm1070, %v1973, %v1717
    %v2102 = vsel %vm1201, %v1976, %v807
    %v2103 = vsel %vm1201, %v1980, %v808
    %v2104 = vsel %vm1201, %v1984, %v809
    %v2105 = vsel %vm1201, %v1988, %v810
    %v2106 = vsel %vm1201, %v1992, %v811
    %v2107 = vsel %vm1201, %v1996, %v812
    %v2108 = vsel %vm1201, %v2000, %v813
    %v2109 = vsel %vm1201, %v2004, %v814
    %v2110 = vsel %vm1201, %v2008, %v815
    %v2111 = vsel %vm1201, %v2012, %v816
    %v2112 = vsel %vm1201, %v2016, %v817
    %v2113 = vsel %vm1201, %v2020, %v818
    %v2114 = vsel %vm1201, %v2024, %v819
    %v2115 = vsel %vm1201, %v2028, %v820
    %v2116 = vsel %vm1201, %v2032, %v821
    %v2117 = vsel %vm1201, %v2036, %v822
    %v2118 = vsel %vm1201, %v2040, %v823
    %v2119 = vsel %vm1201, %v2044, %v824
    %v2120 = vsel %vm1201, %v2048, %v825
    %v2121 = vsel %vm1201, %v2052, %v826
    %v2122 = vsel %vm1201, %v2056, %v827
    %v2123 = vsel %vm1201, %v2060, %v828
    %v2124 = vsel %vm1201, %v2064, %v829
    %v2125 = vsel %vm1201, %v2068, %v830
    %v2126 = vsel %vm1201, %v2072, %v831
    %v2127 = vsel %vm1201, %v2076, %v832
    %v2128 = vsel %vm1201, %v2080, %v833
    %v2129 = vsel %vm1201, %v2084, %v834
    %v2130 = vsel %vm1201, %v2088, %v835
    %v2131 = vsel %vm1201, %v2092, %v836
    %v2132 = vsel %vm1201, %v2096, %v837
    %v2133 = vsel %vm1201, %v2100, %v838
    %v2136 = vsel %vm1234, %v2102, %v1750
    %v2140 = vsel %vm1234, %v2103, %v1751
    %v2144 = vsel %vm1234, %v2104, %v1752
    %v2148 = vsel %vm1234, %v2105, %v1753
    %v2152 = vsel %vm1234, %v2106, %v1754
    %v2156 = vsel %vm1234, %v2107, %v1755
    %v2160 = vsel %vm1234, %v2108, %v1756
    %v2164 = vsel %vm1234, %v2109, %v1757
    %v2168 = vsel %vm1234, %v2110, %v1758
    %v2172 = vsel %vm1234, %v2111, %v1759
    %v2176 = vsel %vm1234, %v2112, %v1760
    %v2180 = vsel %vm1234, %v2113, %v1761
    %v2184 = vsel %vm1234, %v2114, %v1762
    %v2188 = vsel %vm1234, %v2115, %v1763
    %v2192 = vsel %vm1234, %v2116, %v1764
    %v2196 = vsel %vm1234, %v2117, %v1765
    %v2200 = vsel %vm1234, %v2118, %v1766
    %v2204 = vsel %vm1234, %v2119, %v1767
    %v2208 = vsel %vm1234, %v2120, %v1768
    %v2212 = vsel %vm1234, %v2121, %v1769
    %v2216 = vsel %vm1234, %v2122, %v1770
    %v2220 = vsel %vm1234, %v2123, %v1771
    %v2224 = vsel %vm1234, %v2124, %v1772
    %v2228 = vsel %vm1234, %v2125, %v1773
    %v2232 = vsel %vm1234, %v2126, %v1774
    %v2236 = vsel %vm1234, %v2127, %v1775
    %v2240 = vsel %vm1234, %v2128, %v1776
    %v2244 = vsel %vm1234, %v2129, %v1777
    %v2248 = vsel %vm1234, %v2130, %v1778
    %v2252 = vsel %vm1234, %v2131, %v1779
    %v2256 = vsel %vm1234, %v2132, %v1780
    %v2260 = vsel %vm1234, %v2133, %v1781
    %v2262 = vsel %vm1365, %v2136, %v99
    %v2263 = vsel %vm1365, %v2140, %v101
    %v2264 = vsel %vm1365, %v2144, %v103
    %v2265 = vsel %vm1365, %v2148, %v105
    %v2266 = vsel %vm1365, %v2152, %v107
    %v2267 = vsel %vm1365, %v2156, %v109
    %v2268 = vsel %vm1365, %v2160, %v111
    %v2269 = vsel %vm1365, %v2164, %v113
    %v2270 = vsel %vm1365, %v2168, %v115
    %v2271 = vsel %vm1365, %v2172, %v117
    %v2272 = vsel %vm1365, %v2176, %v119
    %v2273 = vsel %vm1365, %v2180, %v121
    %v2274 = vsel %vm1365, %v2184, %v123
    %v2275 = vsel %vm1365, %v2188, %v125
    %v2276 = vsel %vm1365, %v2192, %v127
    %v2277 = vsel %vm1365, %v2196, %v129
    %v2278 = vsel %vm1365, %v2200, %v131
    %v2279 = vsel %vm1365, %v2204, %v133
    %v2280 = vsel %vm1365, %v2208, %v135
    %v2281 = vsel %vm1365, %v2212, %v137
    %v2282 = vsel %vm1365, %v2216, %v139
    %v2283 = vsel %vm1365, %v2220, %v141
    %v2284 = vsel %vm1365, %v2224, %v143
    %v2285 = vsel %vm1365, %v2228, %v145
    %v2286 = vsel %vm1365, %v2232, %v147
    %v2287 = vsel %vm1365, %v2236, %v149
    %v2288 = vsel %vm1365, %v2240, %v151
    %v2289 = vsel %vm1365, %v2244, %v153
    %v2290 = vsel %vm1365, %v2248, %v155
    %v2291 = vsel %vm1365, %v2252, %v157
    %v2292 = vsel %vm1365, %v2256, %v159
    %v2293 = vsel %vm1365, %v2260, %v161
    %v2295 = vshrl.u32 %v2263, 16
    %v2297 = vrot.slane %v2295, 7
    %v2298 = vshll.u32 %v2263, 16
    %v2300 = vor.u32 %v2297, %v2298
    %v2302 = vshrl.u32 %v2265, 16
    %v2304 = vrot.slane %v2302, 7
    %v2305 = vshll.u32 %v2265, 16
    %v2307 = vor.u32 %v2304, %v2305
    %v2309 = vshrl.u32 %v2267, 16
    %v2311 = vrot.slane %v2309, 7
    %v2312 = vshll.u32 %v2267, 16
    %v2314 = vor.u32 %v2311, %v2312
    %v2316 = vshrl.u32 %v2269, 16
    %v2318 = vrot.slane %v2316, 7
    %v2319 = vshll.u32 %v2269, 16
    %v2321 = vor.u32 %v2318, %v2319
    %v2323 = vshrl.u32 %v2271, 16
    %v2325 = vrot.slane %v2323, 7
    %v2326 = vshll.u32 %v2271, 16
    %v2328 = vor.u32 %v2325, %v2326
    %v2330 = vshrl.u32 %v2273, 16
    %v2332 = vrot.slane %v2330, 7
    %v2333 = vshll.u32 %v2273, 16
    %v2335 = vor.u32 %v2332, %v2333
    %v2337 = vshrl.u32 %v2275, 16
    %v2339 = vrot.slane %v2337, 7
    %v2340 = vshll.u32 %v2275, 16
    %v2342 = vor.u32 %v2339, %v2340
    %v2344 = vshrl.u32 %v2277, 16
    %v2346 = vrot.slane %v2344, 7
    %v2347 = vshll.u32 %v2277, 16
    %v2349 = vor.u32 %v2346, %v2347
    %v2351 = vshrl.u32 %v2279, 16
    %v2353 = vrot.slane %v2351, 7
    %v2354 = vshll.u32 %v2279, 16
    %v2356 = vor.u32 %v2353, %v2354
    %v2358 = vshrl.u32 %v2281, 16
    %v2360 = vrot.slane %v2358, 7
    %v2361 = vshll.u32 %v2281, 16
    %v2363 = vor.u32 %v2360, %v2361
    %v2365 = vshrl.u32 %v2283, 16
    %v2367 = vrot.slane %v2365, 7
    %v2368 = vshll.u32 %v2283, 16
    %v2370 = vor.u32 %v2367, %v2368
    %v2372 = vshrl.u32 %v2285, 16
    %v2374 = vrot.slane %v2372, 7
    %v2375 = vshll.u32 %v2285, 16
    %v2377 = vor.u32 %v2374, %v2375
    %v2379 = vshrl.u32 %v2287, 16
    %v2381 = vrot.slane %v2379, 7
    %v2382 = vshll.u32 %v2287, 16
    %v2384 = vor.u32 %v2381, %v2382
    %v2386 = vshrl.u32 %v2289, 16
    %v2388 = vrot.slane %v2386, 7
    %v2389 = vshll.u32 %v2289, 16
    %v2391 = vor.u32 %v2388, %v2389
    %v2393 = vshrl.u32 %v2291, 16
    %v2395 = vrot.slane %v2393, 7
    %v2396 = vshll.u32 %v2291, 16
    %v2398 = vor.u32 %v2395, %v2396
    %v2400 = vshrl.u32 %v2293, 16
    %v2402 = vrot.slane %v2400, 7
    %v2403 = vshll.u32 %v2293, 16
    %v2405 = vor.u32 %v2402, %v2403
    %v2422 = vsel %vm873, 0, %v2300
    %v2423 = vsel %vm873, 0, %v2307
    %v2424 = vsel %vm873, 0, %v2314
    %v2425 = vsel %vm873, 0, %v2321
    %v2426 = vsel %vm873, 0, %v2328
    %v2427 = vsel %vm873, 0, %v2335
    %v2428 = vsel %vm873, 0, %v2342
    %v2429 = vsel %vm873, 0, %v2349
    %v2430 = vsel %vm873, 0, %v2356
    %v2431 = vsel %vm873, 0, %v2363
    %v2432 = vsel %vm873, 0, %v2370
    %v2433 = vsel %vm873, 0, %v2377
    %v2434 = vsel %vm873, 0, %v2384
    %v2435 = vsel %vm873, 0, %v2391
    %v2436 = vsel %vm873, 0, %v2398
    %v2437 = vsel %vm873, 0, %v2405
    %v2439 = vshrl.u32 %v2262, 16
    %v2441 = vrot.slane %v2439, 7
    %v2442 = vshll.u32 %v2262, 16
    %v2444 = vor.u32 %v2441, %v2442
    %v2446 = vshrl.u32 %v2264, 16
    %v2448 = vrot.slane %v2446, 7
    %v2449 = vshll.u32 %v2264, 16
    %v2451 = vor.u32 %v2448, %v2449
    %v2453 = vshrl.u32 %v2266, 16
    %v2455 = vrot.slane %v2453, 7
    %v2456 = vshll.u32 %v2266, 16
    %v2458 = vor.u32 %v2455, %v2456
    %v2460 = vshrl.u32 %v2268, 16
    %v2462 = vrot.slane %v2460, 7
    %v2463 = vshll.u32 %v2268, 16
    %v2465 = vor.u32 %v2462, %v2463
    %v2467 = vshrl.u32 %v2270, 16
    %v2469 = vrot.slane %v2467, 7
    %v2470 = vshll.u32 %v2270, 16
    %v2472 = vor.u32 %v2469, %v2470
    %v2474 = vshrl.u32 %v2272, 16
    %v2476 = vrot.slane %v2474, 7
    %v2477 = vshll.u32 %v2272, 16
    %v2479 = vor.u32 %v2476, %v2477
    %v2481 = vshrl.u32 %v2274, 16
    %v2483 = vrot.slane %v2481, 7
    %v2484 = vshll.u32 %v2274, 16
    %v2486 = vor.u32 %v2483, %v2484
    %v2488 = vshrl.u32 %v2276, 16
    %v2490 = vrot.slane %v2488, 7
    %v2491 = vshll.u32 %v2276, 16
    %v2493 = vor.u32 %v2490, %v2491
    %v2495 = vshrl.u32 %v2278, 16
    %v2497 = vrot.slane %v2495, 7
    %v2498 = vshll.u32 %v2278, 16
    %v2500 = vor.u32 %v2497, %v2498
    %v2502 = vshrl.u32 %v2280, 16
    %v2504 = vrot.slane %v2502, 7
    %v2505 = vshll.u32 %v2280, 16
    %v2507 = vor.u32 %v2504, %v2505
    %v2509 = vshrl.u32 %v2282, 16
    %v2511 = vrot.slane %v2509, 7
    %v2512 = vshll.u32 %v2282, 16
    %v2514 = vor.u32 %v2511, %v2512
    %v2516 = vshrl.u32 %v2284, 16
    %v2518 = vrot.slane %v2516, 7
    %v2519 = vshll.u32 %v2284, 16
    %v2521 = vor.u32 %v2518, %v2519
    %v2523 = vshrl.u32 %v2286, 16
    %v2525 = vrot.slane %v2523, 7
    %v2526 = vshll.u32 %v2286, 16
    %v2528 = vor.u32 %v2525, %v2526
    %v2530 = vshrl.u32 %v2288, 16
    %v2532 = vrot.slane %v2530, 7
    %v2533 = vshll.u32 %v2288, 16
    %v2535 = vor.u32 %v2532, %v2533
    %v2537 = vshrl.u32 %v2290, 16
    %v2539 = vrot.slane %v2537, 7
    %v2540 = vshll.u32 %v2290, 16
    %v2542 = vor.u32 %v2539, %v2540
    %v2544 = vshrl.u32 %v2292, 16
    %v2546 = vrot.slane %v2544, 7
    %v2547 = vshll.u32 %v2292, 16
    %v2549 = vor.u32 %v2546, %v2547
    %v2566 = vsel %vm873, 0, %v2444
    %v2567 = vsel %vm873, 0, %v2451
    %v2568 = vsel %vm873, 0, %v2458
    %v2569 = vsel %vm873, 0, %v2465
    %v2570 = vsel %vm873, 0, %v2472
    %v2571 = vsel %vm873, 0, %v2479
    %v2572 = vsel %vm873, 0, %v2486
    %v2573 = vsel %vm873, 0, %v2493
    %v2574 = vsel %vm873, 0, %v2500
    %v2575 = vsel %vm873, 0, %v2507
    %v2576 = vsel %vm873, 0, %v2514
    %v2577 = vsel %vm873, 0, %v2521
    %v2578 = vsel %vm873, 0, %v2528
    %v2579 = vsel %vm873, 0, %v2535
    %v2580 = vsel %vm873, 0, %v2542
    %v2581 = vsel %vm873, 0, %v2549
    %2597 = vrot.lane.b32.xlu0 0, 3
    %v2598 = vpop.permute.xlu0 %2597
    %2599 = vrot.lane.b32.xlu0 %v1367, 3
    %v2600 = vpop.permute.xlu0 %2599
    %2601 = vrot.lane.b32.xlu0 %v1369, 3
    %v2602 = vpop.permute.xlu0 %2601
    %2603 = vrot.lane.b32.xlu0 %v1371, 3
    %v2604 = vpop.permute.xlu0 %2603
    %2605 = vrot.lane.b32.xlu0 %v1373, 3
    %v2606 = vpop.permute.xlu0 %2605
    %2607 = vrot.lane.b32.xlu0 %v1375, 3
    %v2608 = vpop.permute.xlu0 %2607
    %2609 = vrot.lane.b32.xlu0 %v1377, 3
    %v2610 = vpop.permute.xlu0 %2609
    %2611 = vrot.lane.b32.xlu0 %v1379, 3
    %v2612 = vpop.permute.xlu0 %2611
    %2613 = vrot.lane.b32.xlu0 %v1383, 3
    %v2614 = vpop.permute.xlu0 %2613
    %2615 = vrot.lane.b32.xlu0 %v1385, 3
    %v2616 = vpop.permute.xlu0 %2615
    %2617 = vrot.lane.b32.xlu0 %v1387, 3
    %v2618 = vpop.permute.xlu0 %2617
    %2619 = vrot.lane.b32.xlu0 %v1389, 3
    %v2620 = vpop.permute.xlu0 %2619
    %2621 = vrot.lane.b32.xlu0 %v1391, 3
    %v2622 = vpop.permute.xlu0 %2621
    %2623 = vrot.lane.b32.xlu0 %v1393, 3
    %v2624 = vpop.permute.xlu0 %2623
    %2625 = vrot.lane.b32.xlu0 %v1395, 3
    %v2626 = vpop.permute.xlu0 %2625
    %v2628 = vshrl.u32 0, 16
    %v2630 = vshll.u32 0, 16
    %v2632 = vrot.slane %v2630, 1
    %v2633 = vor.u32 %v2628, %v2632
    %v2635 = vshrl.u32 %v2422, 16
    %v2637 = vshll.u32 %v2422, 16
    %v2639 = vrot.slane %v2637, 1
    %v2640 = vor.u32 %v2635, %v2639
    %v2642 = vshrl.u32 %v2423, 16
    %v2644 = vshll.u32 %v2423, 16
    %v2646 = vrot.slane %v2644, 1
    %v2647 = vor.u32 %v2642, %v2646
    %v2649 = vshrl.u32 %v2424, 16
    %v2651 = vshll.u32 %v2424, 16
    %v2653 = vrot.slane %v2651, 1
    %v2654 = vor.u32 %v2649, %v2653
    %v2656 = vshrl.u32 %v2425, 16
    %v2658 = vshll.u32 %v2425, 16
    %v2660 = vrot.slane %v2658, 1
    %v2661 = vor.u32 %v2656, %v2660
    %v2663 = vshrl.u32 %v2426, 16
    %v2665 = vshll.u32 %v2426, 16
    %v2667 = vrot.slane %v2665, 1
    %v2668 = vor.u32 %v2663, %v2667
    %v2670 = vshrl.u32 %v2427, 16
    %v2672 = vshll.u32 %v2427, 16
    %v2674 = vrot.slane %v2672, 1
    %v2675 = vor.u32 %v2670, %v2674
    %v2677 = vshrl.u32 %v2428, 16
    %v2679 = vshll.u32 %v2428, 16
    %v2681 = vrot.slane %v2679, 1
    %v2682 = vor.u32 %v2677, %v2681
    %v2684 = vshrl.u32 %v2430, 16
    %v2686 = vshll.u32 %v2430, 16
    %v2688 = vrot.slane %v2686, 1
    %v2689 = vor.u32 %v2684, %v2688
    %v2691 = vshrl.u32 %v2431, 16
    %v2693 = vshll.u32 %v2431, 16
    %v2695 = vrot.slane %v2693, 1
    %v2696 = vor.u32 %v2691, %v2695
    %v2698 = vshrl.u32 %v2432, 16
    %v2700 = vshll.u32 %v2432, 16
    %v2702 = vrot.slane %v2700, 1
    %v2703 = vor.u32 %v2698, %v2702
    %v2705 = vshrl.u32 %v2433, 16
    %v2707 = vshll.u32 %v2433, 16
    %v2709 = vrot.slane %v2707, 1
    %v2710 = vor.u32 %v2705, %v2709
    %v2712 = vshrl.u32 %v2434, 16
    %v2714 = vshll.u32 %v2434, 16
    %v2716 = vrot.slane %v2714, 1
    %v2717 = vor.u32 %v2712, %v2716
    %v2719 = vshrl.u32 %v2435, 16
    %v2721 = vshll.u32 %v2435, 16
    %v2723 = vrot.slane %v2721, 1
    %v2724 = vor.u32 %v2719, %v2723
    %v2726 = vshrl.u32 %v2436, 16
    %v2728 = vshll.u32 %v2436, 16
    %v2730 = vrot.slane %v2728, 1
    %v2731 = vor.u32 %v2726, %v2730
    %2732 = vrot.lane.b32.xlu0 %v2633, 6
    %v2733 = vpop.permute.xlu0 %2732
    %2734 = vrot.lane.b32.xlu0 %v2640, 6
    %v2735 = vpop.permute.xlu0 %2734
    %2736 = vrot.lane.b32.xlu0 %v2647, 6
    %v2737 = vpop.permute.xlu0 %2736
    %2738 = vrot.lane.b32.xlu0 %v2654, 6
    %v2739 = vpop.permute.xlu0 %2738
    %2740 = vrot.lane.b32.xlu0 %v2661, 6
    %v2741 = vpop.permute.xlu0 %2740
    %2742 = vrot.lane.b32.xlu0 %v2668, 6
    %v2743 = vpop.permute.xlu0 %2742
    %2744 = vrot.lane.b32.xlu0 %v2675, 6
    %v2745 = vpop.permute.xlu0 %2744
    %2746 = vrot.lane.b32.xlu0 %v2682, 6
    %v2747 = vpop.permute.xlu0 %2746
    %2748 = vrot.lane.b32.xlu0 %v2689, 6
    %v2749 = vpop.permute.xlu0 %2748
    %2750 = vrot.lane.b32.xlu0 %v2696, 6
    %v2751 = vpop.permute.xlu0 %2750
    %2752 = vrot.lane.b32.xlu0 %v2703, 6
    %v2753 = vpop.permute.xlu0 %2752
    %2754 = vrot.lane.b32.xlu0 %v2710, 6
    %v2755 = vpop.permute.xlu0 %2754
    %2756 = vrot.lane.b32.xlu0 %v2717, 6
    %v2757 = vpop.permute.xlu0 %2756
    %2758 = vrot.lane.b32.xlu0 %v2724, 6
    %v2759 = vpop.permute.xlu0 %2758
    %2760 = vrot.lane.b32.xlu0 %v2731, 6
    %v2761 = vpop.permute.xlu0 %2760
    %2778 = vrot.lane.b32.xlu0 %v2566, 9
    %v2779 = vpop.permute.xlu0 %2778
    %2780 = vrot.lane.b32.xlu0 %v2567, 9
    %v2781 = vpop.permute.xlu0 %2780
    %2782 = vrot.lane.b32.xlu0 %v2568, 9
    %v2783 = vpop.permute.xlu0 %2782
    %2784 = vrot.lane.b32.xlu0 %v2569, 9
    %v2785 = vpop.permute.xlu0 %2784
    %2786 = vrot.lane.b32.xlu0 %v2570, 9
    %v2787 = vpop.permute.xlu0 %2786
    %2788 = vrot.lane.b32.xlu0 %v2571, 9
    %v2789 = vpop.permute.xlu0 %2788
    %2790 = vrot.lane.b32.xlu0 %v2572, 9
    %v2791 = vpop.permute.xlu0 %2790
    %2792 = vrot.lane.b32.xlu0 %v2573, 9
    %v2793 = vpop.permute.xlu0 %2792
    %2794 = vrot.lane.b32.xlu0 %v2574, 9
    %v2795 = vpop.permute.xlu0 %2794
    %2796 = vrot.lane.b32.xlu0 %v2575, 9
    %v2797 = vpop.permute.xlu0 %2796
    %2798 = vrot.lane.b32.xlu0 %v2576, 9
    %v2799 = vpop.permute.xlu0 %2798
    %2800 = vrot.lane.b32.xlu0 %v2577, 9
    %v2801 = vpop.permute.xlu0 %2800
    %2802 = vrot.lane.b32.xlu0 %v2578, 9
    %v2803 = vpop.permute.xlu0 %2802
    %2804 = vrot.lane.b32.xlu0 %v2579, 9
    %v2805 = vpop.permute.xlu0 %2804
    %2806 = vrot.lane.b32.xlu0 %v2580, 9
    %v2807 = vpop.permute.xlu0 %2806
    %2808 = vrot.lane.b32.xlu0 %v2581, 9
    %v2809 = vpop.permute.xlu0 %2808
    %2826 = vrot.lane.b32.xlu0 %v1366, 12
    %v2827 = vpop.permute.xlu0 %2826
    %2828 = vrot.lane.b32.xlu0 %v1368, 12
    %v2829 = vpop.permute.xlu0 %2828
    %2830 = vrot.lane.b32.xlu0 %v1370, 12
    %v2831 = vpop.permute.xlu0 %2830
    %2832 = vrot.lane.b32.xlu0 %v1372, 12
    %v2833 = vpop.permute.xlu0 %2832
    %2834 = vrot.lane.b32.xlu0 %v1374, 12
    %v2835 = vpop.permute.xlu0 %2834
    %2836 = vrot.lane.b32.xlu0 %v1376, 12
    %v2837 = vpop.permute.xlu0 %2836
    %2838 = vrot.lane.b32.xlu0 %v1378, 12
    %v2839 = vpop.permute.xlu0 %2838
    %2840 = vrot.lane.b32.xlu0 %v1380, 12
    %v2841 = vpop.permute.xlu0 %2840
    %2842 = vrot.lane.b32.xlu0 %v1382, 12
    %v2843 = vpop.permute.xlu0 %2842
    %2844 = vrot.lane.b32.xlu0 %v1384, 12
    %v2845 = vpop.permute.xlu0 %2844
    %2846 = vrot.lane.b32.xlu0 %v1386, 12
    %v2847 = vpop.permute.xlu0 %2846
    %2848 = vrot.lane.b32.xlu0 %v1388, 12
    %v2849 = vpop.permute.xlu0 %2848
    %2850 = vrot.lane.b32.xlu0 %v1390, 12
    %v2851 = vpop.permute.xlu0 %2850
    %2852 = vrot.lane.b32.xlu0 %v1392, 12
    %v2853 = vpop.permute.xlu0 %2852
    %2854 = vrot.lane.b32.xlu0 %v1394, 12
    %v2855 = vpop.permute.xlu0 %2854
    %2856 = vrot.lane.b32.xlu0 %v1396, 12
    %v2857 = vpop.permute.xlu0 %2856
    %v2859 = vshrl.u32 %v2566, 16
    %v2861 = vshll.u32 %v2566, 16
    %v2863 = vrot.slane %v2861, 1
    %v2864 = vor.u32 %v2859, %v2863
    %v2866 = vshrl.u32 %v2567, 16
    %v2868 = vshll.u32 %v2567, 16
    %v2870 = vrot.slane %v2868, 1
    %v2871 = vor.u32 %v2866, %v2870
    %v2873 = vshrl.u32 %v2568, 16
    %v2875 = vshll.u32 %v2568, 16
    %v2877 = vrot.slane %v2875, 1
    %v2878 = vor.u32 %v2873, %v2877
    %v2880 = vshrl.u32 %v2569, 16
    %v2882 = vshll.u32 %v2569, 16
    %v2884 = vrot.slane %v2882, 1
    %v2885 = vor.u32 %v2880, %v2884
    %v2887 = vshrl.u32 %v2570, 16
    %v2889 = vshll.u32 %v2570, 16
    %v2891 = vrot.slane %v2889, 1
    %v2892 = vor.u32 %v2887, %v2891
    %v2894 = vshrl.u32 %v2571, 16
    %v2896 = vshll.u32 %v2571, 16
    %v2898 = vrot.slane %v2896, 1
    %v2899 = vor.u32 %v2894, %v2898
    %v2901 = vshrl.u32 %v2572, 16
    %v2903 = vshll.u32 %v2572, 16
    %v2905 = vrot.slane %v2903, 1
    %v2906 = vor.u32 %v2901, %v2905
    %v2908 = vshrl.u32 %v2573, 16
    %v2910 = vshll.u32 %v2573, 16
    %v2912 = vrot.slane %v2910, 1
    %v2913 = vor.u32 %v2908, %v2912
    %v2915 = vshrl.u32 %v2574, 16
    %v2917 = vshll.u32 %v2574, 16
    %v2919 = vrot.slane %v2917, 1
    %v2920 = vor.u32 %v2915, %v2919
    %v2922 = vshrl.u32 %v2575, 16
    %v2924 = vshll.u32 %v2575, 16
    %v2926 = vrot.slane %v2924, 1
    %v2927 = vor.u32 %v2922, %v2926
    %v2929 = vshrl.u32 %v2576, 16
    %v2931 = vshll.u32 %v2576, 16
    %v2933 = vrot.slane %v2931, 1
    %v2934 = vor.u32 %v2929, %v2933
    %v2936 = vshrl.u32 %v2577, 16
    %v2938 = vshll.u32 %v2577, 16
    %v2940 = vrot.slane %v2938, 1
    %v2941 = vor.u32 %v2936, %v2940
    %v2943 = vshrl.u32 %v2578, 16
    %v2945 = vshll.u32 %v2578, 16
    %v2947 = vrot.slane %v2945, 1
    %v2948 = vor.u32 %v2943, %v2947
    %v2950 = vshrl.u32 %v2579, 16
    %v2952 = vshll.u32 %v2579, 16
    %v2954 = vrot.slane %v2952, 1
    %v2955 = vor.u32 %v2950, %v2954
    %v2957 = vshrl.u32 %v2580, 16
    %v2959 = vshll.u32 %v2580, 16
    %v2961 = vrot.slane %v2959, 1
    %v2962 = vor.u32 %v2957, %v2961
    %v2964 = vshrl.u32 %v2581, 16
    %v2966 = vshll.u32 %v2581, 16
    %v2968 = vrot.slane %v2966, 1
    %v2969 = vor.u32 %v2964, %v2968
    %2970 = vrot.lane.b32.xlu0 %v2864, 15
    %v2971 = vpop.permute.xlu0 %2970
    %2972 = vrot.lane.b32.xlu0 %v2871, 15
    %v2973 = vpop.permute.xlu0 %2972
    %2974 = vrot.lane.b32.xlu0 %v2878, 15
    %v2975 = vpop.permute.xlu0 %2974
    %2976 = vrot.lane.b32.xlu0 %v2885, 15
    %v2977 = vpop.permute.xlu0 %2976
    %2978 = vrot.lane.b32.xlu0 %v2892, 15
    %v2979 = vpop.permute.xlu0 %2978
    %2980 = vrot.lane.b32.xlu0 %v2899, 15
    %v2981 = vpop.permute.xlu0 %2980
    %2982 = vrot.lane.b32.xlu0 %v2906, 15
    %v2983 = vpop.permute.xlu0 %2982
    %2984 = vrot.lane.b32.xlu0 %v2913, 15
    %v2985 = vpop.permute.xlu0 %2984
    %2986 = vrot.lane.b32.xlu0 %v2920, 15
    %v2987 = vpop.permute.xlu0 %2986
    %2988 = vrot.lane.b32.xlu0 %v2927, 15
    %v2989 = vpop.permute.xlu0 %2988
    %2990 = vrot.lane.b32.xlu0 %v2934, 15
    %v2991 = vpop.permute.xlu0 %2990
    %2992 = vrot.lane.b32.xlu0 %v2941, 15
    %v2993 = vpop.permute.xlu0 %2992
    %2994 = vrot.lane.b32.xlu0 %v2948, 15
    %v2995 = vpop.permute.xlu0 %2994
    %2996 = vrot.lane.b32.xlu0 %v2955, 15
    %v2997 = vpop.permute.xlu0 %2996
    %2998 = vrot.lane.b32.xlu0 %v2962, 15
    %v2999 = vpop.permute.xlu0 %2998
    %3000 = vrot.lane.b32.xlu0 %v2969, 15
    %v3001 = vpop.permute.xlu0 %3000
    %3018 = vrot.lane.b32.xlu0 %v2422, 18
    %v3019 = vpop.permute.xlu0 %3018
    %3020 = vrot.lane.b32.xlu0 %v2423, 18
    %v3021 = vpop.permute.xlu0 %3020
    %3022 = vrot.lane.b32.xlu0 %v2424, 18
    %v3023 = vpop.permute.xlu0 %3022
    %3024 = vrot.lane.b32.xlu0 %v2425, 18
    %v3025 = vpop.permute.xlu0 %3024
    %3026 = vrot.lane.b32.xlu0 %v2426, 18
    %v3027 = vpop.permute.xlu0 %3026
    %3028 = vrot.lane.b32.xlu0 %v2427, 18
    %v3029 = vpop.permute.xlu0 %3028
    %3030 = vrot.lane.b32.xlu0 %v2428, 18
    %v3031 = vpop.permute.xlu0 %3030
    %3032 = vrot.lane.b32.xlu0 %v2429, 18
    %v3033 = vpop.permute.xlu0 %3032
    %3034 = vrot.lane.b32.xlu0 %v2430, 18
    %v3035 = vpop.permute.xlu0 %3034
    %3036 = vrot.lane.b32.xlu0 %v2431, 18
    %v3037 = vpop.permute.xlu0 %3036
    %3038 = vrot.lane.b32.xlu0 %v2432, 18
    %v3039 = vpop.permute.xlu0 %3038
    %3040 = vrot.lane.b32.xlu0 %v2433, 18
    %v3041 = vpop.permute.xlu0 %3040
    %3042 = vrot.lane.b32.xlu0 %v2434, 18
    %v3043 = vpop.permute.xlu0 %3042
    %3044 = vrot.lane.b32.xlu0 %v2435, 18
    %v3045 = vpop.permute.xlu0 %3044
    %3046 = vrot.lane.b32.xlu0 %v2436, 18
    %v3047 = vpop.permute.xlu0 %3046
    %3048 = vrot.lane.b32.xlu0 %v2437, 18
    %v3049 = vpop.permute.xlu0 %3048
    %3052 = vrot.lane.b32.xlu0 %v1367, 21
    %v3053 = vpop.permute.xlu0 %3052
    %3054 = vrot.lane.b32.xlu0 %v1369, 21
    %v3055 = vpop.permute.xlu0 %3054
    %3056 = vrot.lane.b32.xlu0 %v1371, 21
    %v3057 = vpop.permute.xlu0 %3056
    %3058 = vrot.lane.b32.xlu0 %v1373, 21
    %v3059 = vpop.permute.xlu0 %3058
    %3060 = vrot.lane.b32.xlu0 %v1375, 21
    %v3061 = vpop.permute.xlu0 %3060
    %3062 = vrot.lane.b32.xlu0 %v1377, 21
    %v3063 = vpop.permute.xlu0 %3062
    %3064 = vrot.lane.b32.xlu0 %v1379, 21
    %v3065 = vpop.permute.xlu0 %3064
    %3066 = vrot.lane.b32.xlu0 %v1381, 21
    %v3067 = vpop.permute.xlu0 %3066
    %3068 = vrot.lane.b32.xlu0 %v1383, 21
    %v3069 = vpop.permute.xlu0 %3068
    %3070 = vrot.lane.b32.xlu0 %v1385, 21
    %v3071 = vpop.permute.xlu0 %3070
    %3072 = vrot.lane.b32.xlu0 %v1387, 21
    %v3073 = vpop.permute.xlu0 %3072
    %3074 = vrot.lane.b32.xlu0 %v1389, 21
    %v3075 = vpop.permute.xlu0 %3074
    %3076 = vrot.lane.b32.xlu0 %v1391, 21
    %v3077 = vpop.permute.xlu0 %3076
    %3078 = vrot.lane.b32.xlu0 %v1393, 21
    %v3079 = vpop.permute.xlu0 %3078
    %3080 = vrot.lane.b32.xlu0 %v1395, 21
    %v3081 = vpop.permute.xlu0 %3080
    %3082 = vrot.lane.b32.xlu0 %v1397, 21
    %v3083 = vpop.permute.xlu0 %3082
    %v3085 = vshrl.u32 %v2429, 16
    %v3087 = vshll.u32 %v2429, 16
    %v3089 = vrot.slane %v3087, 1
    %v3090 = vor.u32 %v3085, %v3089
    %v3092 = vshrl.u32 %v2437, 16
    %v3094 = vshll.u32 %v2437, 16
    %v3096 = vrot.slane %v3094, 1
    %v3097 = vor.u32 %v3092, %v3096
    %3098 = vrot.lane.b32.xlu0 %v2640, 24
    %v3099 = vpop.permute.xlu0 %3098
    %3100 = vrot.lane.b32.xlu0 %v2647, 24
    %v3101 = vpop.permute.xlu0 %3100
    %3102 = vrot.lane.b32.xlu0 %v2654, 24
    %v3103 = vpop.permute.xlu0 %3102
    %3104 = vrot.lane.b32.xlu0 %v2661, 24
    %v3105 = vpop.permute.xlu0 %3104
    %3106 = vrot.lane.b32.xlu0 %v2668, 24
    %v3107 = vpop.permute.xlu0 %3106
    %3108 = vrot.lane.b32.xlu0 %v2675, 24
    %v3109 = vpop.permute.xlu0 %3108
    %3110 = vrot.lane.b32.xlu0 %v2682, 24
    %v3111 = vpop.permute.xlu0 %3110
    %3112 = vrot.lane.b32.xlu0 %v3090, 24
    %v3113 = vpop.permute.xlu0 %3112
    %3114 = vrot.lane.b32.xlu0 %v2689, 24
    %v3115 = vpop.permute.xlu0 %3114
    %3116 = vrot.lane.b32.xlu0 %v2696, 24
    %v3117 = vpop.permute.xlu0 %3116
    %3118 = vrot.lane.b32.xlu0 %v2703, 24
    %v3119 = vpop.permute.xlu0 %3118
    %3120 = vrot.lane.b32.xlu0 %v2710, 24
    %v3121 = vpop.permute.xlu0 %3120
    %3122 = vrot.lane.b32.xlu0 %v2717, 24
    %v3123 = vpop.permute.xlu0 %3122
    %3124 = vrot.lane.b32.xlu0 %v2724, 24
    %v3125 = vpop.permute.xlu0 %3124
    %3126 = vrot.lane.b32.xlu0 %v2731, 24
    %v3127 = vpop.permute.xlu0 %3126
    %3128 = vrot.lane.b32.xlu0 %v3097, 24
    %v3129 = vpop.permute.xlu0 %3128
    %vm3130 = vcmask 23552
    %v3132 = vsel %vm3130, 0, %v2598
    %v3134 = vsel %vm3130, %v2422, %v2600
    %v3136 = vsel %vm3130, %v2423, %v2602
    %v3138 = vsel %vm3130, %v2424, %v2604
    %v3140 = vsel %vm3130, %v2425, %v2606
    %v3142 = vsel %vm3130, %v2426, %v2608
    %v3144 = vsel %vm3130, %v2427, %v2610
    %v3146 = vsel %vm3130, %v2428, %v2612
    %v3148 = vsel %vm3130, %v2430, %v2614
    %v3150 = vsel %vm3130, %v2431, %v2616
    %v3152 = vsel %vm3130, %v2432, %v2618
    %v3154 = vsel %vm3130, %v2433, %v2620
    %v3156 = vsel %vm3130, %v2434, %v2622
    %v3158 = vsel %vm3130, %v2435, %v2624
    %v3160 = vsel %vm3130, %v2436, %v2626
    %vm3161 = vcmask 48128
    %v3163 = vsel %vm3161, %v3132, %v2733
    %v3165 = vsel %vm3161, %v3134, %v2735
    %v3167 = vsel %vm3161, %v3136, %v2737
    %v3169 = vsel %vm3161, %v3138, %v2739
    %v3171 = vsel %vm3161, %v3140, %v2741
    %v3173 = vsel %vm3161, %v3142, %v2743
    %v3175 = vsel %vm3161, %v3144, %v2745
    %v3177 = vsel %vm3161, %v3146, %v2747
    %v3179 = vsel %vm3161, %v3148, %v2749
    %v3181 = vsel %vm3161, %v3150, %v2751
    %v3183 = vsel %vm3161, %v3152, %v2753
    %v3185 = vsel %vm3161, %v3154, %v2755
    %v3187 = vsel %vm3161, %v3156, %v2757
    %v3189 = vsel %vm3161, %v3158, %v2759
    %v3191 = vsel %vm3161, %v3160, %v2761
    %vm3192 = vcmask 72704
    %v3194 = vsel %vm3192, %v3163, %v2779
    %v3196 = vsel %vm3192, %v3165, %v2781
    %v3198 = vsel %vm3192, %v3167, %v2783
    %v3200 = vsel %vm3192, %v3169, %v2785
    %v3202 = vsel %vm3192, %v3171, %v2787
    %v3204 = vsel %vm3192, %v3173, %v2789
    %v3206 = vsel %vm3192, %v3175, %v2791
    %v3208 = vsel %vm3192, %v3177, %v2793
    %v3210 = vsel %vm3192, %v3163, %v2795
    %v3212 = vsel %vm3192, %v3179, %v2797
    %v3214 = vsel %vm3192, %v3181, %v2799
    %v3216 = vsel %vm3192, %v3183, %v2801
    %v3218 = vsel %vm3192, %v3185, %v2803
    %v3220 = vsel %vm3192, %v3187, %v2805
    %v3222 = vsel %vm3192, %v3189, %v2807
    %v3224 = vsel %vm3192, %v3191, %v2809
    %vm3225 = vcmask 97280
    %v3227 = vsel %vm3225, %v3194, %v2827
    %v3229 = vsel %vm3225, %v3196, %v2829
    %v3231 = vsel %vm3225, %v3198, %v2831
    %v3233 = vsel %vm3225, %v3200, %v2833
    %v3235 = vsel %vm3225, %v3202, %v2835
    %v3237 = vsel %vm3225, %v3204, %v2837
    %v3239 = vsel %vm3225, %v3206, %v2839
    %v3241 = vsel %vm3225, %v3208, %v2841
    %v3243 = vsel %vm3225, %v3210, %v2843
    %v3245 = vsel %vm3225, %v3212, %v2845
    %v3247 = vsel %vm3225, %v3214, %v2847
    %v3249 = vsel %vm3225, %v3216, %v2849
    %v3251 = vsel %vm3225, %v3218, %v2851
    %v3253 = vsel %vm3225, %v3220, %v2853
    %v3255 = vsel %vm3225, %v3222, %v2855
    %v3257 = vsel %vm3225, %v3224, %v2857
    %vm3258 = vcmask 121856
    %v3260 = vsel %vm3258, %v3227, %v2971
    %v3262 = vsel %vm3258, %v3229, %v2973
    %v3264 = vsel %vm3258, %v3231, %v2975
    %v3266 = vsel %vm3258, %v3233, %v2977
    %v3268 = vsel %vm3258, %v3235, %v2979
    %v3270 = vsel %vm3258, %v3237, %v2981
    %v3272 = vsel %vm3258, %v3239, %v2983
    %v3274 = vsel %vm3258, %v3241, %v2985
    %v3276 = vsel %vm3258, %v3243, %v2987
    %v3278 = vsel %vm3258, %v3245, %v2989
    %v3280 = vsel %vm3258, %v3247, %v2991
    %v3282 = vsel %vm3258, %v3249, %v2993
    %v3284 = vsel %vm3258, %v3251, %v2995
    %v3286 = vsel %vm3258, %v3253, %v2997
    %v3288 = vsel %vm3258, %v3255, %v2999
    %v3290 = vsel %vm3258, %v3257, %v3001
    %vm3291 = vcmask 146432
    %v3293 = vsel %vm3291, %v3260, %v3019
    %v3295 = vsel %vm3291, %v3262, %v3021
    %v3297 = vsel %vm3291, %v3264, %v3023
    %v3299 = vsel %vm3291, %v3266, %v3025
    %v3301 = vsel %vm3291, %v3268, %v3027
    %v3303 = vsel %vm3291, %v3270, %v3029
    %v3305 = vsel %vm3291, %v3272, %v3031
    %v3307 = vsel %vm3291, %v3274, %v3033
    %v3309 = vsel %vm3291, %v3276, %v3035
    %v3311 = vsel %vm3291, %v3278, %v3037
    %v3313 = vsel %vm3291, %v3280, %v3039
    %v3315 = vsel %vm3291, %v3282, %v3041
    %v3317 = vsel %vm3291, %v3284, %v3043
    %v3319 = vsel %vm3291, %v3286, %v3045
    %v3321 = vsel %vm3291, %v3288, %v3047
    %v3323 = vsel %vm3291, %v3290, %v3049
    %vm3324 = vcmask 171008
    %v3326 = vsel %vm3324, %v3293, %v3053
    %v3328 = vsel %vm3324, %v3295, %v3055
    %v3330 = vsel %vm3324, %v3297, %v3057
    %v3332 = vsel %vm3324, %v3299, %v3059
    %v3334 = vsel %vm3324, %v3301, %v3061
    %v3336 = vsel %vm3324, %v3303, %v3063
    %v3338 = vsel %vm3324, %v3305, %v3065
    %v3340 = vsel %vm3324, %v3307, %v3067
    %v3342 = vsel %vm3324, %v3309, %v3069
    %v3344 = vsel %vm3324, %v3311, %v3071
    %v3346 = vsel %vm3324, %v3313, %v3073
    %v3348 = vsel %vm3324, %v3315, %v3075
    %v3350 = vsel %vm3324, %v3317, %v3077
    %v3352 = vsel %vm3324, %v3319, %v3079
    %v3354 = vsel %vm3324, %v3321, %v3081
    %v3356 = vsel %vm3324, %v3323, %v3083
    %vm3357 = vcmask 195584
    %v3359 = vsel %vm3357, %v3326, %v3099
    %v3361 = vsel %vm3357, %v3328, %v3101
    %v3363 = vsel %vm3357, %v3330, %v3103
    %v3365 = vsel %vm3357, %v3332, %v3105
    %v3367 = vsel %vm3357, %v3334, %v3107
    %v3369 = vsel %vm3357, %v3336, %v3109
    %v3371 = vsel %vm3357, %v3338, %v3111
    %v3373 = vsel %vm3357, %v3340, %v3113
    %v3375 = vsel %vm3357, %v3342, %v3115
    %v3377 = vsel %vm3357, %v3344, %v3117
    %v3379 = vsel %vm3357, %v3346, %v3119
    %v3381 = vsel %vm3357, %v3348, %v3121
    %v3383 = vsel %vm3357, %v3350, %v3123
    %v3385 = vsel %vm3357, %v3352, %v3125
    %v3387 = vsel %vm3357, %v3354, %v3127
    %v3389 = vsel %vm3357, %v3356, %v3129
    %v3391 = vperm.slane %v166, 0
    %v3409 = vunpack.c.l.b16 %v3359
    %v3410 = vunpack.c.l.b16 %v3361
    %v3411 = vunpack.c.l.b16 %v3363
    %v3412 = vunpack.c.l.b16 %v3365
    %v3413 = vunpack.c.l.b16 %v3367
    %v3414 = vunpack.c.l.b16 %v3369
    %v3415 = vunpack.c.l.b16 %v3371
    %v3416 = vunpack.c.l.b16 %v3373
    %v3417 = vunpack.c.l.b16 %v3375
    %v3418 = vunpack.c.l.b16 %v3377
    %v3419 = vunpack.c.l.b16 %v3379
    %v3420 = vunpack.c.l.b16 %v3381
    %v3421 = vunpack.c.l.b16 %v3383
    %v3422 = vunpack.c.l.b16 %v3385
    %v3423 = vunpack.c.l.b16 %v3387
    %v3424 = vunpack.c.l.b16 %v3389
    %v3425 = vpack.c.b16 %v3410, %v3409
    %v3426 = vpack.c.b16 %v3412, %v3411
    %v3427 = vpack.c.b16 %v3414, %v3413
    %v3428 = vpack.c.b16 %v3416, %v3415
    %v3429 = vpack.c.b16 %v3418, %v3417
    %v3430 = vpack.c.b16 %v3420, %v3419
    %v3431 = vpack.c.b16 %v3422, %v3421
    %v3432 = vpack.c.b16 %v3424, %v3423
    %v3437 = vunpack.c.l.b16 %v162
    %v3438 = vunpack.c.l.b16 %v163
    %v3439 = vunpack.c.l.b16 %v164
    %v3440 = vunpack.c.l.b16 %v165
    %v3441 = vpack.c.b16 %v3438, %v3437
    %v3442 = vpack.c.b16 %v3440, %v3439
    %vm3444 = vcmask 220160
    %v3446 = vsel %vm3444, %v3425, 0
    %v3449 = vsel %vm3444, %v3426, 0
    %v3452 = vsel %vm3444, %v3427, 0
    %v3455 = vsel %vm3444, %v3428, 0
    %v3458 = vsel %vm3444, %v3429, 0
    %v3461 = vsel %vm3444, %v3430, 0
    %v3464 = vsel %vm3444, %v3431, 0
    %v3467 = vsel %vm3444, %v3432, 0
    %vm3469 = vcmask 1044480
    %vm3470 = vcmask 1045504
    %v3471 = vsel %vm3469, 4294967295, 65535
    %v3472 = vsel %vm3470, %v3471, 0
    %v3474 = vand.u32 %v3442, %v3472
    %3476 = vmatpush.bf16.msra.mxu0 0
    %3477 = vmatpush.bf16.msra.mxu0 0
    %3478 = vmatpush.bf16.msra.mxu0 0
    %3479 = vmatpush.bf16.msra.mxu0 0
    %3480 = vmatpush.bf16.msra.mxu0 0
    %3481 = vmatpush.bf16.msra.mxu0 0
    %3482 = vmatpush.bf16.msra.mxu0 %v3474
    %3483 = vmatpush.bf16.msra.mxu0 %v3441
    %3484 = vmatmul.bf16.gmra.mxu0 %v3446
    %v3485 = vpop.f32.mrf.mxu0
    %v3486 = vadd.f32 %v3391, %v3485
    %v3487 = vpop.f32.mrf.mxu0
    %v3488 = vadd.f32 %v3391, %v3487
    %3489 = vmatmul.bf16.gmra.mxu0 %v3449
    %v3490 = vpop.f32.mrf.mxu0
    %v3491 = vadd.f32 %v3391, %v3490
    %v3492 = vpop.f32.mrf.mxu0
    %v3493 = vadd.f32 %v3391, %v3492
    %3494 = vmatmul.bf16.gmra.mxu0 %v3452
    %v3495 = vpop.f32.mrf.mxu0
    %v3496 = vadd.f32 %v3391, %v3495
    %v3497 = vpop.f32.mrf.mxu0
    %v3498 = vadd.f32 %v3391, %v3497
    %3499 = vmatmul.bf16.gmra.mxu0 %v3455
    %v3500 = vpop.f32.mrf.mxu0
    %v3501 = vadd.f32 %v3391, %v3500
    %v3502 = vpop.f32.mrf.mxu0
    %v3503 = vadd.f32 %v3391, %v3502
    %3504 = vmatmul.bf16.gmra.mxu0 %v3458
    %v3505 = vpop.f32.mrf.mxu0
    %v3506 = vadd.f32 %v3391, %v3505
    %v3507 = vpop.f32.mrf.mxu0
    %v3508 = vadd.f32 %v3391, %v3507
    %3509 = vmatmul.bf16.gmra.mxu0 %v3461
    %v3510 = vpop.f32.mrf.mxu0
    %v3511 = vadd.f32 %v3391, %v3510
    %v3512 = vpop.f32.mrf.mxu0
    %v3513 = vadd.f32 %v3391, %v3512
    %3514 = vmatmul.bf16.gmra.mxu0 %v3464
    %v3515 = vpop.f32.mrf.mxu0
    %v3516 = vadd.f32 %v3391, %v3515
    %v3517 = vpop.f32.mrf.mxu0
    %v3518 = vadd.f32 %v3391, %v3517
    %3519 = vmatmul.bf16.gmra.mxu0 %v3467
    %v3520 = vpop.f32.mrf.mxu0
    %v3521 = vadd.f32 %v3391, %v3520
    %v3522 = vpop.f32.mrf.mxu0
    %v3523 = vadd.f32 %v3391, %v3522
    %3524 = vdwg.mxu0
    %vm3525 = vcmp.gt.f32.partialorder %v3486, 0.0
    %vm3526 = vcmp.gt.f32.partialorder %v3488, 0.0
    %vm3527 = vcmp.gt.f32.partialorder %v3491, 0.0
    %vm3528 = vcmp.gt.f32.partialorder %v3493, 0.0
    %vm3529 = vcmp.gt.f32.partialorder %v3496, 0.0
    %vm3530 = vcmp.gt.f32.partialorder %v3498, 0.0
    %vm3531 = vcmp.gt.f32.partialorder %v3501, 0.0
    %vm3532 = vcmp.gt.f32.partialorder %v3503, 0.0
    %vm3533 = vcmp.gt.f32.partialorder %v3506, 0.0
    %vm3534 = vcmp.gt.f32.partialorder %v3508, 0.0
    %vm3535 = vcmp.gt.f32.partialorder %v3511, 0.0
    %vm3536 = vcmp.gt.f32.partialorder %v3513, 0.0
    %vm3537 = vcmp.gt.f32.partialorder %v3516, 0.0
    %vm3538 = vcmp.gt.f32.partialorder %v3518, 0.0
    %vm3539 = vcmp.gt.f32.partialorder %v3521, 0.0
    %vm3540 = vcmp.gt.f32.partialorder %v3523, 0.0
    %v3541 = vmul.f32 %v3486, 0.2
    %v3542 = vmul.f32 %v3488, 0.2
    %v3543 = vmul.f32 %v3491, 0.2
    %v3544 = vmul.f32 %v3493, 0.2
    %v3545 = vmul.f32 %v3496, 0.2
    %v3546 = vmul.f32 %v3498, 0.2
    %v3547 = vmul.f32 %v3501, 0.2
    %v3548 = vmul.f32 %v3503, 0.2
    %v3549 = vmul.f32 %v3506, 0.2
    %v3550 = vmul.f32 %v3508, 0.2
    %v3551 = vmul.f32 %v3511, 0.2
    %v3552 = vmul.f32 %v3513, 0.2
    %v3553 = vmul.f32 %v3516, 0.2
    %v3554 = vmul.f32 %v3518, 0.2
    %v3555 = vmul.f32 %v3521, 0.2
    %v3556 = vmul.f32 %v3523, 0.2
    %v3557 = vsel %vm3525, %v3486, %v3541
    %v3558 = vsel %vm3526, %v3488, %v3542
    %v3559 = vsel %vm3527, %v3491, %v3543
    %v3560 = vsel %vm3528, %v3493, %v3544
    %v3561 = vsel %vm3529, %v3496, %v3545
    %v3562 = vsel %vm3530, %v3498, %v3546
    %v3563 = vsel %vm3531, %v3501, %v3547
    %v3564 = vsel %vm3532, %v3503, %v3548
    %v3565 = vsel %vm3533, %v3506, %v3549
    %v3566 = vsel %vm3534, %v3508, %v3550
    %v3567 = vsel %vm3535, %v3511, %v3551
    %v3568 = vsel %vm3536, %v3513, %v3552
    %v3569 = vsel %vm3537, %v3516, %v3553
    %v3570 = vsel %vm3538, %v3518, %v3554
    %v3571 = vsel %vm3539, %v3521, %v3555
    %v3572 = vsel %vm3540, %v3523, %v3556
    %v3573 = vpack.c.bf16 %v3557, %v3557
    %v3574 = vpack.c.bf16 %v3558, %v3558
    %v3575 = vpack.c.bf16 %v3559, %v3559
    %v3576 = vpack.c.bf16 %v3560, %v3560
    %v3577 = vpack.c.bf16 %v3561, %v3561
    %v3578 = vpack.c.bf16 %v3562, %v3562
    %v3579 = vpack.c.bf16 %v3563, %v3563
    %v3580 = vpack.c.bf16 %v3564, %v3564
    %v3581 = vpack.c.bf16 %v3565, %v3565
    %v3582 = vpack.c.bf16 %v3566, %v3566
    %v3583 = vpack.c.bf16 %v3567, %v3567
    %v3584 = vpack.c.bf16 %v3568, %v3568
    %v3585 = vpack.c.bf16 %v3569, %v3569
    %v3586 = vpack.c.bf16 %v3570, %v3570
    %v3587 = vpack.c.bf16 %v3571, %v3571
    %v3588 = vpack.c.bf16 %v3572, %v3572
    %v3589 = vld [vmem:[%s3] sm:$0xf]
    %v3590 = vld [vmem:[%s3 + $0x4] sm:$0xf]
    %v3591 = vld [vmem:[%s3 + $0x8] sm:$0xf]
    %v3592 = vld [vmem:[%s3 + $0xc] sm:$0xf]
    %v3593 = vld [vmem:[%s3 + $0x10] sm:$0xf]
    %v3594 = vld [vmem:[%s3 + $0x14] sm:$0xf]
    %v3595 = vld [vmem:[%s3 + $0x18] sm:$0xf]
    %v3596 = vld [vmem:[%s3 + $0x1c] sm:$0xf]
    %v3597 = vld [vmem:[%s3 + $0x20] sm:$0xf]
    %v3598 = vld [vmem:[%s4] sm:$0x1]
    %v3615 = vunpack.c.l.b16 %v3573
    %v3616 = vunpack.c.l.b16 %v3574
    %v3617 = vunpack.c.l.b16 %v3575
    %v3618 = vunpack.c.l.b16 %v3576
    %v3619 = vunpack.c.l.b16 %v3577
    %v3620 = vunpack.c.l.b16 %v3578
    %v3621 = vunpack.c.l.b16 %v3579
    %v3622 = vunpack.c.l.b16 %v3580
    %v3623 = vunpack.c.l.b16 %v3581
    %v3624 = vunpack.c.l.b16 %v3582
    %v3625 = vunpack.c.l.b16 %v3583
    %v3626 = vunpack.c.l.b16 %v3584
    %v3627 = vunpack.c.l.b16 %v3585
    %v3628 = vunpack.c.l.b16 %v3586
    %v3629 = vunpack.c.l.b16 %v3587
    %v3630 = vunpack.c.l.b16 %v3588
    %v3631 = vpack.c.b16 %v3615, %v3615
    %v3632 = vpack.c.b16 %v3616, %v3616
    %v3633 = vpack.c.b16 %v3617, %v3617
    %v3634 = vpack.c.b16 %v3618, %v3618
    %v3635 = vpack.c.b16 %v3619, %v3619
    %v3636 = vpack.c.b16 %v3620, %v3620
    %v3637 = vpack.c.b16 %v3621, %v3621
    %v3638 = vpack.c.b16 %v3622, %v3622
    %v3639 = vpack.c.b16 %v3623, %v3623
    %v3640 = vpack.c.b16 %v3624, %v3624
    %v3641 = vpack.c.b16 %v3625, %v3625
    %v3642 = vpack.c.b16 %v3626, %v3626
    %v3643 = vpack.c.b16 %v3627, %v3627
    %v3644 = vpack.c.b16 %v3628, %v3628
    %v3645 = vpack.c.b16 %v3629, %v3629
    %v3646 = vpack.c.b16 %v3630, %v3630
    %v3648 = vshll.u32 %v3631, 16
    %v3650 = vrot.slane %v3648, 1
    %v3652 = vshll.u32 %v3632, 16
    %v3654 = vrot.slane %v3652, 1
    %v3656 = vshll.u32 %v3633, 16
    %v3658 = vrot.slane %v3656, 1
    %v3660 = vshll.u32 %v3634, 16
    %v3662 = vrot.slane %v3660, 1
    %v3664 = vshll.u32 %v3635, 16
    %v3666 = vrot.slane %v3664, 1
    %v3668 = vshll.u32 %v3636, 16
    %v3670 = vrot.slane %v3668, 1
    %v3672 = vshll.u32 %v3637, 16
    %v3674 = vrot.slane %v3672, 1
    %v3676 = vshll.u32 %v3638, 16
    %v3678 = vrot.slane %v3676, 1
    %v3680 = vshll.u32 %v3639, 16
    %v3682 = vrot.slane %v3680, 1
    %v3684 = vshll.u32 %v3640, 16
    %v3686 = vrot.slane %v3684, 1
    %v3688 = vshll.u32 %v3641, 16
    %v3690 = vrot.slane %v3688, 1
    %v3692 = vshll.u32 %v3642, 16
    %v3694 = vrot.slane %v3692, 1
    %v3696 = vshll.u32 %v3643, 16
    %v3698 = vrot.slane %v3696, 1
    %v3700 = vshll.u32 %v3644, 16
    %v3702 = vrot.slane %v3700, 1
    %v3704 = vshll.u32 %v3645, 16
    %v3706 = vrot.slane %v3704, 1
    %v3708 = vshll.u32 %v3646, 16
    %v3710 = vrot.slane %v3708, 1
    %v3727 = vrot.slane %v3631, 1
    %v3728 = vrot.slane %v3632, 1
    %v3729 = vrot.slane %v3633, 1
    %v3730 = vrot.slane %v3634, 1
    %v3731 = vrot.slane %v3635, 1
    %v3732 = vrot.slane %v3636, 1
    %v3733 = vrot.slane %v3637, 1
    %v3734 = vrot.slane %v3638, 1
    %v3735 = vrot.slane %v3639, 1
    %v3736 = vrot.slane %v3640, 1
    %v3737 = vrot.slane %v3641, 1
    %v3738 = vrot.slane %v3642, 1
    %v3739 = vrot.slane %v3643, 1
    %v3740 = vrot.slane %v3644, 1
    %v3741 = vrot.slane %v3645, 1
    %v3742 = vrot.slane %v3646, 1
    %v3743 = vrot.slane %v3648, 2
    %v3744 = vrot.slane %v3652, 2
    %v3745 = vrot.slane %v3656, 2
    %v3746 = vrot.slane %v3660, 2
    %v3747 = vrot.slane %v3664, 2
    %v3748 = vrot.slane %v3668, 2
    %v3749 = vrot.slane %v3672, 2
    %v3750 = vrot.slane %v3676, 2
    %v3751 = vrot.slane %v3680, 2
    %v3752 = vrot.slane %v3684, 2
    %v3753 = vrot.slane %v3688, 2
    %v3754 = vrot.slane %v3692, 2
    %v3755 = vrot.slane %v3696, 2
    %v3756 = vrot.slane %v3700, 2
    %v3757 = vrot.slane %v3704, 2
    %v3758 = vrot.slane %v3708, 2
    %v3775 = vsel %vm873, %v3573, %v3650
    %v3776 = vsel %vm873, %v3574, %v3654
    %v3777 = vsel %vm873, %v3575, %v3658
    %v3778 = vsel %vm873, %v3576, %v3662
    %v3779 = vsel %vm873, %v3577, %v3666
    %v3780 = vsel %vm873, %v3578, %v3670
    %v3781 = vsel %vm873, %v3579, %v3674
    %v3782 = vsel %vm873, %v3580, %v3678
    %v3783 = vsel %vm873, %v3581, %v3682
    %v3784 = vsel %vm873, %v3582, %v3686
    %v3785 = vsel %vm873, %v3583, %v3690
    %v3786 = vsel %vm873, %v3584, %v3694
    %v3787 = vsel %vm873, %v3585, %v3698
    %v3788 = vsel %vm873, %v3586, %v3702
    %v3789 = vsel %vm873, %v3587, %v3706
    %v3790 = vsel %vm873, %v3588, %v3710
    %v3793 = vsel %vm906, %v3775, %v3727
    %v3797 = vsel %vm906, %v3776, %v3728
    %v3801 = vsel %vm906, %v3777, %v3729
    %v3805 = vsel %vm906, %v3778, %v3730
    %v3809 = vsel %vm906, %v3779, %v3731
    %v3813 = vsel %vm906, %v3780, %v3732
    %v3817 = vsel %vm906, %v3781, %v3733
    %v3821 = vsel %vm906, %v3782, %v3734
    %v3825 = vsel %vm906, %v3783, %v3735
    %v3829 = vsel %vm906, %v3784, %v3736
    %v3833 = vsel %vm906, %v3785, %v3737
    %v3837 = vsel %vm906, %v3786, %v3738
    %v3841 = vsel %vm906, %v3787, %v3739
    %v3845 = vsel %vm906, %v3788, %v3740
    %v3849 = vsel %vm906, %v3789, %v3741
    %v3853 = vsel %vm906, %v3790, %v3742
    %v3855 = vsel %vm1037, %v3793, %v3743
    %v3856 = vsel %vm1037, %v3797, %v3744
    %v3857 = vsel %vm1037, %v3801, %v3745
    %v3858 = vsel %vm1037, %v3805, %v3746
    %v3859 = vsel %vm1037, %v3809, %v3747
    %v3860 = vsel %vm1037, %v3813, %v3748
    %v3861 = vsel %vm1037, %v3817, %v3749
    %v3862 = vsel %vm1037, %v3821, %v3750
    %v3863 = vsel %vm1037, %v3825, %v3751
    %v3864 = vsel %vm1037, %v3829, %v3752
    %v3865 = vsel %vm1037, %v3833, %v3753
    %v3866 = vsel %vm1037, %v3837, %v3754
    %v3867 = vsel %vm1037, %v3841, %v3755
    %v3868 = vsel %vm1037, %v3845, %v3756
    %v3869 = vsel %vm1037, %v3849, %v3757
    %v3870 = vsel %vm1037, %v3853, %v3758
    %v3871 = vshrl.u32 %v3631, 16
    %v3873 = vshrl.u32 %v3632, 16
    %v3875 = vshrl.u32 %v3633, 16
    %v3877 = vshrl.u32 %v3634, 16
    %v3879 = vshrl.u32 %v3635, 16
    %v3881 = vshrl.u32 %v3636, 16
    %v3883 = vshrl.u32 %v3637, 16
    %v3885 = vshrl.u32 %v3638, 16
    %v3887 = vshrl.u32 %v3639, 16
    %v3889 = vshrl.u32 %v3640, 16
    %v3891 = vshrl.u32 %v3641, 16
    %v3893 = vshrl.u32 %v3642, 16
    %v3895 = vshrl.u32 %v3643, 16
    %v3897 = vshrl.u32 %v3644, 16
    %v3899 = vshrl.u32 %v3645, 16
    %v3901 = vshrl.u32 %v3646, 16
    %v3935 = vrot.slane %v3871, 1
    %v3936 = vrot.slane %v3873, 1
    %v3937 = vrot.slane %v3875, 1
    %v3938 = vrot.slane %v3877, 1
    %v3939 = vrot.slane %v3879, 1
    %v3940 = vrot.slane %v3881, 1
    %v3941 = vrot.slane %v3883, 1
    %v3942 = vrot.slane %v3885, 1
    %v3943 = vrot.slane %v3887, 1
    %v3944 = vrot.slane %v3889, 1
    %v3945 = vrot.slane %v3891, 1
    %v3946 = vrot.slane %v3893, 1
    %v3947 = vrot.slane %v3895, 1
    %v3948 = vrot.slane %v3897, 1
    %v3949 = vrot.slane %v3899, 1
    %v3950 = vrot.slane %v3901, 1
    %v3951 = vrot.slane %v3631, 2
    %v3952 = vrot.slane %v3632, 2
    %v3953 = vrot.slane %v3633, 2
    %v3954 = vrot.slane %v3634, 2
    %v3955 = vrot.slane %v3635, 2
    %v3956 = vrot.slane %v3636, 2
    %v3957 = vrot.slane %v3637, 2
    %v3958 = vrot.slane %v3638, 2
    %v3959 = vrot.slane %v3639, 2
    %v3960 = vrot.slane %v3640, 2
    %v3961 = vrot.slane %v3641, 2
    %v3962 = vrot.slane %v3642, 2
    %v3963 = vrot.slane %v3643, 2
    %v3964 = vrot.slane %v3644, 2
    %v3965 = vrot.slane %v3645, 2
    %v3966 = vrot.slane %v3646, 2
    %v3983 = vsel %vm873, %v3871, %v3727
    %v3984 = vsel %vm873, %v3873, %v3728
    %v3985 = vsel %vm873, %v3875, %v3729
    %v3986 = vsel %vm873, %v3877, %v3730
    %v3987 = vsel %vm873, %v3879, %v3731
    %v3988 = vsel %vm873, %v3881, %v3732
    %v3989 = vsel %vm873, %v3883, %v3733
    %v3990 = vsel %vm873, %v3885, %v3734
    %v3991 = vsel %vm873, %v3887, %v3735
    %v3992 = vsel %vm873, %v3889, %v3736
    %v3993 = vsel %vm873, %v3891, %v3737
    %v3994 = vsel %vm873, %v3893, %v3738
    %v3995 = vsel %vm873, %v3895, %v3739
    %v3996 = vsel %vm873, %v3897, %v3740
    %v3997 = vsel %vm873, %v3899, %v3741
    %v3998 = vsel %vm873, %v3901, %v3742
    %v4001 = vsel %vm906, %v3983, %v3935
    %v4005 = vsel %vm906, %v3984, %v3936
    %v4009 = vsel %vm906, %v3985, %v3937
    %v4013 = vsel %vm906, %v3986, %v3938
    %v4017 = vsel %vm906, %v3987, %v3939
    %v4021 = vsel %vm906, %v3988, %v3940
    %v4025 = vsel %vm906, %v3989, %v3941
    %v4029 = vsel %vm906, %v3990, %v3942
    %v4033 = vsel %vm906, %v3991, %v3943
    %v4037 = vsel %vm906, %v3992, %v3944
    %v4041 = vsel %vm906, %v3993, %v3945
    %v4045 = vsel %vm906, %v3994, %v3946
    %v4049 = vsel %vm906, %v3995, %v3947
    %v4053 = vsel %vm906, %v3996, %v3948
    %v4057 = vsel %vm906, %v3997, %v3949
    %v4061 = vsel %vm906, %v3998, %v3950
    %v4063 = vsel %vm1037, %v4001, %v3951
    %v4064 = vsel %vm1037, %v4005, %v3952
    %v4065 = vsel %vm1037, %v4009, %v3953
    %v4066 = vsel %vm1037, %v4013, %v3954
    %v4067 = vsel %vm1037, %v4017, %v3955
    %v4068 = vsel %vm1037, %v4021, %v3956
    %v4069 = vsel %vm1037, %v4025, %v3957
    %v4070 = vsel %vm1037, %v4029, %v3958
    %v4071 = vsel %vm1037, %v4033, %v3959
    %v4072 = vsel %vm1037, %v4037, %v3960
    %v4073 = vsel %vm1037, %v4041, %v3961
    %v4074 = vsel %vm1037, %v4045, %v3962
    %v4075 = vsel %vm1037, %v4049, %v3963
    %v4076 = vsel %vm1037, %v4053, %v3964
    %v4077 = vsel %vm1037, %v4057, %v3965
    %v4078 = vsel %vm1037, %v4061, %v3966
    %v4080 = vshrl.u32 %v4064, 16
    %v4082 = vrot.slane %v4080, 7
    %v4083 = vshll.u32 %v4064, 16
    %v4085 = vor.u32 %v4082, %v4083
    %v4087 = vshrl.u32 %v4066, 16
    %v4089 = vrot.slane %v4087, 7
    %v4090 = vshll.u32 %v4066, 16
    %v4092 = vor.u32 %v4089, %v4090
    %v4094 = vshrl.u32 %v4068, 16
    %v4096 = vrot.slane %v4094, 7
    %v4097 = vshll.u32 %v4068, 16
    %v4099 = vor.u32 %v4096, %v4097
    %v4101 = vshrl.u32 %v4070, 16
    %v4103 = vrot.slane %v4101, 7
    %v4104 = vshll.u32 %v4070, 16
    %v4106 = vor.u32 %v4103, %v4104
    %v4108 = vshrl.u32 %v4072, 16
    %v4110 = vrot.slane %v4108, 7
    %v4111 = vshll.u32 %v4072, 16
    %v4113 = vor.u32 %v4110, %v4111
    %v4115 = vshrl.u32 %v4074, 16
    %v4117 = vrot.slane %v4115, 7
    %v4118 = vshll.u32 %v4074, 16
    %v4120 = vor.u32 %v4117, %v4118
    %v4122 = vshrl.u32 %v4076, 16
    %v4124 = vrot.slane %v4122, 7
    %v4125 = vshll.u32 %v4076, 16
    %v4127 = vor.u32 %v4124, %v4125
    %v4129 = vshrl.u32 %v4078, 16
    %v4131 = vrot.slane %v4129, 7
    %v4132 = vshll.u32 %v4078, 16
    %v4134 = vor.u32 %v4131, %v4132
    %v4143 = vsel %vm873, 0, %v4085
    %v4144 = vsel %vm873, 0, %v4092
    %v4145 = vsel %vm873, 0, %v4099
    %v4146 = vsel %vm873, 0, %v4106
    %v4147 = vsel %vm873, 0, %v4113
    %v4148 = vsel %vm873, 0, %v4120
    %v4149 = vsel %vm873, 0, %v4127
    %v4150 = vsel %vm873, 0, %v4134
    %v4152 = vshrl.u32 %v4063, 16
    %v4154 = vrot.slane %v4152, 7
    %v4155 = vshll.u32 %v4063, 16
    %v4157 = vor.u32 %v4154, %v4155
    %v4159 = vshrl.u32 %v4065, 16
    %v4161 = vrot.slane %v4159, 7
    %v4162 = vshll.u32 %v4065, 16
    %v4164 = vor.u32 %v4161, %v4162
    %v4166 = vshrl.u32 %v4067, 16
    %v4168 = vrot.slane %v4166, 7
    %v4169 = vshll.u32 %v4067, 16
    %v4171 = vor.u32 %v4168, %v4169
    %v4173 = vshrl.u32 %v4069, 16
    %v4175 = vrot.slane %v4173, 7
    %v4176 = vshll.u32 %v4069, 16
    %v4178 = vor.u32 %v4175, %v4176
    %v4180 = vshrl.u32 %v4071, 16
    %v4182 = vrot.slane %v4180, 7
    %v4183 = vshll.u32 %v4071, 16
    %v4185 = vor.u32 %v4182, %v4183
    %v4187 = vshrl.u32 %v4073, 16
    %v4189 = vrot.slane %v4187, 7
    %v4190 = vshll.u32 %v4073, 16
    %v4192 = vor.u32 %v4189, %v4190
    %v4194 = vshrl.u32 %v4075, 16
    %v4196 = vrot.slane %v4194, 7
    %v4197 = vshll.u32 %v4075, 16
    %v4199 = vor.u32 %v4196, %v4197
    %v4201 = vshrl.u32 %v4077, 16
    %v4203 = vrot.slane %v4201, 7
    %v4204 = vshll.u32 %v4077, 16
    %v4206 = vor.u32 %v4203, %v4204
    %v4215 = vsel %vm873, 0, %v4157
    %v4216 = vsel %vm873, 0, %v4164
    %v4217 = vsel %vm873, 0, %v4171
    %v4218 = vsel %vm873, 0, %v4178
    %v4219 = vsel %vm873, 0, %v4185
    %v4220 = vsel %vm873, 0, %v4192
    %v4221 = vsel %vm873, 0, %v4199
    %v4222 = vsel %vm873, 0, %v4206
    %4229 = vrot.lane.b32.xlu0 0, 8
    %v4230 = vpop.permute.xlu0 %4229
    %4231 = vrot.lane.b32.xlu0 %v3856, 8
    %v4232 = vpop.permute.xlu0 %4231
    %4233 = vrot.lane.b32.xlu0 %v3858, 8
    %v4234 = vpop.permute.xlu0 %4233
    %4235 = vrot.lane.b32.xlu0 %v3860, 8
    %v4236 = vpop.permute.xlu0 %4235
    %4237 = vrot.lane.b32.xlu0 %v3864, 8
    %v4238 = vpop.permute.xlu0 %4237
    %4239 = vrot.lane.b32.xlu0 %v3866, 8
    %v4240 = vpop.permute.xlu0 %4239
    %4241 = vrot.lane.b32.xlu0 %v3868, 8
    %v4242 = vpop.permute.xlu0 %4241
    %v4244 = vshrl.u32 %v4143, 16
    %v4246 = vshll.u32 %v4143, 16
    %v4248 = vrot.slane %v4246, 1
    %v4249 = vor.u32 %v4244, %v4248
    %v4251 = vshrl.u32 %v4144, 16
    %v4253 = vshll.u32 %v4144, 16
    %v4255 = vrot.slane %v4253, 1
    %v4256 = vor.u32 %v4251, %v4255
    %v4258 = vshrl.u32 %v4145, 16
    %v4260 = vshll.u32 %v4145, 16
    %v4262 = vrot.slane %v4260, 1
    %v4263 = vor.u32 %v4258, %v4262
    %v4265 = vshrl.u32 %v4147, 16
    %v4267 = vshll.u32 %v4147, 16
    %v4269 = vrot.slane %v4267, 1
    %v4270 = vor.u32 %v4265, %v4269
    %v4272 = vshrl.u32 %v4148, 16
    %v4274 = vshll.u32 %v4148, 16
    %v4276 = vrot.slane %v4274, 1
    %v4277 = vor.u32 %v4272, %v4276
    %v4279 = vshrl.u32 %v4149, 16
    %v4281 = vshll.u32 %v4149, 16
    %v4283 = vrot.slane %v4281, 1
    %v4284 = vor.u32 %v4279, %v4283
    %4285 = vrot.lane.b32.xlu0 %v2633, 16
    %v4286 = vpop.permute.xlu0 %4285
    %4287 = vrot.lane.b32.xlu0 %v4249, 16
    %v4288 = vpop.permute.xlu0 %4287
    %4289 = vrot.lane.b32.xlu0 %v4256, 16
    %v4290 = vpop.permute.xlu0 %4289
    %4291 = vrot.lane.b32.xlu0 %v4263, 16
    %v4292 = vpop.permute.xlu0 %4291
    %4293 = vrot.lane.b32.xlu0 %v4270, 16
    %v4294 = vpop.permute.xlu0 %4293
    %4295 = vrot.lane.b32.xlu0 %v4277, 16
    %v4296 = vpop.permute.xlu0 %4295
    %4297 = vrot.lane.b32.xlu0 %v4284, 16
    %v4298 = vpop.permute.xlu0 %4297
    %4307 = vrot.lane.b32.xlu0 %v4215, 24
    %v4308 = vpop.permute.xlu0 %4307
    %4309 = vrot.lane.b32.xlu0 %v4216, 24
    %v4310 = vpop.permute.xlu0 %4309
    %4311 = vrot.lane.b32.xlu0 %v4217, 24
    %v4312 = vpop.permute.xlu0 %4311
    %4313 = vrot.lane.b32.xlu0 %v4218, 24
    %v4314 = vpop.permute.xlu0 %4313
    %4315 = vrot.lane.b32.xlu0 %v4219, 24
    %v4316 = vpop.permute.xlu0 %4315
    %4317 = vrot.lane.b32.xlu0 %v4220, 24
    %v4318 = vpop.permute.xlu0 %4317
    %4319 = vrot.lane.b32.xlu0 %v4221, 24
    %v4320 = vpop.permute.xlu0 %4319
    %4321 = vrot.lane.b32.xlu0 %v4222, 24
    %v4322 = vpop.permute.xlu0 %4321
    %4331 = vrot.lane.b32.xlu0 %v3855, 32
    %v4332 = vpop.permute.xlu0 %4331
    %4333 = vrot.lane.b32.xlu0 %v3857, 32
    %v4334 = vpop.permute.xlu0 %4333
    %4335 = vrot.lane.b32.xlu0 %v3859, 32
    %v4336 = vpop.permute.xlu0 %4335
    %4337 = vrot.lane.b32.xlu0 %v3861, 32
    %v4338 = vpop.permute.xlu0 %4337
    %4339 = vrot.lane.b32.xlu0 %v3863, 32
    %v4340 = vpop.permute.xlu0 %4339
    %4341 = vrot.lane.b32.xlu0 %v3865, 32
    %v4342 = vpop.permute.xlu0 %4341
    %4343 = vrot.lane.b32.xlu0 %v3867, 32
    %v4344 = vpop.permute.xlu0 %4343
    %4345 = vrot.lane.b32.xlu0 %v3869, 32
    %v4346 = vpop.permute.xlu0 %4345
    %v4348 = vshrl.u32 %v4215, 16
    %v4350 = vshll.u32 %v4215, 16
    %v4352 = vrot.slane %v4350, 1
    %v4353 = vor.u32 %v4348, %v4352
    %v4355 = vshrl.u32 %v4216, 16
    %v4357 = vshll.u32 %v4216, 16
    %v4359 = vrot.slane %v4357, 1
    %v4360 = vor.u32 %v4355, %v4359
    %v4362 = vshrl.u32 %v4217, 16
    %v4364 = vshll.u32 %v4217, 16
    %v4366 = vrot.slane %v4364, 1
    %v4367 = vor.u32 %v4362, %v4366
    %v4369 = vshrl.u32 %v4218, 16
    %v4371 = vshll.u32 %v4218, 16
    %v4373 = vrot.slane %v4371, 1
    %v4374 = vor.u32 %v4369, %v4373
    %v4376 = vshrl.u32 %v4219, 16
    %v4378 = vshll.u32 %v4219, 16
    %v4380 = vrot.slane %v4378, 1
    %v4381 = vor.u32 %v4376, %v4380
    %v4383 = vshrl.u32 %v4220, 16
    %v4385 = vshll.u32 %v4220, 16
    %v4387 = vrot.slane %v4385, 1
    %v4388 = vor.u32 %v4383, %v4387
    %v4390 = vshrl.u32 %v4221, 16
    %v4392 = vshll.u32 %v4221, 16
    %v4394 = vrot.slane %v4392, 1
    %v4395 = vor.u32 %v4390, %v4394
    %v4397 = vshrl.u32 %v4222, 16
    %v4399 = vshll.u32 %v4222, 16
    %v4401 = vrot.slane %v4399, 1
    %v4402 = vor.u32 %v4397, %v4401
    %4403 = vrot.lane.b32.xlu0 %v4353, 40
    %v4404 = vpop.permute.xlu0 %4403
    %4405 = vrot.lane.b32.xlu0 %v4360, 40
    %v4406 = vpop.permute.xlu0 %4405
    %4407 = vrot.lane.b32.xlu0 %v4367, 40
    %v4408 = vpop.permute.xlu0 %4407
    %4409 = vrot.lane.b32.xlu0 %v4374, 40
    %v4410 = vpop.permute.xlu0 %4409
    %4411 = vrot.lane.b32.xlu0 %v4381, 40
    %v4412 = vpop.permute.xlu0 %4411
    %4413 = vrot.lane.b32.xlu0 %v4388, 40
    %v4414 = vpop.permute.xlu0 %4413
    %4415 = vrot.lane.b32.xlu0 %v4395, 40
    %v4416 = vpop.permute.xlu0 %4415
    %4417 = vrot.lane.b32.xlu0 %v4402, 40
    %v4418 = vpop.permute.xlu0 %4417
    %4427 = vrot.lane.b32.xlu0 %v4143, 48
    %v4428 = vpop.permute.xlu0 %4427
    %4429 = vrot.lane.b32.xlu0 %v4144, 48
    %v4430 = vpop.permute.xlu0 %4429
    %4431 = vrot.lane.b32.xlu0 %v4145, 48
    %v4432 = vpop.permute.xlu0 %4431
    %4433 = vrot.lane.b32.xlu0 %v4146, 48
    %v4434 = vpop.permute.xlu0 %4433
    %4435 = vrot.lane.b32.xlu0 %v4147, 48
    %v4436 = vpop.permute.xlu0 %4435
    %4437 = vrot.lane.b32.xlu0 %v4148, 48
    %v4438 = vpop.permute.xlu0 %4437
    %4439 = vrot.lane.b32.xlu0 %v4149, 48
    %v4440 = vpop.permute.xlu0 %4439
    %4441 = vrot.lane.b32.xlu0 %v4150, 48
    %v4442 = vpop.permute.xlu0 %4441
    %4445 = vrot.lane.b32.xlu0 %v3856, 56
    %v4446 = vpop.permute.xlu0 %4445
    %4447 = vrot.lane.b32.xlu0 %v3858, 56
    %v4448 = vpop.permute.xlu0 %4447
    %4449 = vrot.lane.b32.xlu0 %v3860, 56
    %v4450 = vpop.permute.xlu0 %4449
    %4451 = vrot.lane.b32.xlu0 %v3862, 56
    %v4452 = vpop.permute.xlu0 %4451
    %4453 = vrot.lane.b32.xlu0 %v3864, 56
    %v4454 = vpop.permute.xlu0 %4453
    %4455 = vrot.lane.b32.xlu0 %v3866, 56
    %v4456 = vpop.permute.xlu0 %4455
    %4457 = vrot.lane.b32.xlu0 %v3868, 56
    %v4458 = vpop.permute.xlu0 %4457
    %4459 = vrot.lane.b32.xlu0 %v3870, 56
    %v4460 = vpop.permute.xlu0 %4459
    %v4462 = vshrl.u32 %v4146, 16
    %v4464 = vshll.u32 %v4146, 16
    %v4466 = vrot.slane %v4464, 1
    %v4467 = vor.u32 %v4462, %v4466
    %v4469 = vshrl.u32 %v4150, 16
    %v4471 = vshll.u32 %v4150, 16
    %v4473 = vrot.slane %v4471, 1
    %v4474 = vor.u32 %v4469, %v4473
    %4475 = vrot.lane.b32.xlu0 %v4249, 64
    %v4476 = vpop.permute.xlu0 %4475
    %4477 = vrot.lane.b32.xlu0 %v4256, 64
    %v4478 = vpop.permute.xlu0 %4477
    %4479 = vrot.lane.b32.xlu0 %v4263, 64
    %v4480 = vpop.permute.xlu0 %4479
    %4481 = vrot.lane.b32.xlu0 %v4467, 64
    %v4482 = vpop.permute.xlu0 %4481
    %4483 = vrot.lane.b32.xlu0 %v4270, 64
    %v4484 = vpop.permute.xlu0 %4483
    %4485 = vrot.lane.b32.xlu0 %v4277, 64
    %v4486 = vpop.permute.xlu0 %4485
    %4487 = vrot.lane.b32.xlu0 %v4284, 64
    %v4488 = vpop.permute.xlu0 %4487
    %4489 = vrot.lane.b32.xlu0 %v4474, 64
    %v4490 = vpop.permute.xlu0 %4489
    %vm4491 = vcmask 64512
    %v4493 = vsel %vm4491, 0, %v4230
    %v4495 = vsel %vm4491, %v4143, %v4232
    %v4497 = vsel %vm4491, %v4144, %v4234
    %v4499 = vsel %vm4491, %v4145, %v4236
    %v4501 = vsel %vm4491, %v4147, %v4238
    %v4503 = vsel %vm4491, %v4148, %v4240
    %v4505 = vsel %vm4491, %v4149, %v4242
    %vm4506 = vcmask 130048
    %v4508 = vsel %vm4506, %v4493, %v4286
    %v4510 = vsel %vm4506, %v4495, %v4288
    %v4512 = vsel %vm4506, %v4497, %v4290
    %v4514 = vsel %vm4506, %v4499, %v4292
    %v4516 = vsel %vm4506, %v4501, %v4294
    %v4518 = vsel %vm4506, %v4503, %v4296
    %v4520 = vsel %vm4506, %v4505, %v4298
    %v4522 = vsel %vm3357, %v4508, %v4308
    %v4524 = vsel %vm3357, %v4510, %v4310
    %v4526 = vsel %vm3357, %v4512, %v4312
    %v4528 = vsel %vm3357, %v4514, %v4314
    %v4530 = vsel %vm3357, %v4508, %v4316
    %v4532 = vsel %vm3357, %v4516, %v4318
    %v4534 = vsel %vm3357, %v4518, %v4320
    %v4536 = vsel %vm3357, %v4520, %v4322
    %vm4537 = vcmask 261120
    %v4539 = vsel %vm4537, %v4522, %v4332
    %v4541 = vsel %vm4537, %v4524, %v4334
    %v4543 = vsel %vm4537, %v4526, %v4336
    %v4545 = vsel %vm4537, %v4528, %v4338
    %v4547 = vsel %vm4537, %v4530, %v4340
    %v4549 = vsel %vm4537, %v4532, %v4342
    %v4551 = vsel %vm4537, %v4534, %v4344
    %v4553 = vsel %vm4537, %v4536, %v4346
    %vm4554 = vcmask 326656
    %v4556 = vsel %vm4554, %v4539, %v4404
    %v4558 = vsel %vm4554, %v4541, %v4406
    %v4560 = vsel %vm4554, %v4543, %v4408
    %v4562 = vsel %vm4554, %v4545, %v4410
    %v4564 = vsel %vm4554, %v4547, %v4412
    %v4566 = vsel %vm4554, %v4549, %v4414
    %v4568 = vsel %vm4554, %v4551, %v4416
    %v4570 = vsel %vm4554, %v4553, %v4418
    %vm4571 = vcmask 392192
    %v4573 = vsel %vm4571, %v4556, %v4428
    %v4575 = vsel %vm4571, %v4558, %v4430
    %v4577 = vsel %vm4571, %v4560, %v4432
    %v4579 = vsel %vm4571, %v4562, %v4434
    %v4581 = vsel %vm4571, %v4564, %v4436
    %v4583 = vsel %vm4571, %v4566, %v4438
    %v4585 = vsel %vm4571, %v4568, %v4440
    %v4587 = vsel %vm4571, %v4570, %v4442
    %vm4588 = vcmask 457728
    %v4590 = vsel %vm4588, %v4573, %v4446
    %v4592 = vsel %vm4588, %v4575, %v4448
    %v4594 = vsel %vm4588, %v4577, %v4450
    %v4596 = vsel %vm4588, %v4579, %v4452
    %v4598 = vsel %vm4588, %v4581, %v4454
    %v4600 = vsel %vm4588, %v4583, %v4456
    %v4602 = vsel %vm4588, %v4585, %v4458
    %v4604 = vsel %vm4588, %v4587, %v4460
    %vm4605 = vcmask 523264
    %v4607 = vsel %vm4605, %v4590, %v4476
    %v4609 = vsel %vm4605, %v4592, %v4478
    %v4611 = vsel %vm4605, %v4594, %v4480
    %v4613 = vsel %vm4605, %v4596, %v4482
    %v4615 = vsel %vm4605, %v4598, %v4484
    %v4617 = vsel %vm4605, %v4600, %v4486
    %v4619 = vsel %vm4605, %v4602, %v4488
    %v4621 = vsel %vm4605, %v4604, %v4490
    %v4623 = vperm.slane %v3598, 0
    %4625 = vst [vmem:[#allocation1] ss:$4 sm:$0xff] %v4607
    %s4626 = scalar_lea.vmem [#allocation1], 1
    %4627 = vst [vmem:[%s4626] ss:$4 sm:$0xff] %v4609
    %s4628 = scalar_lea.vmem [#allocation1], 2
    %4629 = vst [vmem:[%s4628] ss:$4 sm:$0xff] %v4611
    %s4630 = scalar_lea.vmem [#allocation1], 3
    %4631 = vst [vmem:[%s4630] ss:$4 sm:$0xff] %v4613
    %s4632 = scalar_lea.vmem [#allocation1], 32
    %4633 = vst [vmem:[%s4632] ss:$4 sm:$0xff] %v4615
    %s4634 = scalar_lea.vmem [#allocation1], 33
    %4635 = vst [vmem:[%s4634] ss:$4 sm:$0xff] %v4617
    %s4636 = scalar_lea.vmem [#allocation1], 34
    %4637 = vst [vmem:[%s4636] ss:$4 sm:$0xff] %v4619
    %s4638 = scalar_lea.vmem [#allocation1], 35
    %4639 = vst [vmem:[%s4638] ss:$4 sm:$0xff] %v4621
    %v4640 = vld.sshfl [vmem:[#allocation1] sm:$0xff pattern:$0x73625140]
    %v4641 = vld.sshfl [vmem:[#allocation1 + $0x20] sm:$0xff pattern:$0x73625140]
    %v4651 = vunpack.c.l.b16 %v3589
    %v4652 = vunpack.c.l.b16 %v3590
    %v4653 = vunpack.c.l.b16 %v3591
    %v4654 = vunpack.c.l.b16 %v3592
    %v4655 = vunpack.c.l.b16 %v3593
    %v4656 = vunpack.c.l.b16 %v3594
    %v4657 = vunpack.c.l.b16 %v3595
    %v4658 = vunpack.c.l.b16 %v3596
    %v4659 = vunpack.c.l.b16 %v3597
    %v4660 = vpack.c.b16 %v4652, %v4651
    %v4661 = vpack.c.b16 %v4654, %v4653
    %v4662 = vpack.c.b16 %v4656, %v4655
    %v4663 = vpack.c.b16 %v4658, %v4657
    %v4664 = vpack.c.b16 %v4659, %v4659
    %vm4669 = vcmask 588800
    %v4670 = vsel %vm4669, %v4640, 0
    %v4672 = vsel %vm4669, %v4641, 0
    %vm4674 = vcmask 1043456
    %v4676 = vsel %vm4674, %v4664, 0
    %4678 = vmatpush.bf16.msra.mxu0 0
    %4679 = vmatpush.bf16.msra.mxu0 0
    %4680 = vmatpush.bf16.msra.mxu0 0
    %4681 = vmatpush.bf16.msra.mxu0 %v4676
    %4682 = vmatpush.bf16.msra.mxu0 %v4663
    %4683 = vmatpush.bf16.msra.mxu0 %v4662
    %4684 = vmatpush.bf16.msra.mxu0 %v4661
    %4685 = vmatpush.bf16.msra.mxu0 %v4660
    %4686 = vmatmul.bf16.gmra.mxu0 %v4670
    %v4687 = vpop.f32.mrf.mxu0
    %v4688 = vadd.f32 %v4623, %v4687
    %v4689 = vpop.f32.mrf.mxu0
    %v4690 = vadd.f32 %v4623, %v4689
    %4691 = vmatmul.bf16.gmra.mxu0 %v4672
    %v4692 = vpop.f32.mrf.mxu0
    %v4693 = vadd.f32 %v4623, %v4692
    %v4694 = vpop.f32.mrf.mxu0
    %v4695 = vadd.f32 %v4623, %v4694
    %4696 = vdwg.mxu0
    %v4697 = vsel %vm4506, %v4688, 0.0
    %v4698 = vsel %vm4506, %v4690, 0.0
    %v4699 = vadd.f32 %v4697, %v4698
    %v4700 = vsel %vm4506, %v4693, 0.0
    %v4701 = vadd.f32 %v4699, %v4700
    %v4702 = vsel %vm4506, %v4695, 0.0
    %v4703 = vadd.f32 %v4701, %v4702
    %v4704 = vrot.slane %v4703, 4
    %v4705 = vadd.f32 %v4703, %v4704
    %v4706 = vrot.slane %v4705, 2
    %v4707 = vadd.f32 %v4705, %v4706
    %v4708 = vrot.slane %v4707, 1
    %v4709 = vadd.f32 %v4707, %v4708
    %v4710 = vmul.f32 %v4688, %v4688
    %v4711 = vmul.f32 %v4690, %v4690
    %v4712 = vmul.f32 %v4693, %v4693
    %v4713 = vmul.f32 %v4695, %v4695
    %v4714 = vsel %vm4506, %v4710, 0.0
    %v4715 = vsel %vm4506, %v4711, 0.0
    %v4716 = vadd.f32 %v4714, %v4715
    %v4717 = vsel %vm4506, %v4712, 0.0
    %v4718 = vadd.f32 %v4716, %v4717
    %v4719 = vsel %vm4506, %v4713, 0.0
    %v4720 = vadd.f32 %v4718, %v4719
    %v4721 = vrot.slane %v4720, 4
    %v4722 = vadd.f32 %v4720, %v4721
    %v4723 = vrot.slane %v4722, 2
    %v4724 = vadd.f32 %v4722, %v4723
    %v4725 = vrot.slane %v4724, 1
    %v4726 = vadd.f32 %v4724, %v4725
    %v4727 = vmul.f32 %v4709, 0.03125
    %v4728 = vmul.f32 %v4726, 0.03125
    %v4729 = vmul.f32 %v4727, %v4727
    %v4730 = vsub.f32 %v4728, %v4729
    %v4731 = vmax.f32 %v4730, 0.0
    %v4732 = vsub.f32 %v4688, %v4727
    %v4733 = vsub.f32 %v4690, %v4727
    %v4734 = vsub.f32 %v4693, %v4727
    %v4735 = vsub.f32 %v4695, %v4727
    %v4736 = vadd.f32 %v4731, 1e-05
    %v4737 = vrsqrt.pop %v4736
    %v4738 = vmul.f32 %v4737, %v4736
    %v4739 = vmul.f32 %v4738, %v4737
    %v4740 = vmul.f32 0.5, %v4739
    %v4741 = vsub.f32 1.5, %v4740
    %v4742 = vmul.f32 %v4737, %v4741
    %vm4743 = vweird.f32 %v4736
    %vm4744 = vweird.f32 %v4737
    %vm4745 = vmor %vm4743, %vm4744
    %v4746 = vsel %vm4745, %v4737, %v4742
    %v4747 = vmul.f32 %v4732, %v4746
    %v4748 = vmul.f32 %v4733, %v4746
    %v4749 = vmul.f32 %v4734, %v4746
    %v4750 = vmul.f32 %v4735, %v4746
    %v4751 = vld [vmem:[%s5] sm:$0x1]
    %v4753 = vperm.slane %v4751, 0
    %v4755 = vmul.f32 %v4747, %v4753
    %v4756 = vmul.f32 %v4748, %v4753
    %v4757 = vmul.f32 %v4749, %v4753
    %v4758 = vmul.f32 %v4750, %v4753
    %v4759 = vld [vmem:[%s6] sm:$0x1]
    %v4761 = vperm.slane %v4759, 0
    %v4763 = vadd.f32 %v4755, %v4761
    %v4764 = vadd.f32 %v4756, %v4761
    %v4765 = vadd.f32 %v4757, %v4761
    %v4766 = vadd.f32 %v4758, %v4761
    %vm4767 = vcmp.gt.f32.partialorder %v4763, 0.0
    %vm4768 = vcmp.gt.f32.partialorder %v4764, 0.0
    %vm4769 = vcmp.gt.f32.partialorder %v4765, 0.0
    %vm4770 = vcmp.gt.f32.partialorder %v4766, 0.0
    %v4771 = vmul.f32 %v4763, 0.2
    %v4772 = vmul.f32 %v4764, 0.2
    %v4773 = vmul.f32 %v4765, 0.2
    %v4774 = vmul.f32 %v4766, 0.2
    %v4775 = vsel %vm4767, %v4763, %v4771
    %v4776 = vsel %vm4768, %v4764, %v4772
    %v4777 = vsel %vm4769, %v4765, %v4773
    %v4778 = vsel %vm4770, %v4766, %v4774
    %v4783 = vrot.slane %v4775, 4
    %v4784 = vrot.slane %v4776, 4
    %v4785 = vrot.slane %v4777, 4
    %v4786 = vrot.slane %v4778, 4
    %v4787 = vperm.slane %v4775, 0
    %v4788 = vperm.slane %v4777, 0
    %vm4789 = vcmask 1041409
    %v4790 = vsel %vm4789, %v4788, %v4787
    %v4792 = vperm.slane %v4775, 1
    %v4793 = vperm.slane %v4777, 1
    %v4794 = vsel %vm4789, %v4793, %v4792
    %4795 = vrot.lane.b32.xlu0 %v4794, 16
    %v4796 = vpop.permute.xlu0 %4795
    %v4798 = vperm.slane %v4775, 2
    %v4799 = vperm.slane %v4777, 2
    %v4800 = vsel %vm4789, %v4799, %v4798
    %4801 = vrot.lane.b32.xlu0 %v4800, 32
    %v4802 = vpop.permute.xlu0 %4801
    %v4804 = vperm.slane %v4775, 3
    %v4805 = vperm.slane %v4777, 3
    %v4806 = vsel %vm4789, %v4805, %v4804
    %4807 = vrot.lane.b32.xlu0 %v4806, 48
    %v4808 = vpop.permute.xlu0 %4807
    %v4810 = vperm.slane %v4783, 0
    %v4811 = vperm.slane %v4785, 0
    %v4812 = vsel %vm4789, %v4811, %v4810
    %4813 = vrot.lane.b32.xlu0 %v4812, 64
    %v4814 = vpop.permute.xlu0 %4813
    %v4816 = vperm.slane %v4783, 1
    %v4817 = vperm.slane %v4785, 1
    %v4818 = vsel %vm4789, %v4817, %v4816
    %4819 = vrot.lane.b32.xlu0 %v4818, 80
    %v4820 = vpop.permute.xlu0 %4819
    %v4822 = vperm.slane %v4783, 2
    %v4823 = vperm.slane %v4785, 2
    %v4824 = vsel %vm4789, %v4823, %v4822
    %4825 = vrot.lane.b32.xlu0 %v4824, 96
    %v4826 = vpop.permute.xlu0 %4825
    %v4828 = vperm.slane %v4783, 3
    %v4829 = vperm.slane %v4785, 3
    %v4830 = vsel %vm4789, %v4829, %v4828
    %4831 = vrot.lane.b32.xlu0 %v4830, 112
    %v4832 = vpop.permute.xlu0 %4831
    %v4834 = vperm.slane %v4776, 0
    %v4835 = vperm.slane %v4778, 0
    %v4836 = vsel %vm4789, %v4835, %v4834
    %v4838 = vperm.slane %v4776, 1
    %v4839 = vperm.slane %v4778, 1
    %v4840 = vsel %vm4789, %v4839, %v4838
    %4841 = vrot.lane.b32.xlu0 %v4840, 16
    %v4842 = vpop.permute.xlu0 %4841
    %v4844 = vperm.slane %v4776, 2
    %v4845 = vperm.slane %v4778, 2
    %v4846 = vsel %vm4789, %v4845, %v4844
    %4847 = vrot.lane.b32.xlu0 %v4846, 32
    %v4848 = vpop.permute.xlu0 %4847
    %v4850 = vperm.slane %v4776, 3
    %v4851 = vperm.slane %v4778, 3
    %v4852 = vsel %vm4789, %v4851, %v4850
    %4853 = vrot.lane.b32.xlu0 %v4852, 48
    %v4854 = vpop.permute.xlu0 %4853
    %v4856 = vperm.slane %v4784, 0
    %v4857 = vperm.slane %v4786, 0
    %v4858 = vsel %vm4789, %v4857, %v4856
    %4859 = vrot.lane.b32.xlu0 %v4858, 64
    %v4860 = vpop.permute.xlu0 %4859
    %v4862 = vperm.slane %v4784, 1
    %v4863 = vperm.slane %v4786, 1
    %v4864 = vsel %vm4789, %v4863, %v4862
    %4865 = vrot.lane.b32.xlu0 %v4864, 80
    %v4866 = vpop.permute.xlu0 %4865
    %v4868 = vperm.slane %v4784, 2
    %v4869 = vperm.slane %v4786, 2
    %v4870 = vsel %vm4789, %v4869, %v4868
    %4871 = vrot.lane.b32.xlu0 %v4870, 96
    %v4872 = vpop.permute.xlu0 %4871
    %v4874 = vperm.slane %v4784, 3
    %v4875 = vperm.slane %v4786, 3
    %v4876 = vsel %vm4789, %v4875, %v4874
    %4877 = vrot.lane.b32.xlu0 %v4876, 112
    %v4878 = vpop.permute.xlu0 %4877
    %v4880 = vsel %vm4506, %v4790, %v4796
    %v4881 = vsel %vm4537, %v4880, %v4802
    %v4882 = vsel %vm4571, %v4881, %v4808
    %v4883 = vsel %vm4605, %v4882, %v4814
    %vm4884 = vcmask 654336
    %v4885 = vsel %vm4884, %v4883, %v4820
    %vm4886 = vcmask 785408
    %v4887 = vsel %vm4886, %v4885, %v4826
    %vm4888 = vcmask 916480
    %v4889 = vsel %vm4888, %v4887, %v4832
    %v4890 = vsel %vm4506, %v4836, %v4842
    %v4891 = vsel %vm4537, %v4890, %v4848
    %v4892 = vsel %vm4571, %v4891, %v4854
    %v4893 = vsel %vm4605, %v4892, %v4860
    %v4894 = vsel %vm4884, %v4893, %v4866
    %v4895 = vsel %vm4886, %v4894, %v4872
    %v4896 = vsel %vm4888, %v4895, %v4878
    %v4897 = vld [vmem:[%s7] sm:$0xff]
    %v4898 = vld [vmem:[%s7 + $0x8] sm:$0xff]
    %v4899 = vld [vmem:[%s7 + $0x10] sm:$0xff]
    %v4900 = vld [vmem:[%s7 + $0x18] sm:$0xff]
    %v4901 = vld [vmem:[%s7 + $0x20] sm:$0xff]
    %v4902 = vld [vmem:[%s7 + $0x28] sm:$0xff]
    %v4903 = vld [vmem:[%s7 + $0x30] sm:$0xff]
    %v4904 = vld [vmem:[%s7 + $0x38] sm:$0xff]
    %v4905 = vld [vmem:[%s7 + $0x40] sm:$0xff]
    %v4906 = vld [vmem:[%s7 + $0x48] sm:$0xff]
    %v4907 = vld [vmem:[%s7 + $0x50] sm:$0xff]
    %v4908 = vld [vmem:[%s7 + $0x58] sm:$0xff]
    %v4909 = vld [vmem:[%s7 + $0x60] sm:$0xff]
    %v4910 = vld [vmem:[%s7 + $0x68] sm:$0xff]
    %v4911 = vld [vmem:[%s7 + $0x70] sm:$0xff]
    %v4912 = vld [vmem:[%s7 + $0x78] sm:$0xff]
    %v4913 = vld [vmem:[%s7 + $0x80] sm:$0xff]
    %v4914 = vld [vmem:[%s7 + $0x88] sm:$0xff]
    %v4915 = vld [vmem:[%s7 + $0x90] sm:$0xff]
    %v4916 = vld [vmem:[%s7 + $0x98] sm:$0xff]
    %v4917 = vld [vmem:[%s7 + $0xa0] sm:$0xff]
    %v4918 = vld [vmem:[%s7 + $0xa8] sm:$0xff]
    %v4919 = vld [vmem:[%s7 + $0xb0] sm:$0xff]
    %v4920 = vld [vmem:[%s7 + $0xb8] sm:$0xff]
    %v4921 = vld [vmem:[%s7 + $0xc0] sm:$0xff]
    %v4922 = vld [vmem:[%s7 + $0xc8] sm:$0xff]
    %v4923 = vld [vmem:[%s7 + $0xd0] sm:$0xff]
    %v4924 = vld [vmem:[%s7 + $0xd8] sm:$0xff]
    %v4925 = vld [vmem:[%s7 + $0xe0] sm:$0xff]
    %v4926 = vld [vmem:[%s7 + $0xe8] sm:$0xff]
    %v4927 = vld [vmem:[%s7 + $0xf0] sm:$0xff]
    %v4928 = vld [vmem:[%s7 + $0xf8] sm:$0xff]
    %v4929 = vld [vmem:[%s8] sm:$0x1]
    %v4931 = vperm.slane %v4929, 0
    %4933 = vmatpush.msra.mxu0 %v4912
    %4934 = vmatpush.msra.mxu0 %v4911
    %4935 = vmatpush.msra.mxu0 %v4910
    %4936 = vmatpush.msra.mxu0 %v4909
    %4937 = vmatpush.msra.mxu0 %v4908
    %4938 = vmatpush.msra.mxu0 %v4907
    %4939 = vmatpush.msra.mxu0 %v4906
    %4940 = vmatpush.msra.mxu0 %v4905
    %4941 = vmatpush.msra.mxu0 %v4904
    %4942 = vmatpush.msra.mxu0 %v4903
    %4943 = vmatpush.msra.mxu0 %v4902
    %4944 = vmatpush.msra.mxu0 %v4901
    %4945 = vmatpush.msra.mxu0 %v4900
    %4946 = vmatpush.msra.mxu0 %v4899
    %4947 = vmatpush.msra.mxu0 %v4898
    %4948 = vmatpush.msra.mxu0 %v4897
    %4949 = vmatmul.f32.gmra.mxu0 %v4889
    %v4950 = vpop.f32.mrf.mxu0
    %v4951 = vadd.f32 %v4931, %v4950
    %4952 = vdwg.mxu0
    %4953 = vmatpush.msra.mxu0 %v4928
    %4954 = vmatpush.msra.mxu0 %v4927
    %4955 = vmatpush.msra.mxu0 %v4926
    %4956 = vmatpush.msra.mxu0 %v4925
    %4957 = vmatpush.msra.mxu0 %v4924
    %4958 = vmatpush.msra.mxu0 %v4923
    %4959 = vmatpush.msra.mxu0 %v4922
    %4960 = vmatpush.msra.mxu0 %v4921
    %4961 = vmatpush.msra.mxu0 %v4920
    %4962 = vmatpush.msra.mxu0 %v4919
    %4963 = vmatpush.msra.mxu0 %v4918
    %4964 = vmatpush.msra.mxu0 %v4917
    %4965 = vmatpush.msra.mxu0 %v4916
    %4966 = vmatpush.msra.mxu0 %v4915
    %4967 = vmatpush.msra.mxu0 %v4914
    %4968 = vmatpush.msra.mxu0 %v4913
    %4969 = vmatmul.f32.gmra.mxu0 %v4896
    %v4970 = vpop.f32.mrf.mxu0
    %v4971 = vadd.f32 %v4951, %v4970
    %4972 = vdwg.mxu0
    %vm4973 = vcmask 58368
    %4974 = vst.msk [vmem:[#allocation2] sm:$0x3] %vm4973, %v4971
    // Predicated region
    $region38: #{qrator_forward.1} parent=1 // pred_check
      _
    $region39: #{qrator_forward.1} parent=1 // pred_check_branch
      %4976 = sbr.rel (0) target = $region41
    $region40: #{qrator_forward.1} parent=1 // pred_region
      %4978 = vsyncadd [#allocation3], 0
      %s4980 = sshll.u32 [#allocation2], 4
      %s4981 = int_to_ptr.vmem [resolvable:$true] %s4980
      %s4982 = sshll.u32 %s9, 4
      %s4983 = int_to_ptr.hbm [resolvable:$true] %s4982
      %4985 = dma.vmem_to_hbm [thread:$0]  %s4981, 32, %s4983, [#allocation3]
    $region41: #{qrator_forward.1} parent=1 // pred_fallthru
      _
    // Predicated region
    $region42: #{qrator_forward.1} parent=1 // pred_check
      _
    $region43: #{qrator_forward.1} parent=1 // pred_check_branch
      %4987 = sbr.rel (0) target = $region45
    $region44: #{qrator_forward.1} parent=1 // pred_region
      %4989 = dma.done [#allocation3], 32
    $region45: #{qrator_forward.1} parent=1 // pred_fallthru
      _
    %4990 = vsyncpa [#allocation3], 1

</llo_original>
